<compile_context>
chip_gen: v7x
topology: tpu7x:2x2x1
jax: 0.10.0
libtpu: 0.0.40
codegen_flags: <defaults>
</compile_context>

<pallas_src>
import functools

import jax
import jax.numpy as jnp
import numpy as np
from jax import lax
from jax.experimental import pallas as pl
from jax.experimental.pallas import tpu as pltpu


def _round_up(x, m):
    return (x + m - 1) // m * m


def _vmem_budget_bytes():
    """Per-core VMEM budget: physical capacity minus headroom for compiler scratch."""
    phys = 64 << 20                       # conservative default (v7x per-TC VMEM)
    try:
        info = pltpu.get_tpu_info()
        phys = int(getattr(info, "vmem_capacity_bytes", phys))
    except Exception:
        pass
    return (phys * 3) // 4                # ~48 MiB on v7x, ~96 MiB on v5e/v6e


# --------------------------------------------------------------------------
# Pallas kernel: fused (both directions interleaved) LSTM recurrence.
# Grid = (nBb, nTb): batch-block axis is "parallel" (shards across v7x TCs),
# the time-block axis is the sequential ("arbitrary") recurrence.
# The h carry lives in VMEM scratch; the c carry lives directly in the
# (resident) final-c output block.  Both are re-zeroed at time block 0.
# --------------------------------------------------------------------------
def _bilstm_kernel(*refs, hp, tt, ndir, t_real, pad_time, mm_dtype, unroll):
    if ndir == 2:
        (xf_ref, xb_ref, wih_ref, whh_ref,
         hf_out, hb_out, c_out, h_scr, pre_f, pre_b) = refs
    else:
        (xf_ref, wih_ref, whh_ref, hf_out, c_out, h_scr, pre_f) = refs
        xb_ref = hb_out = pre_b = None

    s = pl.program_id(1)                  # time-block index

    @pl.when(s == 0)
    def _init():
        h_scr[...] = jnp.zeros(h_scr.shape, h_scr.dtype)
        c_out[...] = jnp.zeros(c_out.shape, c_out.dtype)

    # ---- Hoisted input projection for this time block ----------------------
    # Bias is folded into W_ih_aug via the ones column appended to x.
    bb = xf_ref.shape[1]
    e1 = xf_ref.shape[2]
    pre_f[...] = jnp.dot(
        xf_ref[...].reshape(tt * bb, e1), wih_ref[0],
        preferred_element_type=jnp.float32).reshape(pre_f.shape)
    if ndir == 2:
        pre_b[...] = jnp.dot(
            xb_ref[...].reshape(tt * bb, e1), wih_ref[1],
            preferred_element_type=jnp.float32).reshape(pre_b.shape)

    # ---- Recurrent weights: loaded once per grid step (already mm_dtype) ---
    whh_f = whh_ref[0]
    whh_b = whh_ref[1] if ndir == 2 else None

    def gate_math(gates, c):
        i_g = jax.nn.sigmoid(gates[:, 0:hp])
        f_g = jax.nn.sigmoid(gates[:, hp:2 * hp])
        g_g = jnp.tanh(gates[:, 2 * hp:3 * hp])
        o_g = jax.nn.sigmoid(gates[:, 3 * hp:4 * hp])
        c_new = f_g * c + i_g * g_g
        h_new = o_g * jnp.tanh(c_new)
        return h_new, c_new

    def step(i, carry):
        if ndir == 2:
            hf, cf, hb, cb = carry
        else:
            hf, cf = carry

        # Forward chain: local time i within block s.
        gf = pre_f[i] + jnp.dot(hf.astype(mm_dtype), whh_f,
                                preferred_element_type=jnp.float32)
        hf_new, cf_new = gate_math(gf, cf)
        if pad_time:
            # Freeze the forward carry on zero-padded trailing timesteps so the
            # reported final c matches the last REAL timestep.
            valid = (s * tt + i) < t_real
            hf_new = jnp.where(valid, hf_new, hf)
            cf_new = jnp.where(valid, cf_new, cf)
        hf_out[i] = hf_new

        if ndir == 2:
            # Backward chain walks this block back-to-front (its time block was
            # already selected back-to-front by the index_map).  Padded steps
            # have exactly-zero pre-gates and therefore keep h = c = 0.
            lb = tt - 1 - i
            gb = pre_b[lb] + jnp.dot(hb.astype(mm_dtype), whh_b,
                                     preferred_element_type=jnp.float32)
            hb_new, cb_new = gate_math(gb, cb)
            hb_out[lb] = hb_new
            return hf_new, cf_new, hb_new, cb_new
        return hf_new, cf_new

    if ndir == 2:
        init = (h_scr[:, 0:hp], c_out[:, 0:hp],
                h_scr[:, hp:2 * hp], c_out[:, hp:2 * hp])
    else:
        init = (h_scr[:, 0:hp], c_out[:, 0:hp])

    fin = lax.fori_loop(0, tt, step, init, unroll=unroll)

    if ndir == 2:
        hf, cf, hb, cb = fin
        h_scr[:, 0:hp] = hf
        h_scr[:, hp:2 * hp] = hb
        c_out[:, 0:hp] = cf           # resident output block == the c carry
        c_out[:, hp:2 * hp] = cb
    else:
        hf, cf = fin
        h_scr[...] = hf
        c_out[...] = cf


# --------------------------------------------------------------------------
# Weight preparation: reorganize the 4 gate blocks, zero-pad hidden -> Hp,
# transpose for right-multiplication, fold the bias into an extra W_ih row.
# --------------------------------------------------------------------------
def _prep_direction(w_ih, w_hh, b_ih, b_hh, H, Hp, mm_dtype):
    w_ih = jnp.asarray(w_ih, jnp.float32)                 # (4H, E)
    w_hh = jnp.asarray(w_hh, jnp.float32)                 # (4H, H)
    bias = jnp.asarray(b_ih, jnp.float32) + jnp.asarray(b_hh, jnp.float32)
    E = w_ih.shape[1]
    ph = Hp - H

    w_ih4 = jnp.pad(w_ih.reshape(4, H, E), ((0, 0), (0, ph), (0, 0)))
    w_hh4 = jnp.pad(w_hh.reshape(4, H, H), ((0, 0), (0, ph), (0, ph)))
    b4 = jnp.pad(bias.reshape(4, H), ((0, 0), (0, ph)))

    wih_t = w_ih4.reshape(4 * Hp, E).T                    # (E,  4Hp)
    whh_t = w_hh4.reshape(4 * Hp, Hp).T                   # (Hp, 4Hp)
    b_row = b4.reshape(1, 4 * Hp)                         # (1,  4Hp)
    wih_aug = jnp.concatenate([wih_t, b_row], axis=0)     # (E+1, 4Hp)
    return wih_aug.astype(mm_dtype), whh_t.astype(mm_dtype)


# --------------------------------------------------------------------------
# Wrapper matching CustomLSTM.forward(inputs, gradients=False).
# --------------------------------------------------------------------------
def custom_lstm_forward(x_bte, params, hidden, bidirectional=True,
                        mm_dtype=jnp.float32):
    x = jnp.asarray(x_bte, jnp.float32)
    B, T, E = x.shape
    H = hidden
    ndir = 2 if bidirectional else 1
    Hp = _round_up(H, 128)               # lane-friendly hidden
    Bp = _round_up(B, 8)                 # sublane-friendly batch
    # Batch-block "parallel" axis: gives both v7x TensorCores work when the
    # padded batch splits into two sublane-aligned halves (harmless elsewhere).
    nBb = 2 if (Bp >= 16 and Bp % 16 == 0) else 1
    Bb = Bp // nBb
    E1 = E + 1                           # ones column carries the bias
    item = jnp.dtype(mm_dtype).itemsize

    budget = _vmem_budget_bytes()

    def est_bytes(tt):
        return (2 * ndir * tt * Bb * E1 * item       # pipelined x blocks
                + 2 * ndir * tt * Bb * Hp * 4        # pipelined h-seq out blocks
                + 2 * ndir * E1 * 4 * Hp * item      # resident W_ih (+bias row)
                + 2 * ndir * Hp * 4 * Hp * item      # resident W_hh
                + 2 * Bb * ndir * Hp * 4             # resident final-c block
                + Bb * ndir * Hp * 4                 # h carry scratch
                + ndir * tt * Bb * 4 * Hp * 4        # pre-gate scratch
                + (2 << 20))                         # compiler headroom

    # VMEM-aware time-block size; allow padding T (cost model: padded recurrent
    # steps + ~2 steps equivalent grid overhead per block).
    cands = {t for t in (1, 2, 4, 8, 16, 32, 64, 128) if t <= T}
    if T <= 128:
        cands.add(T)
    best = None
    for t in sorted(cands, reverse=True):
        if est_bytes(t) > budget:
            continue
        cost = (-(-T // t)) * (t + 2)
        if best is None or cost < best[1]:
            best = (t, cost)
    TT = best[0] if best is not None else 1
    nTb = -(-T // TT)
    Tp = nTb * TT
    pad_time = Tp != T

    # ---- parameters --------------------------------------------------------
    prefixes = ("f", "b")[:ndir]
    wih_l, whh_l = [], []
    for p in prefixes:
        a, b_ = _prep_direction(params[f"{p}_wih"], params[f"{p}_whh"],
                                params[f"{p}_bih"], params[f"{p}_bhh"],
                                H, Hp, mm_dtype)
        wih_l.append(a)
        whh_l.append(b_)
    wih_s = jnp.stack(wih_l)             # (ndir, E+1, 4Hp)
    whh_s = jnp.stack(whh_l)             # (ndir, Hp,  4Hp)

    # ---- inputs: (Tp, Bp, E+1), ones column = bias, zero-padded time rows ---
    x_p = jnp.pad(x, ((0, Bp - B), (0, 0), (0, 0)))               # (Bp, T, E)
    x_aug = jnp.concatenate([x_p, jnp.ones((Bp, T, 1), jnp.float32)], axis=-1)
    x_aug = jnp.transpose(x_aug, (1, 0, 2))                       # (T, Bp, E+1)
    if pad_time:
        x_aug = jnp.pad(x_aug, ((0, Tp - T), (0, 0), (0, 0)))     # zero pre rows
    x_aug = x_aug.astype(mm_dtype)

    # ---- unroll heuristic: keep the unrolled gate live-set off the spill path
    live = ndir * Bb * 4 * Hp * 4
    if live <= 48 << 10:
        unroll = min(TT, 8)
    elif live <= 128 << 10:
        unroll = min(TT, 4)
    else:
        unroll = min(TT, 2)

    kernel = functools.partial(
        _bilstm_kernel, hp=Hp, tt=TT, ndir=ndir, t_real=T,
        pad_time=pad_time, mm_dtype=mm_dtype, unroll=unroll)

    in_specs = [pl.BlockSpec((TT, Bb, E1), lambda b, s: (s, b, 0))]
    inputs = [x_aug]
    if ndir == 2:
        in_specs.append(
            pl.BlockSpec((TT, Bb, E1), lambda b, s: (nTb - 1 - s, b, 0)))
        inputs.append(x_aug)
    in_specs += [pl.BlockSpec((ndir, E1, 4 * Hp), lambda b, s: (0, 0, 0)),
                 pl.BlockSpec((ndir, Hp, 4 * Hp), lambda b, s: (0, 0, 0))]
    inputs += [wih_s, whh_s]

    out_shape = [jax.ShapeDtypeStruct((Tp, Bp, Hp), jnp.float32)]
    out_specs = [pl.BlockSpec((TT, Bb, Hp), lambda b, s: (s, b, 0))]
    if ndir == 2:
        out_shape.append(jax.ShapeDtypeStruct((Tp, Bp, Hp), jnp.float32))
        out_specs.append(
            pl.BlockSpec((TT, Bb, Hp), lambda b, s: (nTb - 1 - s, b, 0)))
    out_shape.append(jax.ShapeDtypeStruct((Bp, ndir * Hp), jnp.float32))
    out_specs.append(pl.BlockSpec((Bb, ndir * Hp), lambda b, s: (b, 0)))

    scratch = [pltpu.VMEM((Bb, ndir * Hp), jnp.float32),          # h carry
               pltpu.VMEM((TT, Bb, 4 * Hp), jnp.float32)]         # fwd pre-gates
    if ndir == 2:
        scratch.append(pltpu.VMEM((TT, Bb, 4 * Hp), jnp.float32))  # bwd pre-gates

    cp_kwargs = dict(dimension_semantics=("parallel", "arbitrary"))
    need = est_bytes(TT)
    if need > (12 << 20):        # above the smallest (v5e) scoped default, w/ margin
        cp_kwargs["vmem_limit_bytes"] = int(min(budget, need + need // 4))

    outs = pl.pallas_call(
        kernel,
        out_shape=tuple(out_shape),
        grid_spec=pltpu.PrefetchScalarGridSpec(
            num_scalar_prefetch=0,
            grid=(nBb, nTb),
            in_specs=in_specs,
            out_specs=tuple(out_specs),
            scratch_shapes=scratch),
        compiler_params=pltpu.CompilerParams(**cp_kwargs),
    )(*inputs)

    # ---- unpad / unpack exactly like the PyTorch module's outputs ----------
    h_seq_f = outs[0]
    c_fin = outs[-1]
    f_seq = h_seq_f[:T, :B, :H]                       # (T, B, H)
    f_h = f_seq[T - 1]
    f_c = c_fin[:B, 0:H]
    if ndir == 1:
        return jnp.transpose(f_seq, (1, 0, 2)), (f_h, f_c)

    h_seq_b = outs[1]
    b_seq = h_seq_b[:T, :B, :H]                       # (T, B, H)
    b_h = b_seq[0]
    b_c = c_fin[:B, Hp:Hp + H]
    h_out = jnp.transpose(jnp.concatenate([f_seq, b_seq], axis=-1), (1, 0, 2))
    hx = jnp.concatenate([f_h, b_h], axis=1)          # (B, 2H)
    cx = jnp.concatenate([f_c, b_c], axis=1)          # (B, 2H)
    return h_out, (hx, cx)


# --------------------------------------------------------------------------
# Pure-JAX reference (for correctness check)
# --------------------------------------------------------------------------
def _ref_cell(x, h, c, w_ih, w_hh, b_ih, b_hh, hidden):
    gates = x @ w_ih.T + b_ih + h @ w_hh.T + b_hh
    i = jax.nn.sigmoid(gates[:, 0:hidden])
    f = jax.nn.sigmoid(gates[:, hidden:2 * hidden])
    g = jnp.tanh(gates[:, 2 * hidden:3 * hidden])
    o = jax.nn.sigmoid(gates[:, 3 * hidden:4 * hidden])
    c_new = f * c + i * g
    h_new = o * jnp.tanh(c_new)
    return h_new, c_new


def reference_forward(x_bte, params, hidden):
    B, T, _ = x_bte.shape
    f_h = jnp.zeros((B, hidden), jnp.float32)
    f_c = jnp.zeros((B, hidden), jnp.float32)
    b_h = jnp.zeros((B, hidden), jnp.float32)
    b_c = jnp.zeros((B, hidden), jnp.float32)
    f_list, b_list = [], []
    for t in range(T):
        f_h, f_c = _ref_cell(x_bte[:, t], f_h, f_c,
                             params["f_wih"], params["f_whh"],
                             params["f_bih"], params["f_bhh"], hidden)
        f_list.append(f_h)
    for t in range(T - 1, -1, -1):
        b_h, b_c = _ref_cell(x_bte[:, t], b_h, b_c,
                             params["b_wih"], params["b_whh"],
                             params["b_bih"], params["b_bhh"], hidden)
        b_list.append(b_h)
    b_list = b_list[::-1]
    h_out = jnp.stack([jnp.concatenate([f_list[t], b_list[t]], axis=1)
                       for t in range(T)], axis=1)
    return h_out, (jnp.concatenate([f_h, b_h], axis=1),
                   jnp.concatenate([f_c, b_c], axis=1))


# --------------------------------------------------------------------------
if __name__ == "__main__":
    B, T, E, H = 2, 8, 16, 32   # batch, seq, emb_size, hidden

    key = jax.random.PRNGKey(0)
    keys = jax.random.split(key, 9)
    k = 1.0 / np.sqrt(H)        # PyTorch LSTMCell init: U(-1/sqrt(h), 1/sqrt(h))

    def u(kk, shape):
        return jax.random.uniform(kk, shape, jnp.float32, -k, k)

    params = {
        "f_wih": u(keys[0], (4 * H, E)),
        "f_whh": u(keys[1], (4 * H, H)),
        "f_bih": u(keys[2], (4 * H,)),
        "f_bhh": u(keys[3], (4 * H,)),
        "b_wih": u(keys[4], (4 * H, E)),
        "b_whh": u(keys[5], (4 * H, H)),
        "b_bih": u(keys[6], (4 * H,)),
        "b_bhh": u(keys[7], (4 * H,)),
    }

    x = jax.random.normal(keys[8], (B, T, E), jnp.float32)

    h_out, (hx, cx) = custom_lstm_forward(x, params, H, bidirectional=True)
    jax.block_until_ready((h_out, hx, cx))

    h_ref, (hx_ref, cx_ref) = reference_forward(x, params, H)
    np.testing.assert_allclose(np.asarray(h_out), np.asarray(h_ref),
                               rtol=1e-5, atol=1e-5)
    np.testing.assert_allclose(np.asarray(hx), np.asarray(hx_ref),
                               rtol=1e-5, atol=1e-5)
    np.testing.assert_allclose(np.asarray(cx), np.asarray(cx_ref),
                               rtol=1e-5, atol=1e-5)

    assert h_out.shape == (B, T, 2 * H)
    assert hx.shape == (B, 2 * H) and cx.shape == (B, 2 * H)
    print("KERNEL_OK")
</pallas_src>

<mosaic_0001>
module attributes {stable_mosaic.version = 11 : i64} {
  func.func @_bilstm_kernel(%arg0: i32, %arg1: i32, %arg2: memref<8x8x17xf32, #tpu.memory_space<vmem>>, %arg3: memref<8x8x17xf32, #tpu.memory_space<vmem>>, %arg4: memref<2x17x512xf32, #tpu.memory_space<vmem>>, %arg5: memref<2x128x512xf32, #tpu.memory_space<vmem>>, %arg6: memref<8x8x128xf32, #tpu.memory_space<vmem>>, %arg7: memref<8x8x128xf32, #tpu.memory_space<vmem>>, %arg8: memref<8x256xf32, #tpu.memory_space<vmem>>, %arg9: memref<8x256xf32, #tpu.memory_space<vmem>>, %arg10: memref<8x8x512xf32, #tpu.memory_space<vmem>>, %arg11: memref<8x8x512xf32, #tpu.memory_space<vmem>>) attributes {dimension_semantics = [#tpu.dimension_semantics<parallel>, #tpu.dimension_semantics<arbitrary>], iteration_bounds = array<i64: 1, 1>, scalar_prefetch = 0 : i64, scratch_operands = 3 : i64, tpu.core_type = #tpu.core_type<tc>, window_params = [{transform_indices = @transform_0, window_bounds = array<i64: 8, 8, 17>}, {transform_indices = @transform_1, window_bounds = array<i64: 8, 8, 17>}, {pipeline_mode = #tpu.pipeline_mode<synchronous>, transform_indices = @transform_2, window_bounds = array<i64: 2, 17, 512>}, {pipeline_mode = #tpu.pipeline_mode<synchronous>, transform_indices = @transform_3, window_bounds = array<i64: 2, 128, 512>}, {transform_indices = @transform_4, window_bounds = array<i64: 8, 8, 128>}, {transform_indices = @transform_5, window_bounds = array<i64: 8, 8, 128>}, {transform_indices = @transform_6, window_bounds = array<i64: 8, 256>}]} {
    %c0_i32 = arith.constant 0 : i32
    %0 = arith.cmpi eq, %arg1, %c0_i32 : i32
    %1 = arith.extui %0 : i1 to i32
    %c0_i32_0 = arith.constant 0 : i32
    %2 = arith.cmpi ne, %1, %c0_i32_0 : i32
    scf.if %2 {
      %cst_176 = arith.constant 0.000000e+00 : f32
      %581 = vector.broadcast %cst_176 : f32 to vector<8x256xf32>
      %c0_177 = arith.constant 0 : index
      %c0_178 = arith.constant 0 : index
      %582 = vector.load %arg9[%c0_177, %c0_178] : memref<8x256xf32, #tpu.memory_space<vmem>>, vector<8x256xf32>
      tpu.vector_store %arg9[%c0_177, %c0_178], %581 {strides = array<i32>} : memref<8x256xf32, #tpu.memory_space<vmem>>, vector<8x256xf32>,
      %cst_179 = arith.constant 0.000000e+00 : f32
      %583 = vector.broadcast %cst_179 : f32 to vector<8x256xf32>
      %c0_180 = arith.constant 0 : index
      %c0_181 = arith.constant 0 : index
      %584 = vector.load %arg8[%c0_180, %c0_181] : memref<8x256xf32, #tpu.memory_space<vmem>>, vector<8x256xf32>
      tpu.vector_store %arg8[%c0_180, %c0_181], %583 {strides = array<i32>} : memref<8x256xf32, #tpu.memory_space<vmem>>, vector<8x256xf32>,
    } else {
    }
    %c0 = arith.constant 0 : index
    %c0_1 = arith.constant 0 : index
    %c0_2 = arith.constant 0 : index
    %3 = vector.load %arg2[%c0, %c0_1, %c0_2] : memref<8x8x17xf32, #tpu.memory_space<vmem>>, vector<8x8x17xf32>
    %4 = vector.shape_cast %3 : vector<8x8x17xf32> to vector<64x17xf32>
    %c0_3 = arith.constant 0 : index
    %c0_4 = arith.constant 0 : index
    %c0_5 = arith.constant 0 : index
    %5 = vector.load %arg4[%c0_3, %c0_4, %c0_5] : memref<2x17x512xf32, #tpu.memory_space<vmem>>, vector<1x17x512xf32>
    %6 = vector.shape_cast %5 : vector<1x17x512xf32> to vector<17x512xf32>
    %cst = arith.constant dense<0.000000e+00> : vector<64x512xf32>
    %7 = tpu.matmul %4, %6, %cst {dimension_numbers = #tpu.dot_dimension_numbers<[1], [0], [0], [1], [0, 0, 1, 1], [], []>} : vector<64x17xf32>, vector<17x512xf32>, vector<64x512xf32> -> vector<64x512xf32>
    %8 = vector.shape_cast %7 : vector<64x512xf32> to vector<8x8x512xf32>
    %c0_6 = arith.constant 0 : index
    %c0_7 = arith.constant 0 : index
    %c0_8 = arith.constant 0 : index
    %9 = vector.load %arg10[%c0_6, %c0_7, %c0_8] : memref<8x8x512xf32, #tpu.memory_space<vmem>>, vector<8x8x512xf32>
    tpu.vector_store %arg10[%c0_6, %c0_7, %c0_8], %8 {strides = array<i32>} : memref<8x8x512xf32, #tpu.memory_space<vmem>>, vector<8x8x512xf32>,
    %c0_9 = arith.constant 0 : index
    %c0_10 = arith.constant 0 : index
    %c0_11 = arith.constant 0 : index
    %10 = vector.load %arg3[%c0_9, %c0_10, %c0_11] : memref<8x8x17xf32, #tpu.memory_space<vmem>>, vector<8x8x17xf32>
    %11 = vector.shape_cast %10 : vector<8x8x17xf32> to vector<64x17xf32>
    %c1 = arith.constant 1 : index
    %c0_12 = arith.constant 0 : index
    %c0_13 = arith.constant 0 : index
    %12 = vector.load %arg4[%c1, %c0_12, %c0_13] : memref<2x17x512xf32, #tpu.memory_space<vmem>>, vector<1x17x512xf32>
    %13 = vector.shape_cast %12 : vector<1x17x512xf32> to vector<17x512xf32>
    %cst_14 = arith.constant dense<0.000000e+00> : vector<64x512xf32>
    %14 = tpu.matmul %11, %13, %cst_14 {dimension_numbers = #tpu.dot_dimension_numbers<[1], [0], [0], [1], [0, 0, 1, 1], [], []>} : vector<64x17xf32>, vector<17x512xf32>, vector<64x512xf32> -> vector<64x512xf32>
    %15 = vector.shape_cast %14 : vector<64x512xf32> to vector<8x8x512xf32>
    %c0_15 = arith.constant 0 : index
    %c0_16 = arith.constant 0 : index
    %c0_17 = arith.constant 0 : index
    %16 = vector.load %arg11[%c0_15, %c0_16, %c0_17] : memref<8x8x512xf32, #tpu.memory_space<vmem>>, vector<8x8x512xf32>
    tpu.vector_store %arg11[%c0_15, %c0_16, %c0_17], %15 {strides = array<i32>} : memref<8x8x512xf32, #tpu.memory_space<vmem>>, vector<8x8x512xf32>,
    %c0_18 = arith.constant 0 : index
    %c0_19 = arith.constant 0 : index
    %c0_20 = arith.constant 0 : index
    %17 = vector.load %arg5[%c0_18, %c0_19, %c0_20] : memref<2x128x512xf32, #tpu.memory_space<vmem>>, vector<1x128x512xf32>
    %18 = vector.shape_cast %17 : vector<1x128x512xf32> to vector<128x512xf32>
    %c1_21 = arith.constant 1 : index
    %c0_22 = arith.constant 0 : index
    %c0_23 = arith.constant 0 : index
    %19 = vector.load %arg5[%c1_21, %c0_22, %c0_23] : memref<2x128x512xf32, #tpu.memory_space<vmem>>, vector<1x128x512xf32>
    %20 = vector.shape_cast %19 : vector<1x128x512xf32> to vector<128x512xf32>
    %c0_24 = arith.constant 0 : index
    %c0_25 = arith.constant 0 : index
    %21 = vector.load %arg9[%c0_24, %c0_25] : memref<8x256xf32, #tpu.memory_space<vmem>>, vector<8x128xf32>
    %c0_26 = arith.constant 0 : index
    %c0_27 = arith.constant 0 : index
    %22 = vector.load %arg8[%c0_26, %c0_27] : memref<8x256xf32, #tpu.memory_space<vmem>>, vector<8x128xf32>
    %c0_28 = arith.constant 0 : index
    %c128 = arith.constant 128 : index
    %23 = vector.load %arg9[%c0_28, %c128] : memref<8x256xf32, #tpu.memory_space<vmem>>, vector<8x128xf32>
    %c0_29 = arith.constant 0 : index
    %c128_30 = arith.constant 128 : index
    %24 = vector.load %arg8[%c0_29, %c128_30] : memref<8x256xf32, #tpu.memory_space<vmem>>, vector<8x128xf32>
    %c0_i32_31 = arith.constant 0 : i32
    %25 = arith.index_cast %c0_i32_31 : i32 to index
    %c0_32 = arith.constant 0 : index
    %c0_33 = arith.constant 0 : index
    %26 = vector.load %arg10[%25, %c0_32, %c0_33] : memref<8x8x512xf32, #tpu.memory_space<vmem>>, vector<1x8x512xf32>
    %27 = vector.shape_cast %26 : vector<1x8x512xf32> to vector<8x512xf32>
    %cst_34 = arith.constant dense<0.000000e+00> : vector<8x512xf32>
    %28 = tpu.matmul %21, %18, %cst_34 {dimension_numbers = #tpu.dot_dimension_numbers<[1], [0], [0], [1], [0, 0, 1, 1], [], []>} : vector<8x128xf32>, vector<128x512xf32>, vector<8x512xf32> -> vector<8x512xf32>
    %29 = arith.addf %27, %28 : vector<8x512xf32>
    %30 = vector.extract_strided_slice %29 {offsets = [0, 0], sizes = [8, 128], strides = [1, 1]} : vector<8x512xf32> to vector<8x128xf32>
    %31 = arith.negf %30 : vector<8x128xf32>
    %32 = math.exp %31 : vector<8x128xf32>
    %cst_35 = arith.constant 1.000000e+00 : f32
    %33 = vector.broadcast %cst_35 : f32 to vector<8x128xf32>
    %34 = arith.addf %33, %32 : vector<8x128xf32>
    %35 = arith.divf %33, %34 : vector<8x128xf32>
    %36 = vector.extract_strided_slice %29 {offsets = [0, 128], sizes = [8, 128], strides = [1, 1]} : vector<8x512xf32> to vector<8x128xf32>
    %37 = arith.negf %36 : vector<8x128xf32>
    %38 = math.exp %37 : vector<8x128xf32>
    %cst_36 = arith.constant 1.000000e+00 : f32
    %39 = vector.broadcast %cst_36 : f32 to vector<8x128xf32>
    %40 = arith.addf %39, %38 : vector<8x128xf32>
    %41 = arith.divf %39, %40 : vector<8x128xf32>
    %42 = vector.extract_strided_slice %29 {offsets = [0, 256], sizes = [8, 128], strides = [1, 1]} : vector<8x512xf32> to vector<8x128xf32>
    %43 = math.tanh %42 : vector<8x128xf32>
    %44 = vector.extract_strided_slice %29 {offsets = [0, 384], sizes = [8, 128], strides = [1, 1]} : vector<8x512xf32> to vector<8x128xf32>
    %45 = arith.negf %44 : vector<8x128xf32>
    %46 = math.exp %45 : vector<8x128xf32>
    %cst_37 = arith.constant 1.000000e+00 : f32
    %47 = vector.broadcast %cst_37 : f32 to vector<8x128xf32>
    %48 = arith.addf %47, %46 : vector<8x128xf32>
    %49 = arith.divf %47, %48 : vector<8x128xf32>
    %50 = arith.mulf %41, %22 : vector<8x128xf32>
    %51 = arith.mulf %35, %43 : vector<8x128xf32>
    %52 = arith.addf %50, %51 : vector<8x128xf32>
    %53 = math.tanh %52 : vector<8x128xf32>
    %54 = arith.mulf %49, %53 : vector<8x128xf32>
    %55 = arith.index_cast %c0_i32_31 : i32 to index
    %c0_38 = arith.constant 0 : index
    %c0_39 = arith.constant 0 : index
    %56 = vector.load %arg6[%55, %c0_38, %c0_39] : memref<8x8x128xf32, #tpu.memory_space<vmem>>, vector<1x8x128xf32>
    %57 = vector.shape_cast %56 : vector<1x8x128xf32> to vector<8x128xf32>
    %58 = vector.shape_cast %54 : vector<8x128xf32> to vector<1x8x128xf32>
    tpu.vector_store %arg6[%55, %c0_38, %c0_39], %58 {strides = array<i32>} : memref<8x8x128xf32, #tpu.memory_space<vmem>>, vector<1x8x128xf32>,
    %c7_i32 = arith.constant 7 : i32
    %59 = arith.subi %c7_i32, %c0_i32_31 : i32
    %60 = arith.index_cast %59 : i32 to index
    %c0_40 = arith.constant 0 : index
    %c0_41 = arith.constant 0 : index
    %61 = vector.load %arg11[%60, %c0_40, %c0_41] : memref<8x8x512xf32, #tpu.memory_space<vmem>>, vector<1x8x512xf32>
    %62 = vector.shape_cast %61 : vector<1x8x512xf32> to vector<8x512xf32>
    %cst_42 = arith.constant dense<0.000000e+00> : vector<8x512xf32>
    %63 = tpu.matmul %23, %20, %cst_42 {dimension_numbers = #tpu.dot_dimension_numbers<[1], [0], [0], [1], [0, 0, 1, 1], [], []>} : vector<8x128xf32>, vector<128x512xf32>, vector<8x512xf32> -> vector<8x512xf32>
    %64 = arith.addf %62, %63 : vector<8x512xf32>
    %65 = vector.extract_strided_slice %64 {offsets = [0, 0], sizes = [8, 128], strides = [1, 1]} : vector<8x512xf32> to vector<8x128xf32>
    %66 = arith.negf %65 : vector<8x128xf32>
    %67 = math.exp %66 : vector<8x128xf32>
    %cst_43 = arith.constant 1.000000e+00 : f32
    %68 = vector.broadcast %cst_43 : f32 to vector<8x128xf32>
    %69 = arith.addf %68, %67 : vector<8x128xf32>
    %70 = arith.divf %68, %69 : vector<8x128xf32>
    %71 = vector.extract_strided_slice %64 {offsets = [0, 128], sizes = [8, 128], strides = [1, 1]} : vector<8x512xf32> to vector<8x128xf32>
    %72 = arith.negf %71 : vector<8x128xf32>
    %73 = math.exp %72 : vector<8x128xf32>
    %cst_44 = arith.constant 1.000000e+00 : f32
    %74 = vector.broadcast %cst_44 : f32 to vector<8x128xf32>
    %75 = arith.addf %74, %73 : vector<8x128xf32>
    %76 = arith.divf %74, %75 : vector<8x128xf32>
    %77 = vector.extract_strided_slice %64 {offsets = [0, 256], sizes = [8, 128], strides = [1, 1]} : vector<8x512xf32> to vector<8x128xf32>
    %78 = math.tanh %77 : vector<8x128xf32>
    %79 = vector.extract_strided_slice %64 {offsets = [0, 384], sizes = [8, 128], strides = [1, 1]} : vector<8x512xf32> to vector<8x128xf32>
    %80 = arith.negf %79 : vector<8x128xf32>
    %81 = math.exp %80 : vector<8x128xf32>
    %cst_45 = arith.constant 1.000000e+00 : f32
    %82 = vector.broadcast %cst_45 : f32 to vector<8x128xf32>
    %83 = arith.addf %82, %81 : vector<8x128xf32>
    %84 = arith.divf %82, %83 : vector<8x128xf32>
    %85 = arith.mulf %76, %24 : vector<8x128xf32>
    %86 = arith.mulf %70, %78 : vector<8x128xf32>
    %87 = arith.addf %85, %86 : vector<8x128xf32>
    %88 = math.tanh %87 : vector<8x128xf32>
    %89 = arith.mulf %84, %88 : vector<8x128xf32>
    %90 = arith.index_cast %59 : i32 to index
    %c0_46 = arith.constant 0 : index
    %c0_47 = arith.constant 0 : index
    %91 = vector.load %arg7[%90, %c0_46, %c0_47] : memref<8x8x128xf32, #tpu.memory_space<vmem>>, vector<1x8x128xf32>
    %92 = vector.shape_cast %91 : vector<1x8x128xf32> to vector<8x128xf32>
    %93 = vector.shape_cast %89 : vector<8x128xf32> to vector<1x8x128xf32>
    tpu.vector_store %arg7[%90, %c0_46, %c0_47], %93 {strides = array<i32>} : memref<8x8x128xf32, #tpu.memory_space<vmem>>, vector<1x8x128xf32>,
    %c1_i32 = arith.constant 1 : i32
    %94 = arith.index_cast %c1_i32 : i32 to index
    %c0_48 = arith.constant 0 : index
    %c0_49 = arith.constant 0 : index
    %95 = vector.load %arg10[%94, %c0_48, %c0_49] : memref<8x8x512xf32, #tpu.memory_space<vmem>>, vector<1x8x512xf32>
    %96 = vector.shape_cast %95 : vector<1x8x512xf32> to vector<8x512xf32>
    %cst_50 = arith.constant dense<0.000000e+00> : vector<8x512xf32>
    %97 = tpu.matmul %54, %18, %cst_50 {dimension_numbers = #tpu.dot_dimension_numbers<[1], [0], [0], [1], [0, 0, 1, 1], [], []>} : vector<8x128xf32>, vector<128x512xf32>, vector<8x512xf32> -> vector<8x512xf32>
    %98 = arith.addf %96, %97 : vector<8x512xf32>
    %99 = vector.extract_strided_slice %98 {offsets = [0, 0], sizes = [8, 128], strides = [1, 1]} : vector<8x512xf32> to vector<8x128xf32>
    %100 = arith.negf %99 : vector<8x128xf32>
    %101 = math.exp %100 : vector<8x128xf32>
    %cst_51 = arith.constant 1.000000e+00 : f32
    %102 = vector.broadcast %cst_51 : f32 to vector<8x128xf32>
    %103 = arith.addf %102, %101 : vector<8x128xf32>
    %104 = arith.divf %102, %103 : vector<8x128xf32>
    %105 = vector.extract_strided_slice %98 {offsets = [0, 128], sizes = [8, 128], strides = [1, 1]} : vector<8x512xf32> to vector<8x128xf32>
    %106 = arith.negf %105 : vector<8x128xf32>
    %107 = math.exp %106 : vector<8x128xf32>
    %cst_52 = arith.constant 1.000000e+00 : f32
    %108 = vector.broadcast %cst_52 : f32 to vector<8x128xf32>
    %109 = arith.addf %108, %107 : vector<8x128xf32>
    %110 = arith.divf %108, %109 : vector<8x128xf32>
    %111 = vector.extract_strided_slice %98 {offsets = [0, 256], sizes = [8, 128], strides = [1, 1]} : vector<8x512xf32> to vector<8x128xf32>
    %112 = math.tanh %111 : vector<8x128xf32>
    %113 = vector.extract_strided_slice %98 {offsets = [0, 384], sizes = [8, 128], strides = [1, 1]} : vector<8x512xf32> to vector<8x128xf32>
    %114 = arith.negf %113 : vector<8x128xf32>
    %115 = math.exp %114 : vector<8x128xf32>
    %cst_53 = arith.constant 1.000000e+00 : f32
    %116 = vector.broadcast %cst_53 : f32 to vector<8x128xf32>
    %117 = arith.addf %116, %115 : vector<8x128xf32>
    %118 = arith.divf %116, %117 : vector<8x128xf32>
    %119 = arith.mulf %110, %52 : vector<8x128xf32>
    %120 = arith.mulf %104, %112 : vector<8x128xf32>
    %121 = arith.addf %119, %120 : vector<8x128xf32>
    %122 = math.tanh %121 : vector<8x128xf32>
    %123 = arith.mulf %118, %122 : vector<8x128xf32>
    %124 = arith.index_cast %c1_i32 : i32 to index
    %c0_54 = arith.constant 0 : index
    %c0_55 = arith.constant 0 : index
    %125 = vector.load %arg6[%124, %c0_54, %c0_55] : memref<8x8x128xf32, #tpu.memory_space<vmem>>, vector<1x8x128xf32>
    %126 = vector.shape_cast %125 : vector<1x8x128xf32> to vector<8x128xf32>
    %127 = vector.shape_cast %123 : vector<8x128xf32> to vector<1x8x128xf32>
    tpu.vector_store %arg6[%124, %c0_54, %c0_55], %127 {strides = array<i32>} : memref<8x8x128xf32, #tpu.memory_space<vmem>>, vector<1x8x128xf32>,
    %c7_i32_56 = arith.constant 7 : i32
    %128 = arith.subi %c7_i32_56, %c1_i32 : i32
    %129 = arith.index_cast %128 : i32 to index
    %c0_57 = arith.constant 0 : index
    %c0_58 = arith.constant 0 : index
    %130 = vector.load %arg11[%129, %c0_57, %c0_58] : memref<8x8x512xf32, #tpu.memory_space<vmem>>, vector<1x8x512xf32>
    %131 = vector.shape_cast %130 : vector<1x8x512xf32> to vector<8x512xf32>
    %cst_59 = arith.constant dense<0.000000e+00> : vector<8x512xf32>
    %132 = tpu.matmul %89, %20, %cst_59 {dimension_numbers = #tpu.dot_dimension_numbers<[1], [0], [0], [1], [0, 0, 1, 1], [], []>} : vector<8x128xf32>, vector<128x512xf32>, vector<8x512xf32> -> vector<8x512xf32>
    %133 = arith.addf %131, %132 : vector<8x512xf32>
    %134 = vector.extract_strided_slice %133 {offsets = [0, 0], sizes = [8, 128], strides = [1, 1]} : vector<8x512xf32> to vector<8x128xf32>
    %135 = arith.negf %134 : vector<8x128xf32>
    %136 = math.exp %135 : vector<8x128xf32>
    %cst_60 = arith.constant 1.000000e+00 : f32
    %137 = vector.broadcast %cst_60 : f32 to vector<8x128xf32>
    %138 = arith.addf %137, %136 : vector<8x128xf32>
    %139 = arith.divf %137, %138 : vector<8x128xf32>
    %140 = vector.extract_strided_slice %133 {offsets = [0, 128], sizes = [8, 128], strides = [1, 1]} : vector<8x512xf32> to vector<8x128xf32>
    %141 = arith.negf %140 : vector<8x128xf32>
    %142 = math.exp %141 : vector<8x128xf32>
    %cst_61 = arith.constant 1.000000e+00 : f32
    %143 = vector.broadcast %cst_61 : f32 to vector<8x128xf32>
    %144 = arith.addf %143, %142 : vector<8x128xf32>
    %145 = arith.divf %143, %144 : vector<8x128xf32>
    %146 = vector.extract_strided_slice %133 {offsets = [0, 256], sizes = [8, 128], strides = [1, 1]} : vector<8x512xf32> to vector<8x128xf32>
    %147 = math.tanh %146 : vector<8x128xf32>
    %148 = vector.extract_strided_slice %133 {offsets = [0, 384], sizes = [8, 128], strides = [1, 1]} : vector<8x512xf32> to vector<8x128xf32>
    %149 = arith.negf %148 : vector<8x128xf32>
    %150 = math.exp %149 : vector<8x128xf32>
    %cst_62 = arith.constant 1.000000e+00 : f32
    %151 = vector.broadcast %cst_62 : f32 to vector<8x128xf32>
    %152 = arith.addf %151, %150 : vector<8x128xf32>
    %153 = arith.divf %151, %152 : vector<8x128xf32>
    %154 = arith.mulf %145, %87 : vector<8x128xf32>
    %155 = arith.mulf %139, %147 : vector<8x128xf32>
    %156 = arith.addf %154, %155 : vector<8x128xf32>
    %157 = math.tanh %156 : vector<8x128xf32>
    %158 = arith.mulf %153, %157 : vector<8x128xf32>
    %159 = arith.index_cast %128 : i32 to index
    %c0_63 = arith.constant 0 : index
    %c0_64 = arith.constant 0 : index
    %160 = vector.load %arg7[%159, %c0_63, %c0_64] : memref<8x8x128xf32, #tpu.memory_space<vmem>>, vector<1x8x128xf32>
    %161 = vector.shape_cast %160 : vector<1x8x128xf32> to vector<8x128xf32>
    %162 = vector.shape_cast %158 : vector<8x128xf32> to vector<1x8x128xf32>
    tpu.vector_store %arg7[%159, %c0_63, %c0_64], %162 {strides = array<i32>} : memref<8x8x128xf32, #tpu.memory_space<vmem>>, vector<1x8x128xf32>,
    %c2_i32 = arith.constant 2 : i32
    %163 = arith.index_cast %c2_i32 : i32 to index
    %c0_65 = arith.constant 0 : index
    %c0_66 = arith.constant 0 : index
    %164 = vector.load %arg10[%163, %c0_65, %c0_66] : memref<8x8x512xf32, #tpu.memory_space<vmem>>, vector<1x8x512xf32>
    %165 = vector.shape_cast %164 : vector<1x8x512xf32> to vector<8x512xf32>
    %cst_67 = arith.constant dense<0.000000e+00> : vector<8x512xf32>
    %166 = tpu.matmul %123, %18, %cst_67 {dimension_numbers = #tpu.dot_dimension_numbers<[1], [0], [0], [1], [0, 0, 1, 1], [], []>} : vector<8x128xf32>, vector<128x512xf32>, vector<8x512xf32> -> vector<8x512xf32>
    %167 = arith.addf %165, %166 : vector<8x512xf32>
    %168 = vector.extract_strided_slice %167 {offsets = [0, 0], sizes = [8, 128], strides = [1, 1]} : vector<8x512xf32> to vector<8x128xf32>
    %169 = arith.negf %168 : vector<8x128xf32>
    %170 = math.exp %169 : vector<8x128xf32>
    %cst_68 = arith.constant 1.000000e+00 : f32
    %171 = vector.broadcast %cst_68 : f32 to vector<8x128xf32>
    %172 = arith.addf %171, %170 : vector<8x128xf32>
    %173 = arith.divf %171, %172 : vector<8x128xf32>
    %174 = vector.extract_strided_slice %167 {offsets = [0, 128], sizes = [8, 128], strides = [1, 1]} : vector<8x512xf32> to vector<8x128xf32>
    %175 = arith.negf %174 : vector<8x128xf32>
    %176 = math.exp %175 : vector<8x128xf32>
    %cst_69 = arith.constant 1.000000e+00 : f32
    %177 = vector.broadcast %cst_69 : f32 to vector<8x128xf32>
    %178 = arith.addf %177, %176 : vector<8x128xf32>
    %179 = arith.divf %177, %178 : vector<8x128xf32>
    %180 = vector.extract_strided_slice %167 {offsets = [0, 256], sizes = [8, 128], strides = [1, 1]} : vector<8x512xf32> to vector<8x128xf32>
    %181 = math.tanh %180 : vector<8x128xf32>
    %182 = vector.extract_strided_slice %167 {offsets = [0, 384], sizes = [8, 128], strides = [1, 1]} : vector<8x512xf32> to vector<8x128xf32>
    %183 = arith.negf %182 : vector<8x128xf32>
    %184 = math.exp %183 : vector<8x128xf32>
    %cst_70 = arith.constant 1.000000e+00 : f32
    %185 = vector.broadcast %cst_70 : f32 to vector<8x128xf32>
    %186 = arith.addf %185, %184 : vector<8x128xf32>
    %187 = arith.divf %185, %186 : vector<8x128xf32>
    %188 = arith.mulf %179, %121 : vector<8x128xf32>
    %189 = arith.mulf %173, %181 : vector<8x128xf32>
    %190 = arith.addf %188, %189 : vector<8x128xf32>
    %191 = math.tanh %190 : vector<8x128xf32>
    %192 = arith.mulf %187, %191 : vector<8x128xf32>
    %193 = arith.index_cast %c2_i32 : i32 to index
    %c0_71 = arith.constant 0 : index
    %c0_72 = arith.constant 0 : index
    %194 = vector.load %arg6[%193, %c0_71, %c0_72] : memref<8x8x128xf32, #tpu.memory_space<vmem>>, vector<1x8x128xf32>
    %195 = vector.shape_cast %194 : vector<1x8x128xf32> to vector<8x128xf32>
    %196 = vector.shape_cast %192 : vector<8x128xf32> to vector<1x8x128xf32>
    tpu.vector_store %arg6[%193, %c0_71, %c0_72], %196 {strides = array<i32>} : memref<8x8x128xf32, #tpu.memory_space<vmem>>, vector<1x8x128xf32>,
    %c7_i32_73 = arith.constant 7 : i32
    %197 = arith.subi %c7_i32_73, %c2_i32 : i32
    %198 = arith.index_cast %197 : i32 to index
    %c0_74 = arith.constant 0 : index
    %c0_75 = arith.constant 0 : index
    %199 = vector.load %arg11[%198, %c0_74, %c0_75] : memref<8x8x512xf32, #tpu.memory_space<vmem>>, vector<1x8x512xf32>
    %200 = vector.shape_cast %199 : vector<1x8x512xf32> to vector<8x512xf32>
    %cst_76 = arith.constant dense<0.000000e+00> : vector<8x512xf32>
    %201 = tpu.matmul %158, %20, %cst_76 {dimension_numbers = #tpu.dot_dimension_numbers<[1], [0], [0], [1], [0, 0, 1, 1], [], []>} : vector<8x128xf32>, vector<128x512xf32>, vector<8x512xf32> -> vector<8x512xf32>
    %202 = arith.addf %200, %201 : vector<8x512xf32>
    %203 = vector.extract_strided_slice %202 {offsets = [0, 0], sizes = [8, 128], strides = [1, 1]} : vector<8x512xf32> to vector<8x128xf32>
    %204 = arith.negf %203 : vector<8x128xf32>
    %205 = math.exp %204 : vector<8x128xf32>
    %cst_77 = arith.constant 1.000000e+00 : f32
    %206 = vector.broadcast %cst_77 : f32 to vector<8x128xf32>
    %207 = arith.addf %206, %205 : vector<8x128xf32>
    %208 = arith.divf %206, %207 : vector<8x128xf32>
    %209 = vector.extract_strided_slice %202 {offsets = [0, 128], sizes = [8, 128], strides = [1, 1]} : vector<8x512xf32> to vector<8x128xf32>
    %210 = arith.negf %209 : vector<8x128xf32>
    %211 = math.exp %210 : vector<8x128xf32>
    %cst_78 = arith.constant 1.000000e+00 : f32
    %212 = vector.broadcast %cst_78 : f32 to vector<8x128xf32>
    %213 = arith.addf %212, %211 : vector<8x128xf32>
    %214 = arith.divf %212, %213 : vector<8x128xf32>
    %215 = vector.extract_strided_slice %202 {offsets = [0, 256], sizes = [8, 128], strides = [1, 1]} : vector<8x512xf32> to vector<8x128xf32>
    %216 = math.tanh %215 : vector<8x128xf32>
    %217 = vector.extract_strided_slice %202 {offsets = [0, 384], sizes = [8, 128], strides = [1, 1]} : vector<8x512xf32> to vector<8x128xf32>
    %218 = arith.negf %217 : vector<8x128xf32>
    %219 = math.exp %218 : vector<8x128xf32>
    %cst_79 = arith.constant 1.000000e+00 : f32
    %220 = vector.broadcast %cst_79 : f32 to vector<8x128xf32>
    %221 = arith.addf %220, %219 : vector<8x128xf32>
    %222 = arith.divf %220, %221 : vector<8x128xf32>
    %223 = arith.mulf %214, %156 : vector<8x128xf32>
    %224 = arith.mulf %208, %216 : vector<8x128xf32>
    %225 = arith.addf %223, %224 : vector<8x128xf32>
    %226 = math.tanh %225 : vector<8x128xf32>
    %227 = arith.mulf %222, %226 : vector<8x128xf32>
    %228 = arith.index_cast %197 : i32 to index
    %c0_80 = arith.constant 0 : index
    %c0_81 = arith.constant 0 : index
    %229 = vector.load %arg7[%228, %c0_80, %c0_81] : memref<8x8x128xf32, #tpu.memory_space<vmem>>, vector<1x8x128xf32>
    %230 = vector.shape_cast %229 : vector<1x8x128xf32> to vector<8x128xf32>
    %231 = vector.shape_cast %227 : vector<8x128xf32> to vector<1x8x128xf32>
    tpu.vector_store %arg7[%228, %c0_80, %c0_81], %231 {strides = array<i32>} : memref<8x8x128xf32, #tpu.memory_space<vmem>>, vector<1x8x128xf32>,
    %c3_i32 = arith.constant 3 : i32
    %232 = arith.index_cast %c3_i32 : i32 to index
    %c0_82 = arith.constant 0 : index
    %c0_83 = arith.constant 0 : index
    %233 = vector.load %arg10[%232, %c0_82, %c0_83] : memref<8x8x512xf32, #tpu.memory_space<vmem>>, vector<1x8x512xf32>
    %234 = vector.shape_cast %233 : vector<1x8x512xf32> to vector<8x512xf32>
    %cst_84 = arith.constant dense<0.000000e+00> : vector<8x512xf32>
    %235 = tpu.matmul %192, %18, %cst_84 {dimension_numbers = #tpu.dot_dimension_numbers<[1], [0], [0], [1], [0, 0, 1, 1], [], []>} : vector<8x128xf32>, vector<128x512xf32>, vector<8x512xf32> -> vector<8x512xf32>
    %236 = arith.addf %234, %235 : vector<8x512xf32>
    %237 = vector.extract_strided_slice %236 {offsets = [0, 0], sizes = [8, 128], strides = [1, 1]} : vector<8x512xf32> to vector<8x128xf32>
    %238 = arith.negf %237 : vector<8x128xf32>
    %239 = math.exp %238 : vector<8x128xf32>
    %cst_85 = arith.constant 1.000000e+00 : f32
    %240 = vector.broadcast %cst_85 : f32 to vector<8x128xf32>
    %241 = arith.addf %240, %239 : vector<8x128xf32>
    %242 = arith.divf %240, %241 : vector<8x128xf32>
    %243 = vector.extract_strided_slice %236 {offsets = [0, 128], sizes = [8, 128], strides = [1, 1]} : vector<8x512xf32> to vector<8x128xf32>
    %244 = arith.negf %243 : vector<8x128xf32>
    %245 = math.exp %244 : vector<8x128xf32>
    %cst_86 = arith.constant 1.000000e+00 : f32
    %246 = vector.broadcast %cst_86 : f32 to vector<8x128xf32>
    %247 = arith.addf %246, %245 : vector<8x128xf32>
    %248 = arith.divf %246, %247 : vector<8x128xf32>
    %249 = vector.extract_strided_slice %236 {offsets = [0, 256], sizes = [8, 128], strides = [1, 1]} : vector<8x512xf32> to vector<8x128xf32>
    %250 = math.tanh %249 : vector<8x128xf32>
    %251 = vector.extract_strided_slice %236 {offsets = [0, 384], sizes = [8, 128], strides = [1, 1]} : vector<8x512xf32> to vector<8x128xf32>
    %252 = arith.negf %251 : vector<8x128xf32>
    %253 = math.exp %252 : vector<8x128xf32>
    %cst_87 = arith.constant 1.000000e+00 : f32
    %254 = vector.broadcast %cst_87 : f32 to vector<8x128xf32>
    %255 = arith.addf %254, %253 : vector<8x128xf32>
    %256 = arith.divf %254, %255 : vector<8x128xf32>
    %257 = arith.mulf %248, %190 : vector<8x128xf32>
    %258 = arith.mulf %242, %250 : vector<8x128xf32>
    %259 = arith.addf %257, %258 : vector<8x128xf32>
    %260 = math.tanh %259 : vector<8x128xf32>
    %261 = arith.mulf %256, %260 : vector<8x128xf32>
    %262 = arith.index_cast %c3_i32 : i32 to index
    %c0_88 = arith.constant 0 : index
    %c0_89 = arith.constant 0 : index
    %263 = vector.load %arg6[%262, %c0_88, %c0_89] : memref<8x8x128xf32, #tpu.memory_space<vmem>>, vector<1x8x128xf32>
    %264 = vector.shape_cast %263 : vector<1x8x128xf32> to vector<8x128xf32>
    %265 = vector.shape_cast %261 : vector<8x128xf32> to vector<1x8x128xf32>
    tpu.vector_store %arg6[%262, %c0_88, %c0_89], %265 {strides = array<i32>} : memref<8x8x128xf32, #tpu.memory_space<vmem>>, vector<1x8x128xf32>,
    %c7_i32_90 = arith.constant 7 : i32
    %266 = arith.subi %c7_i32_90, %c3_i32 : i32
    %267 = arith.index_cast %266 : i32 to index
    %c0_91 = arith.constant 0 : index
    %c0_92 = arith.constant 0 : index
    %268 = vector.load %arg11[%267, %c0_91, %c0_92] : memref<8x8x512xf32, #tpu.memory_space<vmem>>, vector<1x8x512xf32>
    %269 = vector.shape_cast %268 : vector<1x8x512xf32> to vector<8x512xf32>
    %cst_93 = arith.constant dense<0.000000e+00> : vector<8x512xf32>
    %270 = tpu.matmul %227, %20, %cst_93 {dimension_numbers = #tpu.dot_dimension_numbers<[1], [0], [0], [1], [0, 0, 1, 1], [], []>} : vector<8x128xf32>, vector<128x512xf32>, vector<8x512xf32> -> vector<8x512xf32>
    %271 = arith.addf %269, %270 : vector<8x512xf32>
    %272 = vector.extract_strided_slice %271 {offsets = [0, 0], sizes = [8, 128], strides = [1, 1]} : vector<8x512xf32> to vector<8x128xf32>
    %273 = arith.negf %272 : vector<8x128xf32>
    %274 = math.exp %273 : vector<8x128xf32>
    %cst_94 = arith.constant 1.000000e+00 : f32
    %275 = vector.broadcast %cst_94 : f32 to vector<8x128xf32>
    %276 = arith.addf %275, %274 : vector<8x128xf32>
    %277 = arith.divf %275, %276 : vector<8x128xf32>
    %278 = vector.extract_strided_slice %271 {offsets = [0, 128], sizes = [8, 128], strides = [1, 1]} : vector<8x512xf32> to vector<8x128xf32>
    %279 = arith.negf %278 : vector<8x128xf32>
    %280 = math.exp %279 : vector<8x128xf32>
    %cst_95 = arith.constant 1.000000e+00 : f32
    %281 = vector.broadcast %cst_95 : f32 to vector<8x128xf32>
    %282 = arith.addf %281, %280 : vector<8x128xf32>
    %283 = arith.divf %281, %282 : vector<8x128xf32>
    %284 = vector.extract_strided_slice %271 {offsets = [0, 256], sizes = [8, 128], strides = [1, 1]} : vector<8x512xf32> to vector<8x128xf32>
    %285 = math.tanh %284 : vector<8x128xf32>
    %286 = vector.extract_strided_slice %271 {offsets = [0, 384], sizes = [8, 128], strides = [1, 1]} : vector<8x512xf32> to vector<8x128xf32>
    %287 = arith.negf %286 : vector<8x128xf32>
    %288 = math.exp %287 : vector<8x128xf32>
    %cst_96 = arith.constant 1.000000e+00 : f32
    %289 = vector.broadcast %cst_96 : f32 to vector<8x128xf32>
    %290 = arith.addf %289, %288 : vector<8x128xf32>
    %291 = arith.divf %289, %290 : vector<8x128xf32>
    %292 = arith.mulf %283, %225 : vector<8x128xf32>
    %293 = arith.mulf %277, %285 : vector<8x128xf32>
    %294 = arith.addf %292, %293 : vector<8x128xf32>
    %295 = math.tanh %294 : vector<8x128xf32>
    %296 = arith.mulf %291, %295 : vector<8x128xf32>
    %297 = arith.index_cast %266 : i32 to index
    %c0_97 = arith.constant 0 : index
    %c0_98 = arith.constant 0 : index
    %298 = vector.load %arg7[%297, %c0_97, %c0_98] : memref<8x8x128xf32, #tpu.memory_space<vmem>>, vector<1x8x128xf32>
    %299 = vector.shape_cast %298 : vector<1x8x128xf32> to vector<8x128xf32>
    %300 = vector.shape_cast %296 : vector<8x128xf32> to vector<1x8x128xf32>
    tpu.vector_store %arg7[%297, %c0_97, %c0_98], %300 {strides = array<i32>} : memref<8x8x128xf32, #tpu.memory_space<vmem>>, vector<1x8x128xf32>,
    %c4_i32 = arith.constant 4 : i32
    %301 = arith.index_cast %c4_i32 : i32 to index
    %c0_99 = arith.constant 0 : index
    %c0_100 = arith.constant 0 : index
    %302 = vector.load %arg10[%301, %c0_99, %c0_100] : memref<8x8x512xf32, #tpu.memory_space<vmem>>, vector<1x8x512xf32>
    %303 = vector.shape_cast %302 : vector<1x8x512xf32> to vector<8x512xf32>
    %cst_101 = arith.constant dense<0.000000e+00> : vector<8x512xf32>
    %304 = tpu.matmul %261, %18, %cst_101 {dimension_numbers = #tpu.dot_dimension_numbers<[1], [0], [0], [1], [0, 0, 1, 1], [], []>} : vector<8x128xf32>, vector<128x512xf32>, vector<8x512xf32> -> vector<8x512xf32>
    %305 = arith.addf %303, %304 : vector<8x512xf32>
    %306 = vector.extract_strided_slice %305 {offsets = [0, 0], sizes = [8, 128], strides = [1, 1]} : vector<8x512xf32> to vector<8x128xf32>
    %307 = arith.negf %306 : vector<8x128xf32>
    %308 = math.exp %307 : vector<8x128xf32>
    %cst_102 = arith.constant 1.000000e+00 : f32
    %309 = vector.broadcast %cst_102 : f32 to vector<8x128xf32>
    %310 = arith.addf %309, %308 : vector<8x128xf32>
    %311 = arith.divf %309, %310 : vector<8x128xf32>
    %312 = vector.extract_strided_slice %305 {offsets = [0, 128], sizes = [8, 128], strides = [1, 1]} : vector<8x512xf32> to vector<8x128xf32>
    %313 = arith.negf %312 : vector<8x128xf32>
    %314 = math.exp %313 : vector<8x128xf32>
    %cst_103 = arith.constant 1.000000e+00 : f32
    %315 = vector.broadcast %cst_103 : f32 to vector<8x128xf32>
    %316 = arith.addf %315, %314 : vector<8x128xf32>
    %317 = arith.divf %315, %316 : vector<8x128xf32>
    %318 = vector.extract_strided_slice %305 {offsets = [0, 256], sizes = [8, 128], strides = [1, 1]} : vector<8x512xf32> to vector<8x128xf32>
    %319 = math.tanh %318 : vector<8x128xf32>
    %320 = vector.extract_strided_slice %305 {offsets = [0, 384], sizes = [8, 128], strides = [1, 1]} : vector<8x512xf32> to vector<8x128xf32>
    %321 = arith.negf %320 : vector<8x128xf32>
    %322 = math.exp %321 : vector<8x128xf32>
    %cst_104 = arith.constant 1.000000e+00 : f32
    %323 = vector.broadcast %cst_104 : f32 to vector<8x128xf32>
    %324 = arith.addf %323, %322 : vector<8x128xf32>
    %325 = arith.divf %323, %324 : vector<8x128xf32>
    %326 = arith.mulf %317, %259 : vector<8x128xf32>
    %327 = arith.mulf %311, %319 : vector<8x128xf32>
    %328 = arith.addf %326, %327 : vector<8x128xf32>
    %329 = math.tanh %328 : vector<8x128xf32>
    %330 = arith.mulf %325, %329 : vector<8x128xf32>
    %331 = arith.index_cast %c4_i32 : i32 to index
    %c0_105 = arith.constant 0 : index
    %c0_106 = arith.constant 0 : index
    %332 = vector.load %arg6[%331, %c0_105, %c0_106] : memref<8x8x128xf32, #tpu.memory_space<vmem>>, vector<1x8x128xf32>
    %333 = vector.shape_cast %332 : vector<1x8x128xf32> to vector<8x128xf32>
    %334 = vector.shape_cast %330 : vector<8x128xf32> to vector<1x8x128xf32>
    tpu.vector_store %arg6[%331, %c0_105, %c0_106], %334 {strides = array<i32>} : memref<8x8x128xf32, #tpu.memory_space<vmem>>, vector<1x8x128xf32>,
    %c7_i32_107 = arith.constant 7 : i32
    %335 = arith.subi %c7_i32_107, %c4_i32 : i32
    %336 = arith.index_cast %335 : i32 to index
    %c0_108 = arith.constant 0 : index
    %c0_109 = arith.constant 0 : index
    %337 = vector.load %arg11[%336, %c0_108, %c0_109] : memref<8x8x512xf32, #tpu.memory_space<vmem>>, vector<1x8x512xf32>
    %338 = vector.shape_cast %337 : vector<1x8x512xf32> to vector<8x512xf32>
    %cst_110 = arith.constant dense<0.000000e+00> : vector<8x512xf32>
    %339 = tpu.matmul %296, %20, %cst_110 {dimension_numbers = #tpu.dot_dimension_numbers<[1], [0], [0], [1], [0, 0, 1, 1], [], []>} : vector<8x128xf32>, vector<128x512xf32>, vector<8x512xf32> -> vector<8x512xf32>
    %340 = arith.addf %338, %339 : vector<8x512xf32>
    %341 = vector.extract_strided_slice %340 {offsets = [0, 0], sizes = [8, 128], strides = [1, 1]} : vector<8x512xf32> to vector<8x128xf32>
    %342 = arith.negf %341 : vector<8x128xf32>
    %343 = math.exp %342 : vector<8x128xf32>
    %cst_111 = arith.constant 1.000000e+00 : f32
    %344 = vector.broadcast %cst_111 : f32 to vector<8x128xf32>
    %345 = arith.addf %344, %343 : vector<8x128xf32>
    %346 = arith.divf %344, %345 : vector<8x128xf32>
    %347 = vector.extract_strided_slice %340 {offsets = [0, 128], sizes = [8, 128], strides = [1, 1]} : vector<8x512xf32> to vector<8x128xf32>
    %348 = arith.negf %347 : vector<8x128xf32>
    %349 = math.exp %348 : vector<8x128xf32>
    %cst_112 = arith.constant 1.000000e+00 : f32
    %350 = vector.broadcast %cst_112 : f32 to vector<8x128xf32>
    %351 = arith.addf %350, %349 : vector<8x128xf32>
    %352 = arith.divf %350, %351 : vector<8x128xf32>
    %353 = vector.extract_strided_slice %340 {offsets = [0, 256], sizes = [8, 128], strides = [1, 1]} : vector<8x512xf32> to vector<8x128xf32>
    %354 = math.tanh %353 : vector<8x128xf32>
    %355 = vector.extract_strided_slice %340 {offsets = [0, 384], sizes = [8, 128], strides = [1, 1]} : vector<8x512xf32> to vector<8x128xf32>
    %356 = arith.negf %355 : vector<8x128xf32>
    %357 = math.exp %356 : vector<8x128xf32>
    %cst_113 = arith.constant 1.000000e+00 : f32
    %358 = vector.broadcast %cst_113 : f32 to vector<8x128xf32>
    %359 = arith.addf %358, %357 : vector<8x128xf32>
    %360 = arith.divf %358, %359 : vector<8x128xf32>
    %361 = arith.mulf %352, %294 : vector<8x128xf32>
    %362 = arith.mulf %346, %354 : vector<8x128xf32>
    %363 = arith.addf %361, %362 : vector<8x128xf32>
    %364 = math.tanh %363 : vector<8x128xf32>
    %365 = arith.mulf %360, %364 : vector<8x128xf32>
    %366 = arith.index_cast %335 : i32 to index
    %c0_114 = arith.constant 0 : index
    %c0_115 = arith.constant 0 : index
    %367 = vector.load %arg7[%366, %c0_114, %c0_115] : memref<8x8x128xf32, #tpu.memory_space<vmem>>, vector<1x8x128xf32>
    %368 = vector.shape_cast %367 : vector<1x8x128xf32> to vector<8x128xf32>
    %369 = vector.shape_cast %365 : vector<8x128xf32> to vector<1x8x128xf32>
    tpu.vector_store %arg7[%366, %c0_114, %c0_115], %369 {strides = array<i32>} : memref<8x8x128xf32, #tpu.memory_space<vmem>>, vector<1x8x128xf32>,
    %c5_i32 = arith.constant 5 : i32
    %370 = arith.index_cast %c5_i32 : i32 to index
    %c0_116 = arith.constant 0 : index
    %c0_117 = arith.constant 0 : index
    %371 = vector.load %arg10[%370, %c0_116, %c0_117] : memref<8x8x512xf32, #tpu.memory_space<vmem>>, vector<1x8x512xf32>
    %372 = vector.shape_cast %371 : vector<1x8x512xf32> to vector<8x512xf32>
    %cst_118 = arith.constant dense<0.000000e+00> : vector<8x512xf32>
    %373 = tpu.matmul %330, %18, %cst_118 {dimension_numbers = #tpu.dot_dimension_numbers<[1], [0], [0], [1], [0, 0, 1, 1], [], []>} : vector<8x128xf32>, vector<128x512xf32>, vector<8x512xf32> -> vector<8x512xf32>
    %374 = arith.addf %372, %373 : vector<8x512xf32>
    %375 = vector.extract_strided_slice %374 {offsets = [0, 0], sizes = [8, 128], strides = [1, 1]} : vector<8x512xf32> to vector<8x128xf32>
    %376 = arith.negf %375 : vector<8x128xf32>
    %377 = math.exp %376 : vector<8x128xf32>
    %cst_119 = arith.constant 1.000000e+00 : f32
    %378 = vector.broadcast %cst_119 : f32 to vector<8x128xf32>
    %379 = arith.addf %378, %377 : vector<8x128xf32>
    %380 = arith.divf %378, %379 : vector<8x128xf32>
    %381 = vector.extract_strided_slice %374 {offsets = [0, 128], sizes = [8, 128], strides = [1, 1]} : vector<8x512xf32> to vector<8x128xf32>
    %382 = arith.negf %381 : vector<8x128xf32>
    %383 = math.exp %382 : vector<8x128xf32>
    %cst_120 = arith.constant 1.000000e+00 : f32
    %384 = vector.broadcast %cst_120 : f32 to vector<8x128xf32>
    %385 = arith.addf %384, %383 : vector<8x128xf32>
    %386 = arith.divf %384, %385 : vector<8x128xf32>
    %387 = vector.extract_strided_slice %374 {offsets = [0, 256], sizes = [8, 128], strides = [1, 1]} : vector<8x512xf32> to vector<8x128xf32>
    %388 = math.tanh %387 : vector<8x128xf32>
    %389 = vector.extract_strided_slice %374 {offsets = [0, 384], sizes = [8, 128], strides = [1, 1]} : vector<8x512xf32> to vector<8x128xf32>
    %390 = arith.negf %389 : vector<8x128xf32>
    %391 = math.exp %390 : vector<8x128xf32>
    %cst_121 = arith.constant 1.000000e+00 : f32
    %392 = vector.broadcast %cst_121 : f32 to vector<8x128xf32>
    %393 = arith.addf %392, %391 : vector<8x128xf32>
    %394 = arith.divf %392, %393 : vector<8x128xf32>
    %395 = arith.mulf %386, %328 : vector<8x128xf32>
    %396 = arith.mulf %380, %388 : vector<8x128xf32>
    %397 = arith.addf %395, %396 : vector<8x128xf32>
    %398 = math.tanh %397 : vector<8x128xf32>
    %399 = arith.mulf %394, %398 : vector<8x128xf32>
    %400 = arith.index_cast %c5_i32 : i32 to index
    %c0_122 = arith.constant 0 : index
    %c0_123 = arith.constant 0 : index
    %401 = vector.load %arg6[%400, %c0_122, %c0_123] : memref<8x8x128xf32, #tpu.memory_space<vmem>>, vector<1x8x128xf32>
    %402 = vector.shape_cast %401 : vector<1x8x128xf32> to vector<8x128xf32>
    %403 = vector.shape_cast %399 : vector<8x128xf32> to vector<1x8x128xf32>
    tpu.vector_store %arg6[%400, %c0_122, %c0_123], %403 {strides = array<i32>} : memref<8x8x128xf32, #tpu.memory_space<vmem>>, vector<1x8x128xf32>,
    %c7_i32_124 = arith.constant 7 : i32
    %404 = arith.subi %c7_i32_124, %c5_i32 : i32
    %405 = arith.index_cast %404 : i32 to index
    %c0_125 = arith.constant 0 : index
    %c0_126 = arith.constant 0 : index
    %406 = vector.load %arg11[%405, %c0_125, %c0_126] : memref<8x8x512xf32, #tpu.memory_space<vmem>>, vector<1x8x512xf32>
    %407 = vector.shape_cast %406 : vector<1x8x512xf32> to vector<8x512xf32>
    %cst_127 = arith.constant dense<0.000000e+00> : vector<8x512xf32>
    %408 = tpu.matmul %365, %20, %cst_127 {dimension_numbers = #tpu.dot_dimension_numbers<[1], [0], [0], [1], [0, 0, 1, 1], [], []>} : vector<8x128xf32>, vector<128x512xf32>, vector<8x512xf32> -> vector<8x512xf32>
    %409 = arith.addf %407, %408 : vector<8x512xf32>
    %410 = vector.extract_strided_slice %409 {offsets = [0, 0], sizes = [8, 128], strides = [1, 1]} : vector<8x512xf32> to vector<8x128xf32>
    %411 = arith.negf %410 : vector<8x128xf32>
    %412 = math.exp %411 : vector<8x128xf32>
    %cst_128 = arith.constant 1.000000e+00 : f32
    %413 = vector.broadcast %cst_128 : f32 to vector<8x128xf32>
    %414 = arith.addf %413, %412 : vector<8x128xf32>
    %415 = arith.divf %413, %414 : vector<8x128xf32>
    %416 = vector.extract_strided_slice %409 {offsets = [0, 128], sizes = [8, 128], strides = [1, 1]} : vector<8x512xf32> to vector<8x128xf32>
    %417 = arith.negf %416 : vector<8x128xf32>
    %418 = math.exp %417 : vector<8x128xf32>
    %cst_129 = arith.constant 1.000000e+00 : f32
    %419 = vector.broadcast %cst_129 : f32 to vector<8x128xf32>
    %420 = arith.addf %419, %418 : vector<8x128xf32>
    %421 = arith.divf %419, %420 : vector<8x128xf32>
    %422 = vector.extract_strided_slice %409 {offsets = [0, 256], sizes = [8, 128], strides = [1, 1]} : vector<8x512xf32> to vector<8x128xf32>
    %423 = math.tanh %422 : vector<8x128xf32>
    %424 = vector.extract_strided_slice %409 {offsets = [0, 384], sizes = [8, 128], strides = [1, 1]} : vector<8x512xf32> to vector<8x128xf32>
    %425 = arith.negf %424 : vector<8x128xf32>
    %426 = math.exp %425 : vector<8x128xf32>
    %cst_130 = arith.constant 1.000000e+00 : f32
    %427 = vector.broadcast %cst_130 : f32 to vector<8x128xf32>
    %428 = arith.addf %427, %426 : vector<8x128xf32>
    %429 = arith.divf %427, %428 : vector<8x128xf32>
    %430 = arith.mulf %421, %363 : vector<8x128xf32>
    %431 = arith.mulf %415, %423 : vector<8x128xf32>
    %432 = arith.addf %430, %431 : vector<8x128xf32>
    %433 = math.tanh %432 : vector<8x128xf32>
    %434 = arith.mulf %429, %433 : vector<8x128xf32>
    %435 = arith.index_cast %404 : i32 to index
    %c0_131 = arith.constant 0 : index
    %c0_132 = arith.constant 0 : index
    %436 = vector.load %arg7[%435, %c0_131, %c0_132] : memref<8x8x128xf32, #tpu.memory_space<vmem>>, vector<1x8x128xf32>
    %437 = vector.shape_cast %436 : vector<1x8x128xf32> to vector<8x128xf32>
    %438 = vector.shape_cast %434 : vector<8x128xf32> to vector<1x8x128xf32>
    tpu.vector_store %arg7[%435, %c0_131, %c0_132], %438 {strides = array<i32>} : memref<8x8x128xf32, #tpu.memory_space<vmem>>, vector<1x8x128xf32>,
    %c6_i32 = arith.constant 6 : i32
    %439 = arith.index_cast %c6_i32 : i32 to index
    %c0_133 = arith.constant 0 : index
    %c0_134 = arith.constant 0 : index
    %440 = vector.load %arg10[%439, %c0_133, %c0_134] : memref<8x8x512xf32, #tpu.memory_space<vmem>>, vector<1x8x512xf32>
    %441 = vector.shape_cast %440 : vector<1x8x512xf32> to vector<8x512xf32>
    %cst_135 = arith.constant dense<0.000000e+00> : vector<8x512xf32>
    %442 = tpu.matmul %399, %18, %cst_135 {dimension_numbers = #tpu.dot_dimension_numbers<[1], [0], [0], [1], [0, 0, 1, 1], [], []>} : vector<8x128xf32>, vector<128x512xf32>, vector<8x512xf32> -> vector<8x512xf32>
    %443 = arith.addf %441, %442 : vector<8x512xf32>
    %444 = vector.extract_strided_slice %443 {offsets = [0, 0], sizes = [8, 128], strides = [1, 1]} : vector<8x512xf32> to vector<8x128xf32>
    %445 = arith.negf %444 : vector<8x128xf32>
    %446 = math.exp %445 : vector<8x128xf32>
    %cst_136 = arith.constant 1.000000e+00 : f32
    %447 = vector.broadcast %cst_136 : f32 to vector<8x128xf32>
    %448 = arith.addf %447, %446 : vector<8x128xf32>
    %449 = arith.divf %447, %448 : vector<8x128xf32>
    %450 = vector.extract_strided_slice %443 {offsets = [0, 128], sizes = [8, 128], strides = [1, 1]} : vector<8x512xf32> to vector<8x128xf32>
    %451 = arith.negf %450 : vector<8x128xf32>
    %452 = math.exp %451 : vector<8x128xf32>
    %cst_137 = arith.constant 1.000000e+00 : f32
    %453 = vector.broadcast %cst_137 : f32 to vector<8x128xf32>
    %454 = arith.addf %453, %452 : vector<8x128xf32>
    %455 = arith.divf %453, %454 : vector<8x128xf32>
    %456 = vector.extract_strided_slice %443 {offsets = [0, 256], sizes = [8, 128], strides = [1, 1]} : vector<8x512xf32> to vector<8x128xf32>
    %457 = math.tanh %456 : vector<8x128xf32>
    %458 = vector.extract_strided_slice %443 {offsets = [0, 384], sizes = [8, 128], strides = [1, 1]} : vector<8x512xf32> to vector<8x128xf32>
    %459 = arith.negf %458 : vector<8x128xf32>
    %460 = math.exp %459 : vector<8x128xf32>
    %cst_138 = arith.constant 1.000000e+00 : f32
    %461 = vector.broadcast %cst_138 : f32 to vector<8x128xf32>
    %462 = arith.addf %461, %460 : vector<8x128xf32>
    %463 = arith.divf %461, %462 : vector<8x128xf32>
    %464 = arith.mulf %455, %397 : vector<8x128xf32>
    %465 = arith.mulf %449, %457 : vector<8x128xf32>
    %466 = arith.addf %464, %465 : vector<8x128xf32>
    %467 = math.tanh %466 : vector<8x128xf32>
    %468 = arith.mulf %463, %467 : vector<8x128xf32>
    %469 = arith.index_cast %c6_i32 : i32 to index
    %c0_139 = arith.constant 0 : index
    %c0_140 = arith.constant 0 : index
    %470 = vector.load %arg6[%469, %c0_139, %c0_140] : memref<8x8x128xf32, #tpu.memory_space<vmem>>, vector<1x8x128xf32>
    %471 = vector.shape_cast %470 : vector<1x8x128xf32> to vector<8x128xf32>
    %472 = vector.shape_cast %468 : vector<8x128xf32> to vector<1x8x128xf32>
    tpu.vector_store %arg6[%469, %c0_139, %c0_140], %472 {strides = array<i32>} : memref<8x8x128xf32, #tpu.memory_space<vmem>>, vector<1x8x128xf32>,
    %c7_i32_141 = arith.constant 7 : i32
    %473 = arith.subi %c7_i32_141, %c6_i32 : i32
    %474 = arith.index_cast %473 : i32 to index
    %c0_142 = arith.constant 0 : index
    %c0_143 = arith.constant 0 : index
    %475 = vector.load %arg11[%474, %c0_142, %c0_143] : memref<8x8x512xf32, #tpu.memory_space<vmem>>, vector<1x8x512xf32>
    %476 = vector.shape_cast %475 : vector<1x8x512xf32> to vector<8x512xf32>
    %cst_144 = arith.constant dense<0.000000e+00> : vector<8x512xf32>
    %477 = tpu.matmul %434, %20, %cst_144 {dimension_numbers = #tpu.dot_dimension_numbers<[1], [0], [0], [1], [0, 0, 1, 1], [], []>} : vector<8x128xf32>, vector<128x512xf32>, vector<8x512xf32> -> vector<8x512xf32>
    %478 = arith.addf %476, %477 : vector<8x512xf32>
    %479 = vector.extract_strided_slice %478 {offsets = [0, 0], sizes = [8, 128], strides = [1, 1]} : vector<8x512xf32> to vector<8x128xf32>
    %480 = arith.negf %479 : vector<8x128xf32>
    %481 = math.exp %480 : vector<8x128xf32>
    %cst_145 = arith.constant 1.000000e+00 : f32
    %482 = vector.broadcast %cst_145 : f32 to vector<8x128xf32>
    %483 = arith.addf %482, %481 : vector<8x128xf32>
    %484 = arith.divf %482, %483 : vector<8x128xf32>
    %485 = vector.extract_strided_slice %478 {offsets = [0, 128], sizes = [8, 128], strides = [1, 1]} : vector<8x512xf32> to vector<8x128xf32>
    %486 = arith.negf %485 : vector<8x128xf32>
    %487 = math.exp %486 : vector<8x128xf32>
    %cst_146 = arith.constant 1.000000e+00 : f32
    %488 = vector.broadcast %cst_146 : f32 to vector<8x128xf32>
    %489 = arith.addf %488, %487 : vector<8x128xf32>
    %490 = arith.divf %488, %489 : vector<8x128xf32>
    %491 = vector.extract_strided_slice %478 {offsets = [0, 256], sizes = [8, 128], strides = [1, 1]} : vector<8x512xf32> to vector<8x128xf32>
    %492 = math.tanh %491 : vector<8x128xf32>
    %493 = vector.extract_strided_slice %478 {offsets = [0, 384], sizes = [8, 128], strides = [1, 1]} : vector<8x512xf32> to vector<8x128xf32>
    %494 = arith.negf %493 : vector<8x128xf32>
    %495 = math.exp %494 : vector<8x128xf32>
    %cst_147 = arith.constant 1.000000e+00 : f32
    %496 = vector.broadcast %cst_147 : f32 to vector<8x128xf32>
    %497 = arith.addf %496, %495 : vector<8x128xf32>
    %498 = arith.divf %496, %497 : vector<8x128xf32>
    %499 = arith.mulf %490, %432 : vector<8x128xf32>
    %500 = arith.mulf %484, %492 : vector<8x128xf32>
    %501 = arith.addf %499, %500 : vector<8x128xf32>
    %502 = math.tanh %501 : vector<8x128xf32>
    %503 = arith.mulf %498, %502 : vector<8x128xf32>
    %504 = arith.index_cast %473 : i32 to index
    %c0_148 = arith.constant 0 : index
    %c0_149 = arith.constant 0 : index
    %505 = vector.load %arg7[%504, %c0_148, %c0_149] : memref<8x8x128xf32, #tpu.memory_space<vmem>>, vector<1x8x128xf32>
    %506 = vector.shape_cast %505 : vector<1x8x128xf32> to vector<8x128xf32>
    %507 = vector.shape_cast %503 : vector<8x128xf32> to vector<1x8x128xf32>
    tpu.vector_store %arg7[%504, %c0_148, %c0_149], %507 {strides = array<i32>} : memref<8x8x128xf32, #tpu.memory_space<vmem>>, vector<1x8x128xf32>,
    %c7_i32_150 = arith.constant 7 : i32
    %508 = arith.index_cast %c7_i32_150 : i32 to index
    %c0_151 = arith.constant 0 : index
    %c0_152 = arith.constant 0 : index
    %509 = vector.load %arg10[%508, %c0_151, %c0_152] : memref<8x8x512xf32, #tpu.memory_space<vmem>>, vector<1x8x512xf32>
    %510 = vector.shape_cast %509 : vector<1x8x512xf32> to vector<8x512xf32>
    %cst_153 = arith.constant dense<0.000000e+00> : vector<8x512xf32>
    %511 = tpu.matmul %468, %18, %cst_153 {dimension_numbers = #tpu.dot_dimension_numbers<[1], [0], [0], [1], [0, 0, 1, 1], [], []>} : vector<8x128xf32>, vector<128x512xf32>, vector<8x512xf32> -> vector<8x512xf32>
    %512 = arith.addf %510, %511 : vector<8x512xf32>
    %513 = vector.extract_strided_slice %512 {offsets = [0, 0], sizes = [8, 128], strides = [1, 1]} : vector<8x512xf32> to vector<8x128xf32>
    %514 = arith.negf %513 : vector<8x128xf32>
    %515 = math.exp %514 : vector<8x128xf32>
    %cst_154 = arith.constant 1.000000e+00 : f32
    %516 = vector.broadcast %cst_154 : f32 to vector<8x128xf32>
    %517 = arith.addf %516, %515 : vector<8x128xf32>
    %518 = arith.divf %516, %517 : vector<8x128xf32>
    %519 = vector.extract_strided_slice %512 {offsets = [0, 128], sizes = [8, 128], strides = [1, 1]} : vector<8x512xf32> to vector<8x128xf32>
    %520 = arith.negf %519 : vector<8x128xf32>
    %521 = math.exp %520 : vector<8x128xf32>
    %cst_155 = arith.constant 1.000000e+00 : f32
    %522 = vector.broadcast %cst_155 : f32 to vector<8x128xf32>
    %523 = arith.addf %522, %521 : vector<8x128xf32>
    %524 = arith.divf %522, %523 : vector<8x128xf32>
    %525 = vector.extract_strided_slice %512 {offsets = [0, 256], sizes = [8, 128], strides = [1, 1]} : vector<8x512xf32> to vector<8x128xf32>
    %526 = math.tanh %525 : vector<8x128xf32>
    %527 = vector.extract_strided_slice %512 {offsets = [0, 384], sizes = [8, 128], strides = [1, 1]} : vector<8x512xf32> to vector<8x128xf32>
    %528 = arith.negf %527 : vector<8x128xf32>
    %529 = math.exp %528 : vector<8x128xf32>
    %cst_156 = arith.constant 1.000000e+00 : f32
    %530 = vector.broadcast %cst_156 : f32 to vector<8x128xf32>
    %531 = arith.addf %530, %529 : vector<8x128xf32>
    %532 = arith.divf %530, %531 : vector<8x128xf32>
    %533 = arith.mulf %524, %466 : vector<8x128xf32>
    %534 = arith.mulf %518, %526 : vector<8x128xf32>
    %535 = arith.addf %533, %534 : vector<8x128xf32>
    %536 = math.tanh %535 : vector<8x128xf32>
    %537 = arith.mulf %532, %536 : vector<8x128xf32>
    %538 = arith.index_cast %c7_i32_150 : i32 to index
    %c0_157 = arith.constant 0 : index
    %c0_158 = arith.constant 0 : index
    %539 = vector.load %arg6[%538, %c0_157, %c0_158] : memref<8x8x128xf32, #tpu.memory_space<vmem>>, vector<1x8x128xf32>
    %540 = vector.shape_cast %539 : vector<1x8x128xf32> to vector<8x128xf32>
    %541 = vector.shape_cast %537 : vector<8x128xf32> to vector<1x8x128xf32>
    tpu.vector_store %arg6[%538, %c0_157, %c0_158], %541 {strides = array<i32>} : memref<8x8x128xf32, #tpu.memory_space<vmem>>, vector<1x8x128xf32>,
    %c7_i32_159 = arith.constant 7 : i32
    %542 = arith.subi %c7_i32_159, %c7_i32_150 : i32
    %543 = arith.index_cast %542 : i32 to index
    %c0_160 = arith.constant 0 : index
    %c0_161 = arith.constant 0 : index
    %544 = vector.load %arg11[%543, %c0_160, %c0_161] : memref<8x8x512xf32, #tpu.memory_space<vmem>>, vector<1x8x512xf32>
    %545 = vector.shape_cast %544 : vector<1x8x512xf32> to vector<8x512xf32>
    %cst_162 = arith.constant dense<0.000000e+00> : vector<8x512xf32>
    %546 = tpu.matmul %503, %20, %cst_162 {dimension_numbers = #tpu.dot_dimension_numbers<[1], [0], [0], [1], [0, 0, 1, 1], [], []>} : vector<8x128xf32>, vector<128x512xf32>, vector<8x512xf32> -> vector<8x512xf32>
    %547 = arith.addf %545, %546 : vector<8x512xf32>
    %548 = vector.extract_strided_slice %547 {offsets = [0, 0], sizes = [8, 128], strides = [1, 1]} : vector<8x512xf32> to vector<8x128xf32>
    %549 = arith.negf %548 : vector<8x128xf32>
    %550 = math.exp %549 : vector<8x128xf32>
    %cst_163 = arith.constant 1.000000e+00 : f32
    %551 = vector.broadcast %cst_163 : f32 to vector<8x128xf32>
    %552 = arith.addf %551, %550 : vector<8x128xf32>
    %553 = arith.divf %551, %552 : vector<8x128xf32>
    %554 = vector.extract_strided_slice %547 {offsets = [0, 128], sizes = [8, 128], strides = [1, 1]} : vector<8x512xf32> to vector<8x128xf32>
    %555 = arith.negf %554 : vector<8x128xf32>
    %556 = math.exp %555 : vector<8x128xf32>
    %cst_164 = arith.constant 1.000000e+00 : f32
    %557 = vector.broadcast %cst_164 : f32 to vector<8x128xf32>
    %558 = arith.addf %557, %556 : vector<8x128xf32>
    %559 = arith.divf %557, %558 : vector<8x128xf32>
    %560 = vector.extract_strided_slice %547 {offsets = [0, 256], sizes = [8, 128], strides = [1, 1]} : vector<8x512xf32> to vector<8x128xf32>
    %561 = math.tanh %560 : vector<8x128xf32>
    %562 = vector.extract_strided_slice %547 {offsets = [0, 384], sizes = [8, 128], strides = [1, 1]} : vector<8x512xf32> to vector<8x128xf32>
    %563 = arith.negf %562 : vector<8x128xf32>
    %564 = math.exp %563 : vector<8x128xf32>
    %cst_165 = arith.constant 1.000000e+00 : f32
    %565 = vector.broadcast %cst_165 : f32 to vector<8x128xf32>
    %566 = arith.addf %565, %564 : vector<8x128xf32>
    %567 = arith.divf %565, %566 : vector<8x128xf32>
    %568 = arith.mulf %559, %501 : vector<8x128xf32>
    %569 = arith.mulf %553, %561 : vector<8x128xf32>
    %570 = arith.addf %568, %569 : vector<8x128xf32>
    %571 = math.tanh %570 : vector<8x128xf32>
    %572 = arith.mulf %567, %571 : vector<8x128xf32>
    %573 = arith.index_cast %542 : i32 to index
    %c0_166 = arith.constant 0 : index
    %c0_167 = arith.constant 0 : index
    %574 = vector.load %arg7[%573, %c0_166, %c0_167] : memref<8x8x128xf32, #tpu.memory_space<vmem>>, vector<1x8x128xf32>
    %575 = vector.shape_cast %574 : vector<1x8x128xf32> to vector<8x128xf32>
    %576 = vector.shape_cast %572 : vector<8x128xf32> to vector<1x8x128xf32>
    tpu.vector_store %arg7[%573, %c0_166, %c0_167], %576 {strides = array<i32>} : memref<8x8x128xf32, #tpu.memory_space<vmem>>, vector<1x8x128xf32>,
    %c8_i32 = arith.constant 8 : i32
    %c0_168 = arith.constant 0 : index
    %c0_169 = arith.constant 0 : index
    %577 = vector.load %arg9[%c0_168, %c0_169] : memref<8x256xf32, #tpu.memory_space<vmem>>, vector<8x128xf32>
    tpu.vector_store %arg9[%c0_168, %c0_169], %537 {strides = array<i32>} : memref<8x256xf32, #tpu.memory_space<vmem>>, vector<8x128xf32>,
    %c0_170 = arith.constant 0 : index
    %c128_171 = arith.constant 128 : index
    %578 = vector.load %arg9[%c0_170, %c128_171] : memref<8x256xf32, #tpu.memory_space<vmem>>, vector<8x128xf32>
    tpu.vector_store %arg9[%c0_170, %c128_171], %572 {strides = array<i32>} : memref<8x256xf32, #tpu.memory_space<vmem>>, vector<8x128xf32>,
    %c0_172 = arith.constant 0 : index
    %c0_173 = arith.constant 0 : index
    %579 = vector.load %arg8[%c0_172, %c0_173] : memref<8x256xf32, #tpu.memory_space<vmem>>, vector<8x128xf32>
    tpu.vector_store %arg8[%c0_172, %c0_173], %535 {strides = array<i32>} : memref<8x256xf32, #tpu.memory_space<vmem>>, vector<8x128xf32>,
    %c0_174 = arith.constant 0 : index
    %c128_175 = arith.constant 128 : index
    %580 = vector.load %arg8[%c0_174, %c128_175] : memref<8x256xf32, #tpu.memory_space<vmem>>, vector<8x128xf32>
    tpu.vector_store %arg8[%c0_174, %c128_175], %570 {strides = array<i32>} : memref<8x256xf32, #tpu.memory_space<vmem>>, vector<8x128xf32>,
    return
  }
  func.func @transform_0(%arg0: i32, %arg1: i32) -> (i32, i32, i32) {
    %c0_i32 = arith.constant 0 : i32
    %c0_i32_0 = arith.constant 0 : i32
    return %arg1, %arg0, %c0_i32 : i32, i32, i32
  }
  func.func @transform_1(%arg0: i32, %arg1: i32) -> (i32, i32, i32) {
    %c0_i32 = arith.constant 0 : i32
    %0 = arith.subi %c0_i32, %arg1 : i32
    %c0_i32_0 = arith.constant 0 : i32
    %c0_i32_1 = arith.constant 0 : i32
    return %0, %arg0, %c0_i32_0 : i32, i32, i32
  }
  func.func @transform_2(%arg0: i32, %arg1: i32) -> (i32, i32, i32) {
    %c0_i32 = arith.constant 0 : i32
    %c0_i32_0 = arith.constant 0 : i32
    %c0_i32_1 = arith.constant 0 : i32
    %c0_i32_2 = arith.constant 0 : i32
    return %c0_i32, %c0_i32_0, %c0_i32_1 : i32, i32, i32
  }
  func.func @transform_3(%arg0: i32, %arg1: i32) -> (i32, i32, i32) {
    %c0_i32 = arith.constant 0 : i32
    %c0_i32_0 = arith.constant 0 : i32
    %c0_i32_1 = arith.constant 0 : i32
    %c0_i32_2 = arith.constant 0 : i32
    return %c0_i32, %c0_i32_0, %c0_i32_1 : i32, i32, i32
  }
  func.func @transform_4(%arg0: i32, %arg1: i32) -> (i32, i32, i32) {
    %c0_i32 = arith.constant 0 : i32
    %c0_i32_0 = arith.constant 0 : i32
    return %arg1, %arg0, %c0_i32 : i32, i32, i32
  }
  func.func @transform_5(%arg0: i32, %arg1: i32) -> (i32, i32, i32) {
    %c0_i32 = arith.constant 0 : i32
    %0 = arith.subi %c0_i32, %arg1 : i32
    %c0_i32_0 = arith.constant 0 : i32
    %c0_i32_1 = arith.constant 0 : i32
    return %0, %arg0, %c0_i32_0 : i32, i32, i32
  }
  func.func @transform_6(%arg0: i32, %arg1: i32) -> (i32, i32) {
    %c0_i32 = arith.constant 0 : i32
    %c0_i32_0 = arith.constant 0 : i32
    return %arg0, %c0_i32 : i32, i32
  }
}

</mosaic_0001>

<llo_original>
// kernel: tpu_custom_call.1
$region0: #{tpu_custom_call.1}
  #allocation0 [shape = 'u32[]', space=smem, size = 0x4, offset = 0x4, fixed_abs, tag = 'smem constant byte address 0x4 - core index']
  #allocation1 [shape = 'u32[144,128]{1,0:T(1,128)}', space=vmem, size = 0x12000, scoped, tag = 'internal scratch']
  #allocation2 [shape = 'f32[8,256]{1,0:T(8,128)}', space=vmem, size = 0x2000, scoped, tag = 'scratch operand']
  #allocation3 [shape = 'f32[8,8,512]{2,1,0:T(8,128)}', space=vmem, size = 0x20000, scoped, tag = 'scratch operand']
  #allocation4 [shape = 'f32[8,8,512]{2,1,0:T(8,128)}', space=vmem, size = 0x20000, scoped, tag = 'scratch operand']
  %s0 = inlined_call_operand.vmem [shape: f32[8,8,17], index: 0, kind: input, shape index: {}]
  %s1 = inlined_call_operand.vmem [shape: f32[8,8,17], index: 1, kind: input, shape index: {}]
  %s2 = inlined_call_operand.vmem [shape: f32[2,17,512], index: 2, kind: input, shape index: {}]
  %s3 = inlined_call_operand.hbm [shape: f32[2,128,512], index: 3, kind: input, shape index: {}]
  %s4 = inlined_call_operand.hbm [shape: f32[8,8,128], index: 4, kind: output, shape index: {0}]
  %s5 = inlined_call_operand.hbm [shape: f32[8,8,128], index: 5, kind: output, shape index: {1}]
  %s6 = inlined_call_operand.hbm [shape: f32[8,256], index: 6, kind: output, shape index: {2}]
  %7 = xla_tuple %s4, %s5, %s6
  %s8 = sld [smem:[#allocation0]]
  $region50: #{tpu_custom_call.1} parent=0
    _
  %s10 = ssub.s32 1, %s8
  %s11 = scalar_select 0, %s10, %s8
  $region1: #{tpu_custom_call.1} parent=0
    #allocation5 [shape = 'u8[524288]{0}', space=vmem, size = 0x80000, scoped, tag = 'input window, operand 3, single buffered']
    #allocation6 [shape = 's32[1]{0}', space=sflag, size = 0x4, scoped, tag = 'scoped memory for tpu_custom_call.1']
    #allocation7 [shape = 's32[1]{0}', space=sflag, size = 0x4, scoped, tag = 'scoped memory for tpu_custom_call.1']
    #allocation8 [shape = 'u8[32768]{0}', space=vmem, size = 0x8000, scoped, tag = 'output window, operand 0, single buffered']
    #allocation9 [shape = 'u8[32768]{0}', space=vmem, size = 0x8000, scoped, tag = 'output window, operand 1, single buffered']
    #allocation10 [shape = 's32[1]{0}', space=sflag, size = 0x4, scoped, tag = 'scoped memory for tpu_custom_call.1']
    #allocation11 [shape = 'u8[8192]{0}', space=vmem, size = 0x2000, scoped, tag = 'output window, operand 2, single buffered']
    %12 = vsyncpa [#allocation6], 0
    %13 = vsyncpa [#allocation7], 0
    %14 = vsyncpa [#allocation10], 0
    // Predicated region
    $region2: #{tpu_custom_call.1} parent=1 // pred_check
      _
    $region3: #{tpu_custom_call.1} parent=1 // pred_check_branch
      %16 = sbr.rel (0) target = $region5
    $region4: #{tpu_custom_call.1} parent=1 // pred_region
      _
    $region5: #{tpu_custom_call.1} parent=1 // pred_fallthru
      _
    // Predicated region
    $region6: #{tpu_custom_call.1} parent=1 // pred_check
      _
    $region7: #{tpu_custom_call.1} parent=1 // pred_check_branch
      %18 = sbr.rel (0) target = $region9
    $region8: #{tpu_custom_call.1} parent=1 // pred_region
      %s19 = ssub.s32 0, 0
      %s20 = smul.u32 8, %s19
      %p21 = scmp.lt.s32.totalorder %s20, 7
      %s22 = scalar_select %p21, %s20, 7
      %s23 = smul.addr %s22, 8
      %s24 = scalar_lea.vmem %s1, %s23
      %s25 = ssub.s32 0, 0
      %s26 = smul.u32 8, %s25
    $region9: #{tpu_custom_call.1} parent=1 // pred_fallthru
      _
    // Predicated region
    $region10: #{tpu_custom_call.1} parent=1 // pred_check
      _
    $region11: #{tpu_custom_call.1} parent=1 // pred_check_branch
      %28 = sbr.rel (0) target = $region13
    $region12: #{tpu_custom_call.1} parent=1 // pred_region
      _
    $region13: #{tpu_custom_call.1} parent=1 // pred_fallthru
      _
    // Predicated region
    $region14: #{tpu_custom_call.1} parent=1 // pred_check
      _
    $region15: #{tpu_custom_call.1} parent=1 // pred_check_branch
      %30 = sbr.rel (0) target = $region17
    $region16: #{tpu_custom_call.1} parent=1 // pred_region
      %s32 = ssub.s32 16384, 16384
      %33 = vsyncadd [#allocation6], %s32
      %s34 = sshll.u32 [#allocation5], 4
      %s35 = int_to_ptr.vmem [resolvable:$true] %s34
      %40 = dma.hbm_to_vmem [thread:$0]  %s3, 16384, %s35, [#allocation6], 512, 512, 32
    $region17: #{tpu_custom_call.1} parent=1 // pred_fallthru
      _
    // Predicated region
    $region18: #{tpu_custom_call.1} parent=1 // pred_check
      _
    $region19: #{tpu_custom_call.1} parent=1 // pred_check_branch
      %42 = sbr.rel (0) target = $region21
    $region20: #{tpu_custom_call.1} parent=1 // pred_region
      %43 = dma.done [#allocation6], 16384
    $region21: #{tpu_custom_call.1} parent=1 // pred_fallthru
      _
    %s44 = ssub.s32 0, 0
    %s45 = smul.u32 8, %s44
    %p46 = scmp.lt.s32.totalorder %s45, 7
    %s47 = scalar_select %p46, %s45, 7
    %s48 = smul.addr %s47, 8
    %s49 = scalar_lea.vmem %s1, %s48
    %s50 = ssub.s32 0, 0
    %s51 = smul.u32 8, %s50
    %p52 = scmp.lt.s32.totalorder %s51, 7
    %s53 = scalar_select %p52, %s51, 7
    %s54 = smul.addr %s53, 8
    %s55 = scalar_lea.vmem %s1, %s54
    %s56 = ssub.s32 0, 0
    %s57 = smul.u32 8, %s56
    %s58 = ssub.s32 0, 0
    %s59 = smul.u32 8, %s58
    %p60 = scmp.eq.s32.totalorder 0, 0
    // Predicated region
    $region22: #{tpu_custom_call.1} parent=1 // pred_check
      %p61 = pneg %p60
    $region23: #{tpu_custom_call.1} parent=1 // pred_check_branch
      %63 = sbr.rel (%p61) target = $region25
    $region24: #{tpu_custom_call.1} parent=1 // pred_region
      %64 = vst [vmem:[#allocation2] sm:$0xff] 0.0
      %65 = vst [vmem:[#allocation2 + $0x8] sm:$0xff] 0.0
      %66 = vst [vmem:[#allocation11] sm:$0xff] 0.0
      %67 = vst [vmem:[#allocation11 + $0x8] sm:$0xff] 0.0
    $region25: #{tpu_custom_call.1} parent=1 // pred_fallthru
      _
    %v68 = vld [vmem:[%s0] sm:$0xff]
    %v69 = vld [vmem:[%s0 + $0x8] sm:$0xff]
    %v70 = vld [vmem:[%s0 + $0x10] sm:$0xff]
    %v71 = vld [vmem:[%s0 + $0x18] sm:$0xff]
    %v72 = vld [vmem:[%s0 + $0x20] sm:$0xff]
    %v73 = vld [vmem:[%s0 + $0x28] sm:$0xff]
    %v74 = vld [vmem:[%s0 + $0x30] sm:$0xff]
    %v75 = vld [vmem:[%s0 + $0x38] sm:$0xff]
    %v76 = vld [vmem:[%s2] sm:$0xff]
    %v77 = vld [vmem:[%s2 + $0x8] sm:$0xff]
    %v78 = vld [vmem:[%s2 + $0x10] sm:$0xff]
    %v79 = vld [vmem:[%s2 + $0x18] sm:$0xff]
    %v80 = vld [vmem:[%s2 + $0x20] sm:$0xff]
    %v81 = vld [vmem:[%s2 + $0x28] sm:$0xff]
    %v82 = vld [vmem:[%s2 + $0x30] sm:$0xff]
    %v83 = vld [vmem:[%s2 + $0x38] sm:$0xff]
    %v84 = vld [vmem:[%s2 + $0x40] sm:$0x1]
    %v85 = vld [vmem:[%s2 + $0x48] sm:$0x1]
    %v86 = vld [vmem:[%s2 + $0x50] sm:$0x1]
    %v87 = vld [vmem:[%s2 + $0x58] sm:$0x1]
    %vm88 = vcmask 138240
    %v90 = vsel %vm88, %v68, 0
    %v93 = vsel %vm88, %v69, 0
    %v96 = vsel %vm88, %v70, 0
    %v99 = vsel %vm88, %v71, 0
    %v102 = vsel %vm88, %v72, 0
    %v105 = vsel %vm88, %v73, 0
    %v108 = vsel %vm88, %v74, 0
    %v111 = vsel %vm88, %v75, 0
    %vm113 = vcmask 1040384
    %v115 = vsel %vm113, %v84, 0
    %v118 = vsel %vm113, %v85, 0
    %v121 = vsel %vm113, %v86, 0
    %v124 = vsel %vm113, %v87, 0
    %126 = vmatprep.subr.mxu0 %v77
    %127 = vmatpush1.msra.mxu0 %v76
    %128 = vmatprep.subr.mxu0 %v81
    %129 = vmatpush1.msra.mxu0 %v80
    %130 = vmatprep.subr.mxu0 %v118
    %131 = vmatpush1.msra.mxu0 %v115
    %132 = vmatprep.subr.mxu0 0.0
    %133 = vmatpush1.msra.mxu0 0.0
    %134 = vmatprep.subr.mxu0 0.0
    %135 = vmatpush1.msra.mxu0 0.0
    %136 = vmatprep.subr.mxu0 0.0
    %137 = vmatpush1.msra.mxu0 0.0
    %138 = vmatprep.subr.mxu0 0.0
    %139 = vmatpush1.msra.mxu0 0.0
    %140 = vmatprep.subr.mxu0 0.0
    %141 = vmatpush1.msra.mxu0 0.0
    %142 = vmatprep.subr.mxu0 0.0
    %143 = vmatpush1.msra.mxu0 0.0
    %144 = vmatprep.subr.mxu0 0.0
    %145 = vmatpush1.msra.mxu0 0.0
    %146 = vmatprep.subr.mxu0 0.0
    %147 = vmatpush1.msra.mxu0 0.0
    %148 = vmatprep.subr.mxu0 0.0
    %149 = vmatpush1.msra.mxu0 0.0
    %150 = vmatprep.subr.mxu0 0.0
    %151 = vmatpush1.msra.mxu0 0.0
    %152 = vmatprep.subr.mxu0 0.0
    %153 = vmatpush1.msra.mxu0 0.0
    %154 = vmatprep.subr.mxu0 0.0
    %155 = vmatpush1.msra.mxu0 0.0
    %156 = vmatprep.subr.mxu0 0.0
    %157 = vmatpush1.msra.mxu0 0.0
    %158 = vmatprep.subr.mxu0 0.0
    %159 = vmatpush1.msra.mxu0 0.0
    %160 = vmatprep.subr.mxu0 0.0
    %161 = vmatpush1.msra.mxu0 0.0
    %162 = vmatprep.subr.mxu0 0.0
    %163 = vmatpush1.msra.mxu0 0.0
    %164 = vmatprep.subr.mxu0 0.0
    %165 = vmatpush1.msra.mxu0 0.0
    %166 = vmatprep.subr.mxu0 0.0
    %167 = vmatpush1.msra.mxu0 0.0
    %168 = vmatprep.subr.mxu0 0.0
    %169 = vmatpush1.msra.mxu0 0.0
    %170 = vmatprep.subr.mxu0 0.0
    %171 = vmatpush1.msra.mxu0 0.0
    %172 = vmatprep.subr.mxu0 0.0
    %173 = vmatpush1.msra.mxu0 0.0
    %174 = vmatprep.subr.mxu0 0.0
    %175 = vmatpush1.msra.mxu0 0.0
    %176 = vmatprep.subr.mxu0 0.0
    %177 = vmatpush1.msra.mxu0 0.0
    %178 = vmatprep.subr.mxu0 0.0
    %179 = vmatpush1.msra.mxu0 0.0
    %180 = vmatprep.subr.mxu0 0.0
    %181 = vmatpush1.msra.mxu0 0.0
    %182 = vmatprep.subr.mxu0 0.0
    %183 = vmatpush1.msra.mxu0 0.0
    %184 = vmatprep.subr.mxu0 0.0
    %185 = vmatpush1.msra.mxu0 0.0
    %186 = vmatprep.subr.mxu0 0.0
    %187 = vmatpush1.msra.mxu0 0.0
    %188 = vmatprep.subr.mxu0 0.0
    %189 = vmatpush1.msra.mxu0 0.0
    %190 = vmatprep.mubr.f32.mxu0 0.0
    %191 = vmatmul.mubr.f32.gmra.mrb[0].mxu0 %v90
    %v192 = vpop.f32.mrb[0].mxu0
    %v193 = vadd.f32 0.0, %v192
    %v194 = vpop.f32.mrb[0].mxu0
    %v195 = vadd.f32 0.0, %v194
    %196 = vmatprep.mubr.f32.mxu0 0.0
    %197 = vmatmul.mubr.f32.gmra.mrb[0].mxu0 %v93
    %v198 = vpop.f32.mrb[0].mxu0
    %v199 = vadd.f32 0.0, %v198
    %v200 = vpop.f32.mrb[0].mxu0
    %v201 = vadd.f32 0.0, %v200
    %202 = vmatprep.mubr.f32.mxu0 0.0
    %203 = vmatmul.mubr.f32.gmra.mrb[0].mxu0 %v96
    %v204 = vpop.f32.mrb[0].mxu0
    %v205 = vadd.f32 0.0, %v204
    %v206 = vpop.f32.mrb[0].mxu0
    %v207 = vadd.f32 0.0, %v206
    %208 = vmatprep.mubr.f32.mxu0 0.0
    %209 = vmatmul.mubr.f32.gmra.mrb[0].mxu0 %v99
    %v210 = vpop.f32.mrb[0].mxu0
    %v211 = vadd.f32 0.0, %v210
    %v212 = vpop.f32.mrb[0].mxu0
    %v213 = vadd.f32 0.0, %v212
    %214 = vmatprep.mubr.f32.mxu0 0.0
    %215 = vmatmul.mubr.f32.gmra.mrb[0].mxu0 %v102
    %v216 = vpop.f32.mrb[0].mxu0
    %v217 = vadd.f32 0.0, %v216
    %v218 = vpop.f32.mrb[0].mxu0
    %v219 = vadd.f32 0.0, %v218
    %220 = vmatprep.mubr.f32.mxu0 0.0
    %221 = vmatmul.mubr.f32.gmra.mrb[0].mxu0 %v105
    %v222 = vpop.f32.mrb[0].mxu0
    %v223 = vadd.f32 0.0, %v222
    %v224 = vpop.f32.mrb[0].mxu0
    %v225 = vadd.f32 0.0, %v224
    %226 = vmatprep.mubr.f32.mxu0 0.0
    %227 = vmatmul.mubr.f32.gmra.mrb[0].mxu0 %v108
    %v228 = vpop.f32.mrb[0].mxu0
    %v229 = vadd.f32 0.0, %v228
    %v230 = vpop.f32.mrb[0].mxu0
    %v231 = vadd.f32 0.0, %v230
    %232 = vmatprep.mubr.f32.mxu0 0.0
    %233 = vmatmul.mubr.f32.gmra.mrb[0].mxu0 %v111
    %v234 = vpop.f32.mrb[0].mxu0
    %v235 = vadd.f32 0.0, %v234
    %v236 = vpop.f32.mrb[0].mxu0
    %v237 = vadd.f32 0.0, %v236
    %238 = vdwg.mxu0
    %239 = vmatprep.subr.mxu0 %v79
    %240 = vmatpush1.msra.mxu0 %v78
    %241 = vmatprep.subr.mxu0 %v83
    %242 = vmatpush1.msra.mxu0 %v82
    %243 = vmatprep.subr.mxu0 %v124
    %244 = vmatpush1.msra.mxu0 %v121
    %245 = vmatprep.subr.mxu0 0.0
    %246 = vmatpush1.msra.mxu0 0.0
    %247 = vmatprep.subr.mxu0 0.0
    %248 = vmatpush1.msra.mxu0 0.0
    %249 = vmatprep.subr.mxu0 0.0
    %250 = vmatpush1.msra.mxu0 0.0
    %251 = vmatprep.subr.mxu0 0.0
    %252 = vmatpush1.msra.mxu0 0.0
    %253 = vmatprep.subr.mxu0 0.0
    %254 = vmatpush1.msra.mxu0 0.0
    %255 = vmatprep.subr.mxu0 0.0
    %256 = vmatpush1.msra.mxu0 0.0
    %257 = vmatprep.subr.mxu0 0.0
    %258 = vmatpush1.msra.mxu0 0.0
    %259 = vmatprep.subr.mxu0 0.0
    %260 = vmatpush1.msra.mxu0 0.0
    %261 = vmatprep.subr.mxu0 0.0
    %262 = vmatpush1.msra.mxu0 0.0
    %263 = vmatprep.subr.mxu0 0.0
    %264 = vmatpush1.msra.mxu0 0.0
    %265 = vmatprep.subr.mxu0 0.0
    %266 = vmatpush1.msra.mxu0 0.0
    %267 = vmatprep.subr.mxu0 0.0
    %268 = vmatpush1.msra.mxu0 0.0
    %269 = vmatprep.subr.mxu0 0.0
    %270 = vmatpush1.msra.mxu0 0.0
    %271 = vmatprep.subr.mxu0 0.0
    %272 = vmatpush1.msra.mxu0 0.0
    %273 = vmatprep.subr.mxu0 0.0
    %274 = vmatpush1.msra.mxu0 0.0
    %275 = vmatprep.subr.mxu0 0.0
    %276 = vmatpush1.msra.mxu0 0.0
    %277 = vmatprep.subr.mxu0 0.0
    %278 = vmatpush1.msra.mxu0 0.0
    %279 = vmatprep.subr.mxu0 0.0
    %280 = vmatpush1.msra.mxu0 0.0
    %281 = vmatprep.subr.mxu0 0.0
    %282 = vmatpush1.msra.mxu0 0.0
    %283 = vmatprep.subr.mxu0 0.0
    %284 = vmatpush1.msra.mxu0 0.0
    %285 = vmatprep.subr.mxu0 0.0
    %286 = vmatpush1.msra.mxu0 0.0
    %287 = vmatprep.subr.mxu0 0.0
    %288 = vmatpush1.msra.mxu0 0.0
    %289 = vmatprep.subr.mxu0 0.0
    %290 = vmatpush1.msra.mxu0 0.0
    %291 = vmatprep.subr.mxu0 0.0
    %292 = vmatpush1.msra.mxu0 0.0
    %293 = vmatprep.subr.mxu0 0.0
    %294 = vmatpush1.msra.mxu0 0.0
    %295 = vmatprep.subr.mxu0 0.0
    %296 = vmatpush1.msra.mxu0 0.0
    %297 = vmatprep.subr.mxu0 0.0
    %298 = vmatpush1.msra.mxu0 0.0
    %299 = vmatprep.subr.mxu0 0.0
    %300 = vmatpush1.msra.mxu0 0.0
    %301 = vmatprep.subr.mxu0 0.0
    %302 = vmatpush1.msra.mxu0 0.0
    %303 = vmatprep.mubr.f32.mxu0 0.0
    %304 = vmatmul.mubr.f32.gmra.mrb[0].mxu0 %v90
    %v305 = vpop.f32.mrb[0].mxu0
    %v306 = vadd.f32 0.0, %v305
    %v307 = vpop.f32.mrb[0].mxu0
    %v308 = vadd.f32 0.0, %v307
    %309 = vmatprep.mubr.f32.mxu0 0.0
    %310 = vmatmul.mubr.f32.gmra.mrb[0].mxu0 %v93
    %v311 = vpop.f32.mrb[0].mxu0
    %v312 = vadd.f32 0.0, %v311
    %v313 = vpop.f32.mrb[0].mxu0
    %v314 = vadd.f32 0.0, %v313
    %315 = vmatprep.mubr.f32.mxu0 0.0
    %316 = vmatmul.mubr.f32.gmra.mrb[0].mxu0 %v96
    %v317 = vpop.f32.mrb[0].mxu0
    %v318 = vadd.f32 0.0, %v317
    %v319 = vpop.f32.mrb[0].mxu0
    %v320 = vadd.f32 0.0, %v319
    %321 = vmatprep.mubr.f32.mxu0 0.0
    %322 = vmatmul.mubr.f32.gmra.mrb[0].mxu0 %v99
    %v323 = vpop.f32.mrb[0].mxu0
    %v324 = vadd.f32 0.0, %v323
    %v325 = vpop.f32.mrb[0].mxu0
    %v326 = vadd.f32 0.0, %v325
    %327 = vmatprep.mubr.f32.mxu0 0.0
    %328 = vmatmul.mubr.f32.gmra.mrb[0].mxu0 %v102
    %v329 = vpop.f32.mrb[0].mxu0
    %v330 = vadd.f32 0.0, %v329
    %v331 = vpop.f32.mrb[0].mxu0
    %v332 = vadd.f32 0.0, %v331
    %333 = vmatprep.mubr.f32.mxu0 0.0
    %334 = vmatmul.mubr.f32.gmra.mrb[0].mxu0 %v105
    %v335 = vpop.f32.mrb[0].mxu0
    %v336 = vadd.f32 0.0, %v335
    %v337 = vpop.f32.mrb[0].mxu0
    %v338 = vadd.f32 0.0, %v337
    %339 = vmatprep.mubr.f32.mxu0 0.0
    %340 = vmatmul.mubr.f32.gmra.mrb[0].mxu0 %v108
    %v341 = vpop.f32.mrb[0].mxu0
    %v342 = vadd.f32 0.0, %v341
    %v343 = vpop.f32.mrb[0].mxu0
    %v344 = vadd.f32 0.0, %v343
    %345 = vmatprep.mubr.f32.mxu0 0.0
    %346 = vmatmul.mubr.f32.gmra.mrb[0].mxu0 %v111
    %v347 = vpop.f32.mrb[0].mxu0
    %v348 = vadd.f32 0.0, %v347
    %v349 = vpop.f32.mrb[0].mxu0
    %v350 = vadd.f32 0.0, %v349
    %351 = vdwg.mxu0
    %352 = vst [vmem:[#allocation3] sm:$0xff] %v193
    %353 = vst [vmem:[#allocation3 + $0x8] sm:$0xff] %v195
    %354 = vst [vmem:[#allocation3 + $0x10] sm:$0xff] %v306
    %355 = vst [vmem:[#allocation3 + $0x18] sm:$0xff] %v308
    %356 = vst [vmem:[#allocation3 + $0x20] sm:$0xff] %v199
    %357 = vst [vmem:[#allocation3 + $0x28] sm:$0xff] %v201
    %358 = vst [vmem:[#allocation3 + $0x30] sm:$0xff] %v312
    %359 = vst [vmem:[#allocation3 + $0x38] sm:$0xff] %v314
    %360 = vst [vmem:[#allocation3 + $0x40] sm:$0xff] %v205
    %361 = vst [vmem:[#allocation3 + $0x48] sm:$0xff] %v207
    %362 = vst [vmem:[#allocation3 + $0x50] sm:$0xff] %v318
    %363 = vst [vmem:[#allocation3 + $0x58] sm:$0xff] %v320
    %364 = vst [vmem:[#allocation3 + $0x60] sm:$0xff] %v211
    %365 = vst [vmem:[#allocation3 + $0x68] sm:$0xff] %v213
    %366 = vst [vmem:[#allocation3 + $0x70] sm:$0xff] %v324
    %367 = vst [vmem:[#allocation3 + $0x78] sm:$0xff] %v326
    %368 = vst [vmem:[#allocation3 + $0x80] sm:$0xff] %v217
    %369 = vst [vmem:[#allocation3 + $0x88] sm:$0xff] %v219
    %370 = vst [vmem:[#allocation3 + $0x90] sm:$0xff] %v330
    %371 = vst [vmem:[#allocation3 + $0x98] sm:$0xff] %v332
    %372 = vst [vmem:[#allocation3 + $0xa0] sm:$0xff] %v223
    %373 = vst [vmem:[#allocation3 + $0xa8] sm:$0xff] %v225
    %374 = vst [vmem:[#allocation3 + $0xb0] sm:$0xff] %v336
    %375 = vst [vmem:[#allocation3 + $0xb8] sm:$0xff] %v338
    %376 = vst [vmem:[#allocation3 + $0xc0] sm:$0xff] %v229
    %377 = vst [vmem:[#allocation3 + $0xc8] sm:$0xff] %v231
    %378 = vst [vmem:[#allocation3 + $0xd0] sm:$0xff] %v342
    %379 = vst [vmem:[#allocation3 + $0xd8] sm:$0xff] %v344
    %380 = vst [vmem:[#allocation3 + $0xe0] sm:$0xff] %v235
    %381 = vst [vmem:[#allocation3 + $0xe8] sm:$0xff] %v237
    %382 = vst [vmem:[#allocation3 + $0xf0] sm:$0xff] %v348
    %383 = vst [vmem:[#allocation3 + $0xf8] sm:$0xff] %v350
    %v384 = vld [vmem:[%s55] sm:$0xff]
    %v385 = vld [vmem:[%s55 + $0x8] sm:$0xff]
    %v386 = vld [vmem:[%s55 + $0x10] sm:$0xff]
    %v387 = vld [vmem:[%s55 + $0x18] sm:$0xff]
    %v388 = vld [vmem:[%s55 + $0x20] sm:$0xff]
    %v389 = vld [vmem:[%s55 + $0x28] sm:$0xff]
    %v390 = vld [vmem:[%s55 + $0x30] sm:$0xff]
    %v391 = vld [vmem:[%s55 + $0x38] sm:$0xff]
    %s392 = scalar_lea.vmem %s2, 96
    %v393 = vld [vmem:[%s392] sm:$0xff]
    %v394 = vld [vmem:[%s392 + $0x8] sm:$0xff]
    %v395 = vld [vmem:[%s392 + $0x10] sm:$0xff]
    %v396 = vld [vmem:[%s392 + $0x18] sm:$0xff]
    %v397 = vld [vmem:[%s392 + $0x20] sm:$0xff]
    %v398 = vld [vmem:[%s392 + $0x28] sm:$0xff]
    %v399 = vld [vmem:[%s392 + $0x30] sm:$0xff]
    %v400 = vld [vmem:[%s392 + $0x38] sm:$0xff]
    %v401 = vld [vmem:[%s392 + $0x40] sm:$0x1]
    %v402 = vld [vmem:[%s392 + $0x48] sm:$0x1]
    %v403 = vld [vmem:[%s392 + $0x50] sm:$0x1]
    %v404 = vld [vmem:[%s392 + $0x58] sm:$0x1]
    %v406 = vsel %vm88, %v384, 0
    %v409 = vsel %vm88, %v385, 0
    %v412 = vsel %vm88, %v386, 0
    %v415 = vsel %vm88, %v387, 0
    %v418 = vsel %vm88, %v388, 0
    %v421 = vsel %vm88, %v389, 0
    %v424 = vsel %vm88, %v390, 0
    %v427 = vsel %vm88, %v391, 0
    %v430 = vsel %vm113, %v401, 0
    %v433 = vsel %vm113, %v402, 0
    %v436 = vsel %vm113, %v403, 0
    %v439 = vsel %vm113, %v404, 0
    %441 = vmatprep.subr.mxu0 %v394
    %442 = vmatpush1.msra.mxu0 %v393
    %443 = vmatprep.subr.mxu0 %v398
    %444 = vmatpush1.msra.mxu0 %v397
    %445 = vmatprep.subr.mxu0 %v433
    %446 = vmatpush1.msra.mxu0 %v430
    %447 = vmatprep.subr.mxu0 0.0
    %448 = vmatpush1.msra.mxu0 0.0
    %449 = vmatprep.subr.mxu0 0.0
    %450 = vmatpush1.msra.mxu0 0.0
    %451 = vmatprep.subr.mxu0 0.0
    %452 = vmatpush1.msra.mxu0 0.0
    %453 = vmatprep.subr.mxu0 0.0
    %454 = vmatpush1.msra.mxu0 0.0
    %455 = vmatprep.subr.mxu0 0.0
    %456 = vmatpush1.msra.mxu0 0.0
    %457 = vmatprep.subr.mxu0 0.0
    %458 = vmatpush1.msra.mxu0 0.0
    %459 = vmatprep.subr.mxu0 0.0
    %460 = vmatpush1.msra.mxu0 0.0
    %461 = vmatprep.subr.mxu0 0.0
    %462 = vmatpush1.msra.mxu0 0.0
    %463 = vmatprep.subr.mxu0 0.0
    %464 = vmatpush1.msra.mxu0 0.0
    %465 = vmatprep.subr.mxu0 0.0
    %466 = vmatpush1.msra.mxu0 0.0
    %467 = vmatprep.subr.mxu0 0.0
    %468 = vmatpush1.msra.mxu0 0.0
    %469 = vmatprep.subr.mxu0 0.0
    %470 = vmatpush1.msra.mxu0 0.0
    %471 = vmatprep.subr.mxu0 0.0
    %472 = vmatpush1.msra.mxu0 0.0
    %473 = vmatprep.subr.mxu0 0.0
    %474 = vmatpush1.msra.mxu0 0.0
    %475 = vmatprep.subr.mxu0 0.0
    %476 = vmatpush1.msra.mxu0 0.0
    %477 = vmatprep.subr.mxu0 0.0
    %478 = vmatpush1.msra.mxu0 0.0
    %479 = vmatprep.subr.mxu0 0.0
    %480 = vmatpush1.msra.mxu0 0.0
    %481 = vmatprep.subr.mxu0 0.0
    %482 = vmatpush1.msra.mxu0 0.0
    %483 = vmatprep.subr.mxu0 0.0
    %484 = vmatpush1.msra.mxu0 0.0
    %485 = vmatprep.subr.mxu0 0.0
    %486 = vmatpush1.msra.mxu0 0.0
    %487 = vmatprep.subr.mxu0 0.0
    %488 = vmatpush1.msra.mxu0 0.0
    %489 = vmatprep.subr.mxu0 0.0
    %490 = vmatpush1.msra.mxu0 0.0
    %491 = vmatprep.subr.mxu0 0.0
    %492 = vmatpush1.msra.mxu0 0.0
    %493 = vmatprep.subr.mxu0 0.0
    %494 = vmatpush1.msra.mxu0 0.0
    %495 = vmatprep.subr.mxu0 0.0
    %496 = vmatpush1.msra.mxu0 0.0
    %497 = vmatprep.subr.mxu0 0.0
    %498 = vmatpush1.msra.mxu0 0.0
    %499 = vmatprep.subr.mxu0 0.0
    %500 = vmatpush1.msra.mxu0 0.0
    %501 = vmatprep.subr.mxu0 0.0
    %502 = vmatpush1.msra.mxu0 0.0
    %503 = vmatprep.subr.mxu0 0.0
    %504 = vmatpush1.msra.mxu0 0.0
    %505 = vmatprep.mubr.f32.mxu0 0.0
    %506 = vmatmul.mubr.f32.gmra.mrb[0].mxu0 %v406
    %v507 = vpop.f32.mrb[0].mxu0
    %v508 = vadd.f32 0.0, %v507
    %v509 = vpop.f32.mrb[0].mxu0
    %v510 = vadd.f32 0.0, %v509
    %511 = vmatprep.mubr.f32.mxu0 0.0
    %512 = vmatmul.mubr.f32.gmra.mrb[0].mxu0 %v409
    %v513 = vpop.f32.mrb[0].mxu0
    %v514 = vadd.f32 0.0, %v513
    %v515 = vpop.f32.mrb[0].mxu0
    %v516 = vadd.f32 0.0, %v515
    %517 = vmatprep.mubr.f32.mxu0 0.0
    %518 = vmatmul.mubr.f32.gmra.mrb[0].mxu0 %v412
    %v519 = vpop.f32.mrb[0].mxu0
    %v520 = vadd.f32 0.0, %v519
    %v521 = vpop.f32.mrb[0].mxu0
    %v522 = vadd.f32 0.0, %v521
    %523 = vmatprep.mubr.f32.mxu0 0.0
    %524 = vmatmul.mubr.f32.gmra.mrb[0].mxu0 %v415
    %v525 = vpop.f32.mrb[0].mxu0
    %v526 = vadd.f32 0.0, %v525
    %v527 = vpop.f32.mrb[0].mxu0
    %v528 = vadd.f32 0.0, %v527
    %529 = vmatprep.mubr.f32.mxu0 0.0
    %530 = vmatmul.mubr.f32.gmra.mrb[0].mxu0 %v418
    %v531 = vpop.f32.mrb[0].mxu0
    %v532 = vadd.f32 0.0, %v531
    %v533 = vpop.f32.mrb[0].mxu0
    %v534 = vadd.f32 0.0, %v533
    %535 = vmatprep.mubr.f32.mxu0 0.0
    %536 = vmatmul.mubr.f32.gmra.mrb[0].mxu0 %v421
    %v537 = vpop.f32.mrb[0].mxu0
    %v538 = vadd.f32 0.0, %v537
    %v539 = vpop.f32.mrb[0].mxu0
    %v540 = vadd.f32 0.0, %v539
    %541 = vmatprep.mubr.f32.mxu0 0.0
    %542 = vmatmul.mubr.f32.gmra.mrb[0].mxu0 %v424
    %v543 = vpop.f32.mrb[0].mxu0
    %v544 = vadd.f32 0.0, %v543
    %v545 = vpop.f32.mrb[0].mxu0
    %v546 = vadd.f32 0.0, %v545
    %547 = vmatprep.mubr.f32.mxu0 0.0
    %548 = vmatmul.mubr.f32.gmra.mrb[0].mxu0 %v427
    %v549 = vpop.f32.mrb[0].mxu0
    %v550 = vadd.f32 0.0, %v549
    %v551 = vpop.f32.mrb[0].mxu0
    %v552 = vadd.f32 0.0, %v551
    %553 = vdwg.mxu0
    %554 = vmatprep.subr.mxu0 %v396
    %555 = vmatpush1.msra.mxu0 %v395
    %556 = vmatprep.subr.mxu0 %v400
    %557 = vmatpush1.msra.mxu0 %v399
    %558 = vmatprep.subr.mxu0 %v439
    %559 = vmatpush1.msra.mxu0 %v436
    %560 = vmatprep.subr.mxu0 0.0
    %561 = vmatpush1.msra.mxu0 0.0
    %562 = vmatprep.subr.mxu0 0.0
    %563 = vmatpush1.msra.mxu0 0.0
    %564 = vmatprep.subr.mxu0 0.0
    %565 = vmatpush1.msra.mxu0 0.0
    %566 = vmatprep.subr.mxu0 0.0
    %567 = vmatpush1.msra.mxu0 0.0
    %568 = vmatprep.subr.mxu0 0.0
    %569 = vmatpush1.msra.mxu0 0.0
    %570 = vmatprep.subr.mxu0 0.0
    %571 = vmatpush1.msra.mxu0 0.0
    %572 = vmatprep.subr.mxu0 0.0
    %573 = vmatpush1.msra.mxu0 0.0
    %574 = vmatprep.subr.mxu0 0.0
    %575 = vmatpush1.msra.mxu0 0.0
    %576 = vmatprep.subr.mxu0 0.0
    %577 = vmatpush1.msra.mxu0 0.0
    %578 = vmatprep.subr.mxu0 0.0
    %579 = vmatpush1.msra.mxu0 0.0
    %580 = vmatprep.subr.mxu0 0.0
    %581 = vmatpush1.msra.mxu0 0.0
    %582 = vmatprep.subr.mxu0 0.0
    %583 = vmatpush1.msra.mxu0 0.0
    %584 = vmatprep.subr.mxu0 0.0
    %585 = vmatpush1.msra.mxu0 0.0
    %586 = vmatprep.subr.mxu0 0.0
    %587 = vmatpush1.msra.mxu0 0.0
    %588 = vmatprep.subr.mxu0 0.0
    %589 = vmatpush1.msra.mxu0 0.0
    %590 = vmatprep.subr.mxu0 0.0
    %591 = vmatpush1.msra.mxu0 0.0
    %592 = vmatprep.subr.mxu0 0.0
    %593 = vmatpush1.msra.mxu0 0.0
    %594 = vmatprep.subr.mxu0 0.0
    %595 = vmatpush1.msra.mxu0 0.0
    %596 = vmatprep.subr.mxu0 0.0
    %597 = vmatpush1.msra.mxu0 0.0
    %598 = vmatprep.subr.mxu0 0.0
    %599 = vmatpush1.msra.mxu0 0.0
    %600 = vmatprep.subr.mxu0 0.0
    %601 = vmatpush1.msra.mxu0 0.0
    %602 = vmatprep.subr.mxu0 0.0
    %603 = vmatpush1.msra.mxu0 0.0
    %604 = vmatprep.subr.mxu0 0.0
    %605 = vmatpush1.msra.mxu0 0.0
    %606 = vmatprep.subr.mxu0 0.0
    %607 = vmatpush1.msra.mxu0 0.0
    %608 = vmatprep.subr.mxu0 0.0
    %609 = vmatpush1.msra.mxu0 0.0
    %610 = vmatprep.subr.mxu0 0.0
    %611 = vmatpush1.msra.mxu0 0.0
    %612 = vmatprep.subr.mxu0 0.0
    %613 = vmatpush1.msra.mxu0 0.0
    %614 = vmatprep.subr.mxu0 0.0
    %615 = vmatpush1.msra.mxu0 0.0
    %616 = vmatprep.subr.mxu0 0.0
    %617 = vmatpush1.msra.mxu0 0.0
    %618 = vmatprep.mubr.f32.mxu0 0.0
    %619 = vmatmul.mubr.f32.gmra.mrb[0].mxu0 %v406
    %v620 = vpop.f32.mrb[0].mxu0
    %v621 = vadd.f32 0.0, %v620
    %v622 = vpop.f32.mrb[0].mxu0
    %v623 = vadd.f32 0.0, %v622
    %624 = vmatprep.mubr.f32.mxu0 0.0
    %625 = vmatmul.mubr.f32.gmra.mrb[0].mxu0 %v409
    %v626 = vpop.f32.mrb[0].mxu0
    %v627 = vadd.f32 0.0, %v626
    %v628 = vpop.f32.mrb[0].mxu0
    %v629 = vadd.f32 0.0, %v628
    %630 = vmatprep.mubr.f32.mxu0 0.0
    %631 = vmatmul.mubr.f32.gmra.mrb[0].mxu0 %v412
    %v632 = vpop.f32.mrb[0].mxu0
    %v633 = vadd.f32 0.0, %v632
    %v634 = vpop.f32.mrb[0].mxu0
    %v635 = vadd.f32 0.0, %v634
    %636 = vmatprep.mubr.f32.mxu0 0.0
    %637 = vmatmul.mubr.f32.gmra.mrb[0].mxu0 %v415
    %v638 = vpop.f32.mrb[0].mxu0
    %v639 = vadd.f32 0.0, %v638
    %v640 = vpop.f32.mrb[0].mxu0
    %v641 = vadd.f32 0.0, %v640
    %642 = vmatprep.mubr.f32.mxu0 0.0
    %643 = vmatmul.mubr.f32.gmra.mrb[0].mxu0 %v418
    %v644 = vpop.f32.mrb[0].mxu0
    %v645 = vadd.f32 0.0, %v644
    %v646 = vpop.f32.mrb[0].mxu0
    %v647 = vadd.f32 0.0, %v646
    %648 = vmatprep.mubr.f32.mxu0 0.0
    %649 = vmatmul.mubr.f32.gmra.mrb[0].mxu0 %v421
    %v650 = vpop.f32.mrb[0].mxu0
    %v651 = vadd.f32 0.0, %v650
    %v652 = vpop.f32.mrb[0].mxu0
    %v653 = vadd.f32 0.0, %v652
    %654 = vmatprep.mubr.f32.mxu0 0.0
    %655 = vmatmul.mubr.f32.gmra.mrb[0].mxu0 %v424
    %v656 = vpop.f32.mrb[0].mxu0
    %v657 = vadd.f32 0.0, %v656
    %v658 = vpop.f32.mrb[0].mxu0
    %v659 = vadd.f32 0.0, %v658
    %660 = vmatprep.mubr.f32.mxu0 0.0
    %661 = vmatmul.mubr.f32.gmra.mrb[0].mxu0 %v427
    %v662 = vpop.f32.mrb[0].mxu0
    %v663 = vadd.f32 0.0, %v662
    %v664 = vpop.f32.mrb[0].mxu0
    %v665 = vadd.f32 0.0, %v664
    %666 = vdwg.mxu0
    %667 = vst [vmem:[#allocation4] sm:$0xff] %v508
    %668 = vst [vmem:[#allocation4 + $0x8] sm:$0xff] %v510
    %669 = vst [vmem:[#allocation4 + $0x10] sm:$0xff] %v621
    %670 = vst [vmem:[#allocation4 + $0x18] sm:$0xff] %v623
    %671 = vst [vmem:[#allocation4 + $0x20] sm:$0xff] %v514
    %672 = vst [vmem:[#allocation4 + $0x28] sm:$0xff] %v516
    %673 = vst [vmem:[#allocation4 + $0x30] sm:$0xff] %v627
    %674 = vst [vmem:[#allocation4 + $0x38] sm:$0xff] %v629
    %675 = vst [vmem:[#allocation4 + $0x40] sm:$0xff] %v520
    %676 = vst [vmem:[#allocation4 + $0x48] sm:$0xff] %v522
    %677 = vst [vmem:[#allocation4 + $0x50] sm:$0xff] %v633
    %678 = vst [vmem:[#allocation4 + $0x58] sm:$0xff] %v635
    %679 = vst [vmem:[#allocation4 + $0x60] sm:$0xff] %v526
    %680 = vst [vmem:[#allocation4 + $0x68] sm:$0xff] %v528
    %681 = vst [vmem:[#allocation4 + $0x70] sm:$0xff] %v639
    %682 = vst [vmem:[#allocation4 + $0x78] sm:$0xff] %v641
    %683 = vst [vmem:[#allocation4 + $0x80] sm:$0xff] %v532
    %684 = vst [vmem:[#allocation4 + $0x88] sm:$0xff] %v534
    %685 = vst [vmem:[#allocation4 + $0x90] sm:$0xff] %v645
    %686 = vst [vmem:[#allocation4 + $0x98] sm:$0xff] %v647
    %687 = vst [vmem:[#allocation4 + $0xa0] sm:$0xff] %v538
    %688 = vst [vmem:[#allocation4 + $0xa8] sm:$0xff] %v540
    %689 = vst [vmem:[#allocation4 + $0xb0] sm:$0xff] %v651
    %690 = vst [vmem:[#allocation4 + $0xb8] sm:$0xff] %v653
    %691 = vst [vmem:[#allocation4 + $0xc0] sm:$0xff] %v544
    %692 = vst [vmem:[#allocation4 + $0xc8] sm:$0xff] %v546
    %693 = vst [vmem:[#allocation4 + $0xd0] sm:$0xff] %v657
    %694 = vst [vmem:[#allocation4 + $0xd8] sm:$0xff] %v659
    %695 = vst [vmem:[#allocation4 + $0xe0] sm:$0xff] %v550
    %696 = vst [vmem:[#allocation4 + $0xe8] sm:$0xff] %v552
    %697 = vst [vmem:[#allocation4 + $0xf0] sm:$0xff] %v663
    %698 = vst [vmem:[#allocation4 + $0xf8] sm:$0xff] %v665
    %v699 = vld [vmem:[#allocation5] sm:$0xff]
    %v700 = vld [vmem:[#allocation5 + $0x8] sm:$0xff]
    %v701 = vld [vmem:[#allocation5 + $0x10] sm:$0xff]
    %v702 = vld [vmem:[#allocation5 + $0x18] sm:$0xff]
    %v703 = vld [vmem:[#allocation5 + $0x20] sm:$0xff]
    %v704 = vld [vmem:[#allocation5 + $0x28] sm:$0xff]
    %v705 = vld [vmem:[#allocation5 + $0x30] sm:$0xff]
    %v706 = vld [vmem:[#allocation5 + $0x38] sm:$0xff]
    %v707 = vld [vmem:[#allocation5 + $0x40] sm:$0xff]
    %v708 = vld [vmem:[#allocation5 + $0x48] sm:$0xff]
    %v709 = vld [vmem:[#allocation5 + $0x50] sm:$0xff]
    %v710 = vld [vmem:[#allocation5 + $0x58] sm:$0xff]
    %v711 = vld [vmem:[#allocation5 + $0x60] sm:$0xff]
    %v712 = vld [vmem:[#allocation5 + $0x68] sm:$0xff]
    %v713 = vld [vmem:[#allocation5 + $0x70] sm:$0xff]
    %v714 = vld [vmem:[#allocation5 + $0x78] sm:$0xff]
    %v715 = vld [vmem:[#allocation5 + $0x80] sm:$0xff]
    %v716 = vld [vmem:[#allocation5 + $0x88] sm:$0xff]
    %v717 = vld [vmem:[#allocation5 + $0x90] sm:$0xff]
    %v718 = vld [vmem:[#allocation5 + $0x98] sm:$0xff]
    %v719 = vld [vmem:[#allocation5 + $0xa0] sm:$0xff]
    %v720 = vld [vmem:[#allocation5 + $0xa8] sm:$0xff]
    %v721 = vld [vmem:[#allocation5 + $0xb0] sm:$0xff]
    %v722 = vld [vmem:[#allocation5 + $0xb8] sm:$0xff]
    %v723 = vld [vmem:[#allocation5 + $0xc0] sm:$0xff]
    %v724 = vld [vmem:[#allocation5 + $0xc8] sm:$0xff]
    %v725 = vld [vmem:[#allocation5 + $0xd0] sm:$0xff]
    %v726 = vld [vmem:[#allocation5 + $0xd8] sm:$0xff]
    %v727 = vld [vmem:[#allocation5 + $0xe0] sm:$0xff]
    %v728 = vld [vmem:[#allocation5 + $0xe8] sm:$0xff]
    %v729 = vld [vmem:[#allocation5 + $0xf0] sm:$0xff]
    %v730 = vld [vmem:[#allocation5 + $0xf8] sm:$0xff]
    %v731 = vld [vmem:[#allocation5 + $0x100] sm:$0xff]
    %v732 = vld [vmem:[#allocation5 + $0x108] sm:$0xff]
    %v733 = vld [vmem:[#allocation5 + $0x110] sm:$0xff]
    %v734 = vld [vmem:[#allocation5 + $0x118] sm:$0xff]
    %v735 = vld [vmem:[#allocation5 + $0x120] sm:$0xff]
    %v736 = vld [vmem:[#allocation5 + $0x128] sm:$0xff]
    %v737 = vld [vmem:[#allocation5 + $0x130] sm:$0xff]
    %v738 = vld [vmem:[#allocation5 + $0x138] sm:$0xff]
    %v739 = vld [vmem:[#allocation5 + $0x140] sm:$0xff]
    %v740 = vld [vmem:[#allocation5 + $0x148] sm:$0xff]
    %v741 = vld [vmem:[#allocation5 + $0x150] sm:$0xff]
    %v742 = vld [vmem:[#allocation5 + $0x158] sm:$0xff]
    %v743 = vld [vmem:[#allocation5 + $0x160] sm:$0xff]
    %v744 = vld [vmem:[#allocation5 + $0x168] sm:$0xff]
    %v745 = vld [vmem:[#allocation5 + $0x170] sm:$0xff]
    %v746 = vld [vmem:[#allocation5 + $0x178] sm:$0xff]
    %v747 = vld [vmem:[#allocation5 + $0x180] sm:$0xff]
    %v748 = vld [vmem:[#allocation5 + $0x188] sm:$0xff]
    %v749 = vld [vmem:[#allocation5 + $0x190] sm:$0xff]
    %v750 = vld [vmem:[#allocation5 + $0x198] sm:$0xff]
    %v751 = vld [vmem:[#allocation5 + $0x1a0] sm:$0xff]
    %v752 = vld [vmem:[#allocation5 + $0x1a8] sm:$0xff]
    %v753 = vld [vmem:[#allocation5 + $0x1b0] sm:$0xff]
    %v754 = vld [vmem:[#allocation5 + $0x1b8] sm:$0xff]
    %v755 = vld [vmem:[#allocation5 + $0x1c0] sm:$0xff]
    %v756 = vld [vmem:[#allocation5 + $0x1c8] sm:$0xff]
    %v757 = vld [vmem:[#allocation5 + $0x1d0] sm:$0xff]
    %v758 = vld [vmem:[#allocation5 + $0x1d8] sm:$0xff]
    %v759 = vld [vmem:[#allocation5 + $0x1e0] sm:$0xff]
    %v760 = vld [vmem:[#allocation5 + $0x1e8] sm:$0xff]
    %v761 = vld [vmem:[#allocation5 + $0x1f0] sm:$0xff]
    %v762 = vld [vmem:[#allocation5 + $0x1f8] sm:$0xff]
    %s763 = scalar_lea.vmem [#allocation5], 512
    %v764 = vld [vmem:[%s763] sm:$0xff]
    %v765 = vld [vmem:[%s763 + $0x8] sm:$0xff]
    %v766 = vld [vmem:[%s763 + $0x10] sm:$0xff]
    %v767 = vld [vmem:[%s763 + $0x18] sm:$0xff]
    %v768 = vld [vmem:[%s763 + $0x20] sm:$0xff]
    %v769 = vld [vmem:[%s763 + $0x28] sm:$0xff]
    %v770 = vld [vmem:[%s763 + $0x30] sm:$0xff]
    %v771 = vld [vmem:[%s763 + $0x38] sm:$0xff]
    %v772 = vld [vmem:[%s763 + $0x40] sm:$0xff]
    %v773 = vld [vmem:[%s763 + $0x48] sm:$0xff]
    %v774 = vld [vmem:[%s763 + $0x50] sm:$0xff]
    %v775 = vld [vmem:[%s763 + $0x58] sm:$0xff]
    %v776 = vld [vmem:[%s763 + $0x60] sm:$0xff]
    %v777 = vld [vmem:[%s763 + $0x68] sm:$0xff]
    %v778 = vld [vmem:[%s763 + $0x70] sm:$0xff]
    %v779 = vld [vmem:[%s763 + $0x78] sm:$0xff]
    %v780 = vld [vmem:[%s763 + $0x80] sm:$0xff]
    %v781 = vld [vmem:[%s763 + $0x88] sm:$0xff]
    %v782 = vld [vmem:[%s763 + $0x90] sm:$0xff]
    %v783 = vld [vmem:[%s763 + $0x98] sm:$0xff]
    %v784 = vld [vmem:[%s763 + $0xa0] sm:$0xff]
    %v785 = vld [vmem:[%s763 + $0xa8] sm:$0xff]
    %v786 = vld [vmem:[%s763 + $0xb0] sm:$0xff]
    %v787 = vld [vmem:[%s763 + $0xb8] sm:$0xff]
    %v788 = vld [vmem:[%s763 + $0xc0] sm:$0xff]
    %v789 = vld [vmem:[%s763 + $0xc8] sm:$0xff]
    %v790 = vld [vmem:[%s763 + $0xd0] sm:$0xff]
    %v791 = vld [vmem:[%s763 + $0xd8] sm:$0xff]
    %v792 = vld [vmem:[%s763 + $0xe0] sm:$0xff]
    %v793 = vld [vmem:[%s763 + $0xe8] sm:$0xff]
    %v794 = vld [vmem:[%s763 + $0xf0] sm:$0xff]
    %v795 = vld [vmem:[%s763 + $0xf8] sm:$0xff]
    %v796 = vld [vmem:[%s763 + $0x100] sm:$0xff]
    %v797 = vld [vmem:[%s763 + $0x108] sm:$0xff]
    %v798 = vld [vmem:[%s763 + $0x110] sm:$0xff]
    %v799 = vld [vmem:[%s763 + $0x118] sm:$0xff]
    %v800 = vld [vmem:[%s763 + $0x120] sm:$0xff]
    %v801 = vld [vmem:[%s763 + $0x128] sm:$0xff]
    %v802 = vld [vmem:[%s763 + $0x130] sm:$0xff]
    %v803 = vld [vmem:[%s763 + $0x138] sm:$0xff]
    %v804 = vld [vmem:[%s763 + $0x140] sm:$0xff]
    %v805 = vld [vmem:[%s763 + $0x148] sm:$0xff]
    %v806 = vld [vmem:[%s763 + $0x150] sm:$0xff]
    %v807 = vld [vmem:[%s763 + $0x158] sm:$0xff]
    %v808 = vld [vmem:[%s763 + $0x160] sm:$0xff]
    %v809 = vld [vmem:[%s763 + $0x168] sm:$0xff]
    %v810 = vld [vmem:[%s763 + $0x170] sm:$0xff]
    %v811 = vld [vmem:[%s763 + $0x178] sm:$0xff]
    %v812 = vld [vmem:[%s763 + $0x180] sm:$0xff]
    %v813 = vld [vmem:[%s763 + $0x188] sm:$0xff]
    %v814 = vld [vmem:[%s763 + $0x190] sm:$0xff]
    %v815 = vld [vmem:[%s763 + $0x198] sm:$0xff]
    %v816 = vld [vmem:[%s763 + $0x1a0] sm:$0xff]
    %v817 = vld [vmem:[%s763 + $0x1a8] sm:$0xff]
    %v818 = vld [vmem:[%s763 + $0x1b0] sm:$0xff]
    %v819 = vld [vmem:[%s763 + $0x1b8] sm:$0xff]
    %v820 = vld [vmem:[%s763 + $0x1c0] sm:$0xff]
    %v821 = vld [vmem:[%s763 + $0x1c8] sm:$0xff]
    %v822 = vld [vmem:[%s763 + $0x1d0] sm:$0xff]
    %v823 = vld [vmem:[%s763 + $0x1d8] sm:$0xff]
    %v824 = vld [vmem:[%s763 + $0x1e0] sm:$0xff]
    %v825 = vld [vmem:[%s763 + $0x1e8] sm:$0xff]
    %v826 = vld [vmem:[%s763 + $0x1f0] sm:$0xff]
    %v827 = vld [vmem:[%s763 + $0x1f8] sm:$0xff]
    %v828 = vld [vmem:[#allocation2] sm:$0xff]
    %v829 = vld [vmem:[#allocation11] sm:$0xff]
    %v830 = vld [vmem:[#allocation2 + $0x8] sm:$0xff]
    %v831 = vld [vmem:[#allocation11 + $0x8] sm:$0xff]
    %v832 = vld [vmem:[#allocation3] sm:$0xff]
    %v833 = vld [vmem:[#allocation3 + $0x8] sm:$0xff]
    %v834 = vld [vmem:[#allocation3 + $0x10] sm:$0xff]
    %v835 = vld [vmem:[#allocation3 + $0x18] sm:$0xff]
    %836 = vmatprep.subr.mxu0 %v700
    %837 = vmatpush1.msra.mxu0 %v699
    %838 = vmatprep.subr.mxu0 %v704
    %839 = vmatpush1.msra.mxu0 %v703
    %840 = vmatprep.subr.mxu0 %v708
    %841 = vmatpush1.msra.mxu0 %v707
    %842 = vmatprep.subr.mxu0 %v712
    %843 = vmatpush1.msra.mxu0 %v711
    %844 = vmatprep.subr.mxu0 %v716
    %845 = vmatpush1.msra.mxu0 %v715
    %846 = vmatprep.subr.mxu0 %v720
    %847 = vmatpush1.msra.mxu0 %v719
    %848 = vmatprep.subr.mxu0 %v724
    %849 = vmatpush1.msra.mxu0 %v723
    %850 = vmatprep.subr.mxu0 %v728
    %851 = vmatpush1.msra.mxu0 %v727
    %852 = vmatprep.subr.mxu0 %v732
    %853 = vmatpush1.msra.mxu0 %v731
    %854 = vmatprep.subr.mxu0 %v736
    %855 = vmatpush1.msra.mxu0 %v735
    %856 = vmatprep.subr.mxu0 %v740
    %857 = vmatpush1.msra.mxu0 %v739
    %858 = vmatprep.subr.mxu0 %v744
    %859 = vmatpush1.msra.mxu0 %v743
    %860 = vmatprep.subr.mxu0 %v748
    %861 = vmatpush1.msra.mxu0 %v747
    %862 = vmatprep.subr.mxu0 %v752
    %863 = vmatpush1.msra.mxu0 %v751
    %864 = vmatprep.subr.mxu0 %v756
    %865 = vmatpush1.msra.mxu0 %v755
    %866 = vmatprep.subr.mxu0 %v760
    %867 = vmatpush1.msra.mxu0 %v759
    %868 = vmatprep.subr.mxu0 0.0
    %869 = vmatpush1.msra.mxu0 0.0
    %870 = vmatprep.subr.mxu0 0.0
    %871 = vmatpush1.msra.mxu0 0.0
    %872 = vmatprep.subr.mxu0 0.0
    %873 = vmatpush1.msra.mxu0 0.0
    %874 = vmatprep.subr.mxu0 0.0
    %875 = vmatpush1.msra.mxu0 0.0
    %876 = vmatprep.subr.mxu0 0.0
    %877 = vmatpush1.msra.mxu0 0.0
    %878 = vmatprep.subr.mxu0 0.0
    %879 = vmatpush1.msra.mxu0 0.0
    %880 = vmatprep.subr.mxu0 0.0
    %881 = vmatpush1.msra.mxu0 0.0
    %882 = vmatprep.subr.mxu0 0.0
    %883 = vmatpush1.msra.mxu0 0.0
    %884 = vmatprep.subr.mxu0 0.0
    %885 = vmatpush1.msra.mxu0 0.0
    %886 = vmatprep.subr.mxu0 0.0
    %887 = vmatpush1.msra.mxu0 0.0
    %888 = vmatprep.subr.mxu0 0.0
    %889 = vmatpush1.msra.mxu0 0.0
    %890 = vmatprep.subr.mxu0 0.0
    %891 = vmatpush1.msra.mxu0 0.0
    %892 = vmatprep.subr.mxu0 0.0
    %893 = vmatpush1.msra.mxu0 0.0
    %894 = vmatprep.subr.mxu0 0.0
    %895 = vmatpush1.msra.mxu0 0.0
    %896 = vmatprep.subr.mxu0 0.0
    %897 = vmatpush1.msra.mxu0 0.0
    %898 = vmatprep.subr.mxu0 0.0
    %899 = vmatpush1.msra.mxu0 0.0
    %900 = vmatprep.mubr.f32.mxu0 0.0
    %901 = vmatmul.mubr.f32.gmra.mrb[0].mxu0 %v828
    %v902 = vpop.f32.mrb[0].mxu0
    %v903 = vadd.f32 0.0, %v902
    %v904 = vpop.f32.mrb[0].mxu0
    %v905 = vadd.f32 0.0, %v904
    %906 = vdwg.mxu0
    %907 = vmatprep.subr.mxu0 %v702
    %908 = vmatpush1.msra.mxu0 %v701
    %909 = vmatprep.subr.mxu0 %v706
    %910 = vmatpush1.msra.mxu0 %v705
    %911 = vmatprep.subr.mxu0 %v710
    %912 = vmatpush1.msra.mxu0 %v709
    %913 = vmatprep.subr.mxu0 %v714
    %914 = vmatpush1.msra.mxu0 %v713
    %915 = vmatprep.subr.mxu0 %v718
    %916 = vmatpush1.msra.mxu0 %v717
    %917 = vmatprep.subr.mxu0 %v722
    %918 = vmatpush1.msra.mxu0 %v721
    %919 = vmatprep.subr.mxu0 %v726
    %920 = vmatpush1.msra.mxu0 %v725
    %921 = vmatprep.subr.mxu0 %v730
    %922 = vmatpush1.msra.mxu0 %v729
    %923 = vmatprep.subr.mxu0 %v734
    %924 = vmatpush1.msra.mxu0 %v733
    %925 = vmatprep.subr.mxu0 %v738
    %926 = vmatpush1.msra.mxu0 %v737
    %927 = vmatprep.subr.mxu0 %v742
    %928 = vmatpush1.msra.mxu0 %v741
    %929 = vmatprep.subr.mxu0 %v746
    %930 = vmatpush1.msra.mxu0 %v745
    %931 = vmatprep.subr.mxu0 %v750
    %932 = vmatpush1.msra.mxu0 %v749
    %933 = vmatprep.subr.mxu0 %v754
    %934 = vmatpush1.msra.mxu0 %v753
    %935 = vmatprep.subr.mxu0 %v758
    %936 = vmatpush1.msra.mxu0 %v757
    %937 = vmatprep.subr.mxu0 %v762
    %938 = vmatpush1.msra.mxu0 %v761
    %939 = vmatprep.subr.mxu0 0.0
    %940 = vmatpush1.msra.mxu0 0.0
    %941 = vmatprep.subr.mxu0 0.0
    %942 = vmatpush1.msra.mxu0 0.0
    %943 = vmatprep.subr.mxu0 0.0
    %944 = vmatpush1.msra.mxu0 0.0
    %945 = vmatprep.subr.mxu0 0.0
    %946 = vmatpush1.msra.mxu0 0.0
    %947 = vmatprep.subr.mxu0 0.0
    %948 = vmatpush1.msra.mxu0 0.0
    %949 = vmatprep.subr.mxu0 0.0
    %950 = vmatpush1.msra.mxu0 0.0
    %951 = vmatprep.subr.mxu0 0.0
    %952 = vmatpush1.msra.mxu0 0.0
    %953 = vmatprep.subr.mxu0 0.0
    %954 = vmatpush1.msra.mxu0 0.0
    %955 = vmatprep.subr.mxu0 0.0
    %956 = vmatpush1.msra.mxu0 0.0
    %957 = vmatprep.subr.mxu0 0.0
    %958 = vmatpush1.msra.mxu0 0.0
    %959 = vmatprep.subr.mxu0 0.0
    %960 = vmatpush1.msra.mxu0 0.0
    %961 = vmatprep.subr.mxu0 0.0
    %962 = vmatpush1.msra.mxu0 0.0
    %963 = vmatprep.subr.mxu0 0.0
    %964 = vmatpush1.msra.mxu0 0.0
    %965 = vmatprep.subr.mxu0 0.0
    %966 = vmatpush1.msra.mxu0 0.0
    %967 = vmatprep.subr.mxu0 0.0
    %968 = vmatpush1.msra.mxu0 0.0
    %969 = vmatprep.subr.mxu0 0.0
    %970 = vmatpush1.msra.mxu0 0.0
    %971 = vmatprep.mubr.f32.mxu0 0.0
    %972 = vmatmul.mubr.f32.gmra.mrb[0].mxu0 %v828
    %v973 = vpop.f32.mrb[0].mxu0
    %v974 = vadd.f32 0.0, %v973
    %v975 = vpop.f32.mrb[0].mxu0
    %v976 = vadd.f32 0.0, %v975
    %977 = vdwg.mxu0
    %v978 = vadd.f32 %v832, %v903
    %v979 = vadd.f32 %v833, %v905
    %v980 = vadd.f32 %v834, %v974
    %v981 = vadd.f32 %v835, %v976
    %v982 = vxor.u32 %v978, 2147483648
    %v983 = vmul.f32 %v982, 1.442695
    %v984 = vpow.pop %v983
    %v985 = vadd.f32 %v984, 1.0
    %v986 = vrcp.pop %v985
    %v987 = vmul.f32 1.0, %v986
    %v988 = vxor.u32 %v979, 2147483648
    %v989 = vmul.f32 %v988, 1.442695
    %v990 = vpow.pop %v989
    %v991 = vadd.f32 %v990, 1.0
    %v992 = vrcp.pop %v991
    %v993 = vmul.f32 1.0, %v992
    %v994 = vtanh.pop %v980
    %v995 = vxor.u32 %v981, 2147483648
    %v996 = vmul.f32 %v995, 1.442695
    %v997 = vpow.pop %v996
    %v998 = vadd.f32 %v997, 1.0
    %v999 = vrcp.pop %v998
    %v1000 = vmul.f32 1.0, %v999
    %v1001 = vmul.f32 %v993, %v829
    %v1002 = vmul.f32 %v987, %v994
    %v1003 = vadd.f32 %v1001, %v1002
    %v1004 = vtanh.pop %v1003
    %v1005 = vmul.f32 %v1000, %v1004
    %1006 = vst [vmem:[#allocation8] sm:$0xff] %v1005
    %s1007 = scalar_lea.vmem [#allocation4], 224
    %v1008 = vld [vmem:[%s1007] sm:$0xff]
    %v1009 = vld [vmem:[%s1007 + $0x8] sm:$0xff]
    %v1010 = vld [vmem:[%s1007 + $0x10] sm:$0xff]
    %v1011 = vld [vmem:[%s1007 + $0x18] sm:$0xff]
    %1012 = vmatprep.subr.mxu0 %v765
    %1013 = vmatpush1.msra.mxu0 %v764
    %1014 = vmatprep.subr.mxu0 %v769
    %1015 = vmatpush1.msra.mxu0 %v768
    %1016 = vmatprep.subr.mxu0 %v773
    %1017 = vmatpush1.msra.mxu0 %v772
    %1018 = vmatprep.subr.mxu0 %v777
    %1019 = vmatpush1.msra.mxu0 %v776
    %1020 = vmatprep.subr.mxu0 %v781
    %1021 = vmatpush1.msra.mxu0 %v780
    %1022 = vmatprep.subr.mxu0 %v785
    %1023 = vmatpush1.msra.mxu0 %v784
    %1024 = vmatprep.subr.mxu0 %v789
    %1025 = vmatpush1.msra.mxu0 %v788
    %1026 = vmatprep.subr.mxu0 %v793
    %1027 = vmatpush1.msra.mxu0 %v792
    %1028 = vmatprep.subr.mxu0 %v797
    %1029 = vmatpush1.msra.mxu0 %v796
    %1030 = vmatprep.subr.mxu0 %v801
    %1031 = vmatpush1.msra.mxu0 %v800
    %1032 = vmatprep.subr.mxu0 %v805
    %1033 = vmatpush1.msra.mxu0 %v804
    %1034 = vmatprep.subr.mxu0 %v809
    %1035 = vmatpush1.msra.mxu0 %v808
    %1036 = vmatprep.subr.mxu0 %v813
    %1037 = vmatpush1.msra.mxu0 %v812
    %1038 = vmatprep.subr.mxu0 %v817
    %1039 = vmatpush1.msra.mxu0 %v816
    %1040 = vmatprep.subr.mxu0 %v821
    %1041 = vmatpush1.msra.mxu0 %v820
    %1042 = vmatprep.subr.mxu0 %v825
    %1043 = vmatpush1.msra.mxu0 %v824
    %1044 = vmatprep.subr.mxu0 0.0
    %1045 = vmatpush1.msra.mxu0 0.0
    %1046 = vmatprep.subr.mxu0 0.0
    %1047 = vmatpush1.msra.mxu0 0.0
    %1048 = vmatprep.subr.mxu0 0.0
    %1049 = vmatpush1.msra.mxu0 0.0
    %1050 = vmatprep.subr.mxu0 0.0
    %1051 = vmatpush1.msra.mxu0 0.0
    %1052 = vmatprep.subr.mxu0 0.0
    %1053 = vmatpush1.msra.mxu0 0.0
    %1054 = vmatprep.subr.mxu0 0.0
    %1055 = vmatpush1.msra.mxu0 0.0
    %1056 = vmatprep.subr.mxu0 0.0
    %1057 = vmatpush1.msra.mxu0 0.0
    %1058 = vmatprep.subr.mxu0 0.0
    %1059 = vmatpush1.msra.mxu0 0.0
    %1060 = vmatprep.subr.mxu0 0.0
    %1061 = vmatpush1.msra.mxu0 0.0
    %1062 = vmatprep.subr.mxu0 0.0
    %1063 = vmatpush1.msra.mxu0 0.0
    %1064 = vmatprep.subr.mxu0 0.0
    %1065 = vmatpush1.msra.mxu0 0.0
    %1066 = vmatprep.subr.mxu0 0.0
    %1067 = vmatpush1.msra.mxu0 0.0
    %1068 = vmatprep.subr.mxu0 0.0
    %1069 = vmatpush1.msra.mxu0 0.0
    %1070 = vmatprep.subr.mxu0 0.0
    %1071 = vmatpush1.msra.mxu0 0.0
    %1072 = vmatprep.subr.mxu0 0.0
    %1073 = vmatpush1.msra.mxu0 0.0
    %1074 = vmatprep.subr.mxu0 0.0
    %1075 = vmatpush1.msra.mxu0 0.0
    %1076 = vmatprep.mubr.f32.mxu0 0.0
    %1077 = vmatmul.mubr.f32.gmra.mrb[0].mxu0 %v830
    %v1078 = vpop.f32.mrb[0].mxu0
    %v1079 = vadd.f32 0.0, %v1078
    %v1080 = vpop.f32.mrb[0].mxu0
    %v1081 = vadd.f32 0.0, %v1080
    %1082 = vdwg.mxu0
    %1083 = vmatprep.subr.mxu0 %v767
    %1084 = vmatpush1.msra.mxu0 %v766
    %1085 = vmatprep.subr.mxu0 %v771
    %1086 = vmatpush1.msra.mxu0 %v770
    %1087 = vmatprep.subr.mxu0 %v775
    %1088 = vmatpush1.msra.mxu0 %v774
    %1089 = vmatprep.subr.mxu0 %v779
    %1090 = vmatpush1.msra.mxu0 %v778
    %1091 = vmatprep.subr.mxu0 %v783
    %1092 = vmatpush1.msra.mxu0 %v782
    %1093 = vmatprep.subr.mxu0 %v787
    %1094 = vmatpush1.msra.mxu0 %v786
    %1095 = vmatprep.subr.mxu0 %v791
    %1096 = vmatpush1.msra.mxu0 %v790
    %1097 = vmatprep.subr.mxu0 %v795
    %1098 = vmatpush1.msra.mxu0 %v794
    %1099 = vmatprep.subr.mxu0 %v799
    %1100 = vmatpush1.msra.mxu0 %v798
    %1101 = vmatprep.subr.mxu0 %v803
    %1102 = vmatpush1.msra.mxu0 %v802
    %1103 = vmatprep.subr.mxu0 %v807
    %1104 = vmatpush1.msra.mxu0 %v806
    %1105 = vmatprep.subr.mxu0 %v811
    %1106 = vmatpush1.msra.mxu0 %v810
    %1107 = vmatprep.subr.mxu0 %v815
    %1108 = vmatpush1.msra.mxu0 %v814
    %1109 = vmatprep.subr.mxu0 %v819
    %1110 = vmatpush1.msra.mxu0 %v818
    %1111 = vmatprep.subr.mxu0 %v823
    %1112 = vmatpush1.msra.mxu0 %v822
    %1113 = vmatprep.subr.mxu0 %v827
    %1114 = vmatpush1.msra.mxu0 %v826
    %1115 = vmatprep.subr.mxu0 0.0
    %1116 = vmatpush1.msra.mxu0 0.0
    %1117 = vmatprep.subr.mxu0 0.0
    %1118 = vmatpush1.msra.mxu0 0.0
    %1119 = vmatprep.subr.mxu0 0.0
    %1120 = vmatpush1.msra.mxu0 0.0
    %1121 = vmatprep.subr.mxu0 0.0
    %1122 = vmatpush1.msra.mxu0 0.0
    %1123 = vmatprep.subr.mxu0 0.0
    %1124 = vmatpush1.msra.mxu0 0.0
    %1125 = vmatprep.subr.mxu0 0.0
    %1126 = vmatpush1.msra.mxu0 0.0
    %1127 = vmatprep.subr.mxu0 0.0
    %1128 = vmatpush1.msra.mxu0 0.0
    %1129 = vmatprep.subr.mxu0 0.0
    %1130 = vmatpush1.msra.mxu0 0.0
    %1131 = vmatprep.subr.mxu0 0.0
    %1132 = vmatpush1.msra.mxu0 0.0
    %1133 = vmatprep.subr.mxu0 0.0
    %1134 = vmatpush1.msra.mxu0 0.0
    %1135 = vmatprep.subr.mxu0 0.0
    %1136 = vmatpush1.msra.mxu0 0.0
    %1137 = vmatprep.subr.mxu0 0.0
    %1138 = vmatpush1.msra.mxu0 0.0
    %1139 = vmatprep.subr.mxu0 0.0
    %1140 = vmatpush1.msra.mxu0 0.0
    %1141 = vmatprep.subr.mxu0 0.0
    %1142 = vmatpush1.msra.mxu0 0.0
    %1143 = vmatprep.subr.mxu0 0.0
    %1144 = vmatpush1.msra.mxu0 0.0
    %1145 = vmatprep.subr.mxu0 0.0
    %1146 = vmatpush1.msra.mxu0 0.0
    %1147 = vmatprep.mubr.f32.mxu0 0.0
    %1148 = vmatmul.mubr.f32.gmra.mrb[0].mxu0 %v830
    %v1149 = vpop.f32.mrb[0].mxu0
    %v1150 = vadd.f32 0.0, %v1149
    %v1151 = vpop.f32.mrb[0].mxu0
    %v1152 = vadd.f32 0.0, %v1151
    %1153 = vdwg.mxu0
    %v1154 = vadd.f32 %v1008, %v1079
    %v1155 = vadd.f32 %v1009, %v1081
    %v1156 = vadd.f32 %v1010, %v1150
    %v1157 = vadd.f32 %v1011, %v1152
    %v1158 = vxor.u32 %v1154, 2147483648
    %v1159 = vmul.f32 %v1158, 1.442695
    %v1160 = vpow.pop %v1159
    %v1161 = vadd.f32 %v1160, 1.0
    %v1162 = vrcp.pop %v1161
    %v1163 = vmul.f32 1.0, %v1162
    %v1164 = vxor.u32 %v1155, 2147483648
    %v1165 = vmul.f32 %v1164, 1.442695
    %v1166 = vpow.pop %v1165
    %v1167 = vadd.f32 %v1166, 1.0
    %v1168 = vrcp.pop %v1167
    %v1169 = vmul.f32 1.0, %v1168
    %v1170 = vtanh.pop %v1156
    %v1171 = vxor.u32 %v1157, 2147483648
    %v1172 = vmul.f32 %v1171, 1.442695
    %v1173 = vpow.pop %v1172
    %v1174 = vadd.f32 %v1173, 1.0
    %v1175 = vrcp.pop %v1174
    %v1176 = vmul.f32 1.0, %v1175
    %v1177 = vmul.f32 %v1169, %v831
    %v1178 = vmul.f32 %v1163, %v1170
    %v1179 = vadd.f32 %v1177, %v1178
    %v1180 = vtanh.pop %v1179
    %v1181 = vmul.f32 %v1176, %v1180
    %s1182 = scalar_lea.vmem [#allocation9], 56
    %1183 = vst [vmem:[%s1182] sm:$0xff] %v1181
    %s1184 = scalar_lea.vmem [#allocation3], 32
    %v1185 = vld [vmem:[%s1184] sm:$0xff]
    %v1186 = vld [vmem:[%s1184 + $0x8] sm:$0xff]
    %v1187 = vld [vmem:[%s1184 + $0x10] sm:$0xff]
    %v1188 = vld [vmem:[%s1184 + $0x18] sm:$0xff]
    %1189 = vmatprep.subr.mxu0 %v700
    %1190 = vmatpush1.msra.mxu0 %v699
    %1191 = vmatprep.subr.mxu0 %v704
    %1192 = vmatpush1.msra.mxu0 %v703
    %1193 = vmatprep.subr.mxu0 %v708
    %1194 = vmatpush1.msra.mxu0 %v707
    %1195 = vmatprep.subr.mxu0 %v712
    %1196 = vmatpush1.msra.mxu0 %v711
    %1197 = vmatprep.subr.mxu0 %v716
    %1198 = vmatpush1.msra.mxu0 %v715
    %1199 = vmatprep.subr.mxu0 %v720
    %1200 = vmatpush1.msra.mxu0 %v719
    %1201 = vmatprep.subr.mxu0 %v724
    %1202 = vmatpush1.msra.mxu0 %v723
    %1203 = vmatprep.subr.mxu0 %v728
    %1204 = vmatpush1.msra.mxu0 %v727
    %1205 = vmatprep.subr.mxu0 %v732
    %1206 = vmatpush1.msra.mxu0 %v731
    %1207 = vmatprep.subr.mxu0 %v736
    %1208 = vmatpush1.msra.mxu0 %v735
    %1209 = vmatprep.subr.mxu0 %v740
    %1210 = vmatpush1.msra.mxu0 %v739
    %1211 = vmatprep.subr.mxu0 %v744
    %1212 = vmatpush1.msra.mxu0 %v743
    %1213 = vmatprep.subr.mxu0 %v748
    %1214 = vmatpush1.msra.mxu0 %v747
    %1215 = vmatprep.subr.mxu0 %v752
    %1216 = vmatpush1.msra.mxu0 %v751
    %1217 = vmatprep.subr.mxu0 %v756
    %1218 = vmatpush1.msra.mxu0 %v755
    %1219 = vmatprep.subr.mxu0 %v760
    %1220 = vmatpush1.msra.mxu0 %v759
    %1221 = vmatprep.subr.mxu0 0.0
    %1222 = vmatpush1.msra.mxu0 0.0
    %1223 = vmatprep.subr.mxu0 0.0
    %1224 = vmatpush1.msra.mxu0 0.0
    %1225 = vmatprep.subr.mxu0 0.0
    %1226 = vmatpush1.msra.mxu0 0.0
    %1227 = vmatprep.subr.mxu0 0.0
    %1228 = vmatpush1.msra.mxu0 0.0
    %1229 = vmatprep.subr.mxu0 0.0
    %1230 = vmatpush1.msra.mxu0 0.0
    %1231 = vmatprep.subr.mxu0 0.0
    %1232 = vmatpush1.msra.mxu0 0.0
    %1233 = vmatprep.subr.mxu0 0.0
    %1234 = vmatpush1.msra.mxu0 0.0
    %1235 = vmatprep.subr.mxu0 0.0
    %1236 = vmatpush1.msra.mxu0 0.0
    %1237 = vmatprep.subr.mxu0 0.0
    %1238 = vmatpush1.msra.mxu0 0.0
    %1239 = vmatprep.subr.mxu0 0.0
    %1240 = vmatpush1.msra.mxu0 0.0
    %1241 = vmatprep.subr.mxu0 0.0
    %1242 = vmatpush1.msra.mxu0 0.0
    %1243 = vmatprep.subr.mxu0 0.0
    %1244 = vmatpush1.msra.mxu0 0.0
    %1245 = vmatprep.subr.mxu0 0.0
    %1246 = vmatpush1.msra.mxu0 0.0
    %1247 = vmatprep.subr.mxu0 0.0
    %1248 = vmatpush1.msra.mxu0 0.0
    %1249 = vmatprep.subr.mxu0 0.0
    %1250 = vmatpush1.msra.mxu0 0.0
    %1251 = vmatprep.subr.mxu0 0.0
    %1252 = vmatpush1.msra.mxu0 0.0
    %1253 = vmatprep.mubr.f32.mxu0 0.0
    %1254 = vmatmul.mubr.f32.gmra.mrb[0].mxu0 %v1005
    %v1255 = vpop.f32.mrb[0].mxu0
    %v1256 = vadd.f32 0.0, %v1255
    %v1257 = vpop.f32.mrb[0].mxu0
    %v1258 = vadd.f32 0.0, %v1257
    %1259 = vdwg.mxu0
    %1260 = vmatprep.subr.mxu0 %v702
    %1261 = vmatpush1.msra.mxu0 %v701
    %1262 = vmatprep.subr.mxu0 %v706
    %1263 = vmatpush1.msra.mxu0 %v705
    %1264 = vmatprep.subr.mxu0 %v710
    %1265 = vmatpush1.msra.mxu0 %v709
    %1266 = vmatprep.subr.mxu0 %v714
    %1267 = vmatpush1.msra.mxu0 %v713
    %1268 = vmatprep.subr.mxu0 %v718
    %1269 = vmatpush1.msra.mxu0 %v717
    %1270 = vmatprep.subr.mxu0 %v722
    %1271 = vmatpush1.msra.mxu0 %v721
    %1272 = vmatprep.subr.mxu0 %v726
    %1273 = vmatpush1.msra.mxu0 %v725
    %1274 = vmatprep.subr.mxu0 %v730
    %1275 = vmatpush1.msra.mxu0 %v729
    %1276 = vmatprep.subr.mxu0 %v734
    %1277 = vmatpush1.msra.mxu0 %v733
    %1278 = vmatprep.subr.mxu0 %v738
    %1279 = vmatpush1.msra.mxu0 %v737
    %1280 = vmatprep.subr.mxu0 %v742
    %1281 = vmatpush1.msra.mxu0 %v741
    %1282 = vmatprep.subr.mxu0 %v746
    %1283 = vmatpush1.msra.mxu0 %v745
    %1284 = vmatprep.subr.mxu0 %v750
    %1285 = vmatpush1.msra.mxu0 %v749
    %1286 = vmatprep.subr.mxu0 %v754
    %1287 = vmatpush1.msra.mxu0 %v753
    %1288 = vmatprep.subr.mxu0 %v758
    %1289 = vmatpush1.msra.mxu0 %v757
    %1290 = vmatprep.subr.mxu0 %v762
    %1291 = vmatpush1.msra.mxu0 %v761
    %1292 = vmatprep.subr.mxu0 0.0
    %1293 = vmatpush1.msra.mxu0 0.0
    %1294 = vmatprep.subr.mxu0 0.0
    %1295 = vmatpush1.msra.mxu0 0.0
    %1296 = vmatprep.subr.mxu0 0.0
    %1297 = vmatpush1.msra.mxu0 0.0
    %1298 = vmatprep.subr.mxu0 0.0
    %1299 = vmatpush1.msra.mxu0 0.0
    %1300 = vmatprep.subr.mxu0 0.0
    %1301 = vmatpush1.msra.mxu0 0.0
    %1302 = vmatprep.subr.mxu0 0.0
    %1303 = vmatpush1.msra.mxu0 0.0
    %1304 = vmatprep.subr.mxu0 0.0
    %1305 = vmatpush1.msra.mxu0 0.0
    %1306 = vmatprep.subr.mxu0 0.0
    %1307 = vmatpush1.msra.mxu0 0.0
    %1308 = vmatprep.subr.mxu0 0.0
    %1309 = vmatpush1.msra.mxu0 0.0
    %1310 = vmatprep.subr.mxu0 0.0
    %1311 = vmatpush1.msra.mxu0 0.0
    %1312 = vmatprep.subr.mxu0 0.0
    %1313 = vmatpush1.msra.mxu0 0.0
    %1314 = vmatprep.subr.mxu0 0.0
    %1315 = vmatpush1.msra.mxu0 0.0
    %1316 = vmatprep.subr.mxu0 0.0
    %1317 = vmatpush1.msra.mxu0 0.0
    %1318 = vmatprep.subr.mxu0 0.0
    %1319 = vmatpush1.msra.mxu0 0.0
    %1320 = vmatprep.subr.mxu0 0.0
    %1321 = vmatpush1.msra.mxu0 0.0
    %1322 = vmatprep.subr.mxu0 0.0
    %1323 = vmatpush1.msra.mxu0 0.0
    %1324 = vmatprep.mubr.f32.mxu0 0.0
    %1325 = vmatmul.mubr.f32.gmra.mrb[0].mxu0 %v1005
    %v1326 = vpop.f32.mrb[0].mxu0
    %v1327 = vadd.f32 0.0, %v1326
    %v1328 = vpop.f32.mrb[0].mxu0
    %v1329 = vadd.f32 0.0, %v1328
    %1330 = vdwg.mxu0
    %v1331 = vadd.f32 %v1185, %v1256
    %v1332 = vadd.f32 %v1186, %v1258
    %v1333 = vadd.f32 %v1187, %v1327
    %v1334 = vadd.f32 %v1188, %v1329
    %v1335 = vxor.u32 %v1331, 2147483648
    %v1336 = vmul.f32 %v1335, 1.442695
    %v1337 = vpow.pop %v1336
    %v1338 = vadd.f32 %v1337, 1.0
    %v1339 = vrcp.pop %v1338
    %v1340 = vmul.f32 1.0, %v1339
    %v1341 = vxor.u32 %v1332, 2147483648
    %v1342 = vmul.f32 %v1341, 1.442695
    %v1343 = vpow.pop %v1342
    %v1344 = vadd.f32 %v1343, 1.0
    %v1345 = vrcp.pop %v1344
    %v1346 = vmul.f32 1.0, %v1345
    %v1347 = vtanh.pop %v1333
    %v1348 = vxor.u32 %v1334, 2147483648
    %v1349 = vmul.f32 %v1348, 1.442695
    %v1350 = vpow.pop %v1349
    %v1351 = vadd.f32 %v1350, 1.0
    %v1352 = vrcp.pop %v1351
    %v1353 = vmul.f32 1.0, %v1352
    %v1354 = vmul.f32 %v1346, %v1003
    %v1355 = vmul.f32 %v1340, %v1347
    %v1356 = vadd.f32 %v1354, %v1355
    %v1357 = vtanh.pop %v1356
    %v1358 = vmul.f32 %v1353, %v1357
    %s1359 = scalar_lea.vmem [#allocation8], 8
    %1360 = vst [vmem:[%s1359] sm:$0xff] %v1358
    %s1361 = scalar_lea.vmem [#allocation4], 192
    %v1362 = vld [vmem:[%s1361] sm:$0xff]
    %v1363 = vld [vmem:[%s1361 + $0x8] sm:$0xff]
    %v1364 = vld [vmem:[%s1361 + $0x10] sm:$0xff]
    %v1365 = vld [vmem:[%s1361 + $0x18] sm:$0xff]
    %1366 = vmatprep.subr.mxu0 %v765
    %1367 = vmatpush1.msra.mxu0 %v764
    %1368 = vmatprep.subr.mxu0 %v769
    %1369 = vmatpush1.msra.mxu0 %v768
    %1370 = vmatprep.subr.mxu0 %v773
    %1371 = vmatpush1.msra.mxu0 %v772
    %1372 = vmatprep.subr.mxu0 %v777
    %1373 = vmatpush1.msra.mxu0 %v776
    %1374 = vmatprep.subr.mxu0 %v781
    %1375 = vmatpush1.msra.mxu0 %v780
    %1376 = vmatprep.subr.mxu0 %v785
    %1377 = vmatpush1.msra.mxu0 %v784
    %1378 = vmatprep.subr.mxu0 %v789
    %1379 = vmatpush1.msra.mxu0 %v788
    %1380 = vmatprep.subr.mxu0 %v793
    %1381 = vmatpush1.msra.mxu0 %v792
    %1382 = vmatprep.subr.mxu0 %v797
    %1383 = vmatpush1.msra.mxu0 %v796
    %1384 = vmatprep.subr.mxu0 %v801
    %1385 = vmatpush1.msra.mxu0 %v800
    %1386 = vmatprep.subr.mxu0 %v805
    %1387 = vmatpush1.msra.mxu0 %v804
    %1388 = vmatprep.subr.mxu0 %v809
    %1389 = vmatpush1.msra.mxu0 %v808
    %1390 = vmatprep.subr.mxu0 %v813
    %1391 = vmatpush1.msra.mxu0 %v812
    %1392 = vmatprep.subr.mxu0 %v817
    %1393 = vmatpush1.msra.mxu0 %v816
    %1394 = vmatprep.subr.mxu0 %v821
    %1395 = vmatpush1.msra.mxu0 %v820
    %1396 = vmatprep.subr.mxu0 %v825
    %1397 = vmatpush1.msra.mxu0 %v824
    %1398 = vmatprep.subr.mxu0 0.0
    %1399 = vmatpush1.msra.mxu0 0.0
    %1400 = vmatprep.subr.mxu0 0.0
    %1401 = vmatpush1.msra.mxu0 0.0
    %1402 = vmatprep.subr.mxu0 0.0
    %1403 = vmatpush1.msra.mxu0 0.0
    %1404 = vmatprep.subr.mxu0 0.0
    %1405 = vmatpush1.msra.mxu0 0.0
    %1406 = vmatprep.subr.mxu0 0.0
    %1407 = vmatpush1.msra.mxu0 0.0
    %1408 = vmatprep.subr.mxu0 0.0
    %1409 = vmatpush1.msra.mxu0 0.0
    %1410 = vmatprep.subr.mxu0 0.0
    %1411 = vmatpush1.msra.mxu0 0.0
    %1412 = vmatprep.subr.mxu0 0.0
    %1413 = vmatpush1.msra.mxu0 0.0
    %1414 = vmatprep.subr.mxu0 0.0
    %1415 = vmatpush1.msra.mxu0 0.0
    %1416 = vmatprep.subr.mxu0 0.0
    %1417 = vmatpush1.msra.mxu0 0.0
    %1418 = vmatprep.subr.mxu0 0.0
    %1419 = vmatpush1.msra.mxu0 0.0
    %1420 = vmatprep.subr.mxu0 0.0
    %1421 = vmatpush1.msra.mxu0 0.0
    %1422 = vmatprep.subr.mxu0 0.0
    %1423 = vmatpush1.msra.mxu0 0.0
    %1424 = vmatprep.subr.mxu0 0.0
    %1425 = vmatpush1.msra.mxu0 0.0
    %1426 = vmatprep.subr.mxu0 0.0
    %1427 = vmatpush1.msra.mxu0 0.0
    %1428 = vmatprep.subr.mxu0 0.0
    %1429 = vmatpush1.msra.mxu0 0.0
    %1430 = vmatprep.mubr.f32.mxu0 0.0
    %1431 = vmatmul.mubr.f32.gmra.mrb[0].mxu0 %v1181
    %v1432 = vpop.f32.mrb[0].mxu0
    %v1433 = vadd.f32 0.0, %v1432
    %v1434 = vpop.f32.mrb[0].mxu0
    %v1435 = vadd.f32 0.0, %v1434
    %1436 = vdwg.mxu0
    %1437 = vmatprep.subr.mxu0 %v767
    %1438 = vmatpush1.msra.mxu0 %v766
    %1439 = vmatprep.subr.mxu0 %v771
    %1440 = vmatpush1.msra.mxu0 %v770
    %1441 = vmatprep.subr.mxu0 %v775
    %1442 = vmatpush1.msra.mxu0 %v774
    %1443 = vmatprep.subr.mxu0 %v779
    %1444 = vmatpush1.msra.mxu0 %v778
    %1445 = vmatprep.subr.mxu0 %v783
    %1446 = vmatpush1.msra.mxu0 %v782
    %1447 = vmatprep.subr.mxu0 %v787
    %1448 = vmatpush1.msra.mxu0 %v786
    %1449 = vmatprep.subr.mxu0 %v791
    %1450 = vmatpush1.msra.mxu0 %v790
    %1451 = vmatprep.subr.mxu0 %v795
    %1452 = vmatpush1.msra.mxu0 %v794
    %1453 = vmatprep.subr.mxu0 %v799
    %1454 = vmatpush1.msra.mxu0 %v798
    %1455 = vmatprep.subr.mxu0 %v803
    %1456 = vmatpush1.msra.mxu0 %v802
    %1457 = vmatprep.subr.mxu0 %v807
    %1458 = vmatpush1.msra.mxu0 %v806
    %1459 = vmatprep.subr.mxu0 %v811
    %1460 = vmatpush1.msra.mxu0 %v810
    %1461 = vmatprep.subr.mxu0 %v815
    %1462 = vmatpush1.msra.mxu0 %v814
    %1463 = vmatprep.subr.mxu0 %v819
    %1464 = vmatpush1.msra.mxu0 %v818
    %1465 = vmatprep.subr.mxu0 %v823
    %1466 = vmatpush1.msra.mxu0 %v822
    %1467 = vmatprep.subr.mxu0 %v827
    %1468 = vmatpush1.msra.mxu0 %v826
    %1469 = vmatprep.subr.mxu0 0.0
    %1470 = vmatpush1.msra.mxu0 0.0
    %1471 = vmatprep.subr.mxu0 0.0
    %1472 = vmatpush1.msra.mxu0 0.0
    %1473 = vmatprep.subr.mxu0 0.0
    %1474 = vmatpush1.msra.mxu0 0.0
    %1475 = vmatprep.subr.mxu0 0.0
    %1476 = vmatpush1.msra.mxu0 0.0
    %1477 = vmatprep.subr.mxu0 0.0
    %1478 = vmatpush1.msra.mxu0 0.0
    %1479 = vmatprep.subr.mxu0 0.0
    %1480 = vmatpush1.msra.mxu0 0.0
    %1481 = vmatprep.subr.mxu0 0.0
    %1482 = vmatpush1.msra.mxu0 0.0
    %1483 = vmatprep.subr.mxu0 0.0
    %1484 = vmatpush1.msra.mxu0 0.0
    %1485 = vmatprep.subr.mxu0 0.0
    %1486 = vmatpush1.msra.mxu0 0.0
    %1487 = vmatprep.subr.mxu0 0.0
    %1488 = vmatpush1.msra.mxu0 0.0
    %1489 = vmatprep.subr.mxu0 0.0
    %1490 = vmatpush1.msra.mxu0 0.0
    %1491 = vmatprep.subr.mxu0 0.0
    %1492 = vmatpush1.msra.mxu0 0.0
    %1493 = vmatprep.subr.mxu0 0.0
    %1494 = vmatpush1.msra.mxu0 0.0
    %1495 = vmatprep.subr.mxu0 0.0
    %1496 = vmatpush1.msra.mxu0 0.0
    %1497 = vmatprep.subr.mxu0 0.0
    %1498 = vmatpush1.msra.mxu0 0.0
    %1499 = vmatprep.subr.mxu0 0.0
    %1500 = vmatpush1.msra.mxu0 0.0
    %1501 = vmatprep.mubr.f32.mxu0 0.0
    %1502 = vmatmul.mubr.f32.gmra.mrb[0].mxu0 %v1181
    %v1503 = vpop.f32.mrb[0].mxu0
    %v1504 = vadd.f32 0.0, %v1503
    %v1505 = vpop.f32.mrb[0].mxu0
    %v1506 = vadd.f32 0.0, %v1505
    %1507 = vdwg.mxu0
    %v1508 = vadd.f32 %v1362, %v1433
    %v1509 = vadd.f32 %v1363, %v1435
    %v1510 = vadd.f32 %v1364, %v1504
    %v1511 = vadd.f32 %v1365, %v1506
    %v1512 = vxor.u32 %v1508, 2147483648
    %v1513 = vmul.f32 %v1512, 1.442695
    %v1514 = vpow.pop %v1513
    %v1515 = vadd.f32 %v1514, 1.0
    %v1516 = vrcp.pop %v1515
    %v1517 = vmul.f32 1.0, %v1516
    %v1518 = vxor.u32 %v1509, 2147483648
    %v1519 = vmul.f32 %v1518, 1.442695
    %v1520 = vpow.pop %v1519
    %v1521 = vadd.f32 %v1520, 1.0
    %v1522 = vrcp.pop %v1521
    %v1523 = vmul.f32 1.0, %v1522
    %v1524 = vtanh.pop %v1510
    %v1525 = vxor.u32 %v1511, 2147483648
    %v1526 = vmul.f32 %v1525, 1.442695
    %v1527 = vpow.pop %v1526
    %v1528 = vadd.f32 %v1527, 1.0
    %v1529 = vrcp.pop %v1528
    %v1530 = vmul.f32 1.0, %v1529
    %v1531 = vmul.f32 %v1523, %v1179
    %v1532 = vmul.f32 %v1517, %v1524
    %v1533 = vadd.f32 %v1531, %v1532
    %v1534 = vtanh.pop %v1533
    %v1535 = vmul.f32 %v1530, %v1534
    %s1536 = scalar_lea.vmem [#allocation9], 48
    %1537 = vst [vmem:[%s1536] sm:$0xff] %v1535
    %s1538 = scalar_lea.vmem [#allocation3], 64
    %v1539 = vld [vmem:[%s1538] sm:$0xff]
    %v1540 = vld [vmem:[%s1538 + $0x8] sm:$0xff]
    %v1541 = vld [vmem:[%s1538 + $0x10] sm:$0xff]
    %v1542 = vld [vmem:[%s1538 + $0x18] sm:$0xff]
    %1543 = vmatprep.subr.mxu0 %v700
    %1544 = vmatpush1.msra.mxu0 %v699
    %1545 = vmatprep.subr.mxu0 %v704
    %1546 = vmatpush1.msra.mxu0 %v703
    %1547 = vmatprep.subr.mxu0 %v708
    %1548 = vmatpush1.msra.mxu0 %v707
    %1549 = vmatprep.subr.mxu0 %v712
    %1550 = vmatpush1.msra.mxu0 %v711
    %1551 = vmatprep.subr.mxu0 %v716
    %1552 = vmatpush1.msra.mxu0 %v715
    %1553 = vmatprep.subr.mxu0 %v720
    %1554 = vmatpush1.msra.mxu0 %v719
    %1555 = vmatprep.subr.mxu0 %v724
    %1556 = vmatpush1.msra.mxu0 %v723
    %1557 = vmatprep.subr.mxu0 %v728
    %1558 = vmatpush1.msra.mxu0 %v727
    %1559 = vmatprep.subr.mxu0 %v732
    %1560 = vmatpush1.msra.mxu0 %v731
    %1561 = vmatprep.subr.mxu0 %v736
    %1562 = vmatpush1.msra.mxu0 %v735
    %1563 = vmatprep.subr.mxu0 %v740
    %1564 = vmatpush1.msra.mxu0 %v739
    %1565 = vmatprep.subr.mxu0 %v744
    %1566 = vmatpush1.msra.mxu0 %v743
    %1567 = vmatprep.subr.mxu0 %v748
    %1568 = vmatpush1.msra.mxu0 %v747
    %1569 = vmatprep.subr.mxu0 %v752
    %1570 = vmatpush1.msra.mxu0 %v751
    %1571 = vmatprep.subr.mxu0 %v756
    %1572 = vmatpush1.msra.mxu0 %v755
    %1573 = vmatprep.subr.mxu0 %v760
    %1574 = vmatpush1.msra.mxu0 %v759
    %1575 = vmatprep.subr.mxu0 0.0
    %1576 = vmatpush1.msra.mxu0 0.0
    %1577 = vmatprep.subr.mxu0 0.0
    %1578 = vmatpush1.msra.mxu0 0.0
    %1579 = vmatprep.subr.mxu0 0.0
    %1580 = vmatpush1.msra.mxu0 0.0
    %1581 = vmatprep.subr.mxu0 0.0
    %1582 = vmatpush1.msra.mxu0 0.0
    %1583 = vmatprep.subr.mxu0 0.0
    %1584 = vmatpush1.msra.mxu0 0.0
    %1585 = vmatprep.subr.mxu0 0.0
    %1586 = vmatpush1.msra.mxu0 0.0
    %1587 = vmatprep.subr.mxu0 0.0
    %1588 = vmatpush1.msra.mxu0 0.0
    %1589 = vmatprep.subr.mxu0 0.0
    %1590 = vmatpush1.msra.mxu0 0.0
    %1591 = vmatprep.subr.mxu0 0.0
    %1592 = vmatpush1.msra.mxu0 0.0
    %1593 = vmatprep.subr.mxu0 0.0
    %1594 = vmatpush1.msra.mxu0 0.0
    %1595 = vmatprep.subr.mxu0 0.0
    %1596 = vmatpush1.msra.mxu0 0.0
    %1597 = vmatprep.subr.mxu0 0.0
    %1598 = vmatpush1.msra.mxu0 0.0
    %1599 = vmatprep.subr.mxu0 0.0
    %1600 = vmatpush1.msra.mxu0 0.0
    %1601 = vmatprep.subr.mxu0 0.0
    %1602 = vmatpush1.msra.mxu0 0.0
    %1603 = vmatprep.subr.mxu0 0.0
    %1604 = vmatpush1.msra.mxu0 0.0
    %1605 = vmatprep.subr.mxu0 0.0
    %1606 = vmatpush1.msra.mxu0 0.0
    %1607 = vmatprep.mubr.f32.mxu0 0.0
    %1608 = vmatmul.mubr.f32.gmra.mrb[0].mxu0 %v1358
    %v1609 = vpop.f32.mrb[0].mxu0
    %v1610 = vadd.f32 0.0, %v1609
    %v1611 = vpop.f32.mrb[0].mxu0
    %v1612 = vadd.f32 0.0, %v1611
    %1613 = vdwg.mxu0
    %1614 = vmatprep.subr.mxu0 %v702
    %1615 = vmatpush1.msra.mxu0 %v701
    %1616 = vmatprep.subr.mxu0 %v706
    %1617 = vmatpush1.msra.mxu0 %v705
    %1618 = vmatprep.subr.mxu0 %v710
    %1619 = vmatpush1.msra.mxu0 %v709
    %1620 = vmatprep.subr.mxu0 %v714
    %1621 = vmatpush1.msra.mxu0 %v713
    %1622 = vmatprep.subr.mxu0 %v718
    %1623 = vmatpush1.msra.mxu0 %v717
    %1624 = vmatprep.subr.mxu0 %v722
    %1625 = vmatpush1.msra.mxu0 %v721
    %1626 = vmatprep.subr.mxu0 %v726
    %1627 = vmatpush1.msra.mxu0 %v725
    %1628 = vmatprep.subr.mxu0 %v730
    %1629 = vmatpush1.msra.mxu0 %v729
    %1630 = vmatprep.subr.mxu0 %v734
    %1631 = vmatpush1.msra.mxu0 %v733
    %1632 = vmatprep.subr.mxu0 %v738
    %1633 = vmatpush1.msra.mxu0 %v737
    %1634 = vmatprep.subr.mxu0 %v742
    %1635 = vmatpush1.msra.mxu0 %v741
    %1636 = vmatprep.subr.mxu0 %v746
    %1637 = vmatpush1.msra.mxu0 %v745
    %1638 = vmatprep.subr.mxu0 %v750
    %1639 = vmatpush1.msra.mxu0 %v749
    %1640 = vmatprep.subr.mxu0 %v754
    %1641 = vmatpush1.msra.mxu0 %v753
    %1642 = vmatprep.subr.mxu0 %v758
    %1643 = vmatpush1.msra.mxu0 %v757
    %1644 = vmatprep.subr.mxu0 %v762
    %1645 = vmatpush1.msra.mxu0 %v761
    %1646 = vmatprep.subr.mxu0 0.0
    %1647 = vmatpush1.msra.mxu0 0.0
    %1648 = vmatprep.subr.mxu0 0.0
    %1649 = vmatpush1.msra.mxu0 0.0
    %1650 = vmatprep.subr.mxu0 0.0
    %1651 = vmatpush1.msra.mxu0 0.0
    %1652 = vmatprep.subr.mxu0 0.0
    %1653 = vmatpush1.msra.mxu0 0.0
    %1654 = vmatprep.subr.mxu0 0.0
    %1655 = vmatpush1.msra.mxu0 0.0
    %1656 = vmatprep.subr.mxu0 0.0
    %1657 = vmatpush1.msra.mxu0 0.0
    %1658 = vmatprep.subr.mxu0 0.0
    %1659 = vmatpush1.msra.mxu0 0.0
    %1660 = vmatprep.subr.mxu0 0.0
    %1661 = vmatpush1.msra.mxu0 0.0
    %1662 = vmatprep.subr.mxu0 0.0
    %1663 = vmatpush1.msra.mxu0 0.0
    %1664 = vmatprep.subr.mxu0 0.0
    %1665 = vmatpush1.msra.mxu0 0.0
    %1666 = vmatprep.subr.mxu0 0.0
    %1667 = vmatpush1.msra.mxu0 0.0
    %1668 = vmatprep.subr.mxu0 0.0
    %1669 = vmatpush1.msra.mxu0 0.0
    %1670 = vmatprep.subr.mxu0 0.0
    %1671 = vmatpush1.msra.mxu0 0.0
    %1672 = vmatprep.subr.mxu0 0.0
    %1673 = vmatpush1.msra.mxu0 0.0
    %1674 = vmatprep.subr.mxu0 0.0
    %1675 = vmatpush1.msra.mxu0 0.0
    %1676 = vmatprep.subr.mxu0 0.0
    %1677 = vmatpush1.msra.mxu0 0.0
    %1678 = vmatprep.mubr.f32.mxu0 0.0
    %1679 = vmatmul.mubr.f32.gmra.mrb[0].mxu0 %v1358
    %v1680 = vpop.f32.mrb[0].mxu0
    %v1681 = vadd.f32 0.0, %v1680
    %v1682 = vpop.f32.mrb[0].mxu0
    %v1683 = vadd.f32 0.0, %v1682
    %1684 = vdwg.mxu0
    %v1685 = vadd.f32 %v1539, %v1610
    %v1686 = vadd.f32 %v1540, %v1612
    %v1687 = vadd.f32 %v1541, %v1681
    %v1688 = vadd.f32 %v1542, %v1683
    %v1689 = vxor.u32 %v1685, 2147483648
    %v1690 = vmul.f32 %v1689, 1.442695
    %v1691 = vpow.pop %v1690
    %v1692 = vadd.f32 %v1691, 1.0
    %v1693 = vrcp.pop %v1692
    %v1694 = vmul.f32 1.0, %v1693
    %v1695 = vxor.u32 %v1686, 2147483648
    %v1696 = vmul.f32 %v1695, 1.442695
    %v1697 = vpow.pop %v1696
    %v1698 = vadd.f32 %v1697, 1.0
    %v1699 = vrcp.pop %v1698
    %v1700 = vmul.f32 1.0, %v1699
    %v1701 = vtanh.pop %v1687
    %v1702 = vxor.u32 %v1688, 2147483648
    %v1703 = vmul.f32 %v1702, 1.442695
    %v1704 = vpow.pop %v1703
    %v1705 = vadd.f32 %v1704, 1.0
    %v1706 = vrcp.pop %v1705
    %v1707 = vmul.f32 1.0, %v1706
    %v1708 = vmul.f32 %v1700, %v1356
    %v1709 = vmul.f32 %v1694, %v1701
    %v1710 = vadd.f32 %v1708, %v1709
    %v1711 = vtanh.pop %v1710
    %v1712 = vmul.f32 %v1707, %v1711
    %s1713 = scalar_lea.vmem [#allocation8], 16
    %1714 = vst [vmem:[%s1713] sm:$0xff] %v1712
    %s1715 = scalar_lea.vmem [#allocation4], 160
    %v1716 = vld [vmem:[%s1715] sm:$0xff]
    %v1717 = vld [vmem:[%s1715 + $0x8] sm:$0xff]
    %v1718 = vld [vmem:[%s1715 + $0x10] sm:$0xff]
    %v1719 = vld [vmem:[%s1715 + $0x18] sm:$0xff]
    %1720 = vmatprep.subr.mxu0 %v765
    %1721 = vmatpush1.msra.mxu0 %v764
    %1722 = vmatprep.subr.mxu0 %v769
    %1723 = vmatpush1.msra.mxu0 %v768
    %1724 = vmatprep.subr.mxu0 %v773
    %1725 = vmatpush1.msra.mxu0 %v772
    %1726 = vmatprep.subr.mxu0 %v777
    %1727 = vmatpush1.msra.mxu0 %v776
    %1728 = vmatprep.subr.mxu0 %v781
    %1729 = vmatpush1.msra.mxu0 %v780
    %1730 = vmatprep.subr.mxu0 %v785
    %1731 = vmatpush1.msra.mxu0 %v784
    %1732 = vmatprep.subr.mxu0 %v789
    %1733 = vmatpush1.msra.mxu0 %v788
    %1734 = vmatprep.subr.mxu0 %v793
    %1735 = vmatpush1.msra.mxu0 %v792
    %1736 = vmatprep.subr.mxu0 %v797
    %1737 = vmatpush1.msra.mxu0 %v796
    %1738 = vmatprep.subr.mxu0 %v801
    %1739 = vmatpush1.msra.mxu0 %v800
    %1740 = vmatprep.subr.mxu0 %v805
    %1741 = vmatpush1.msra.mxu0 %v804
    %1742 = vmatprep.subr.mxu0 %v809
    %1743 = vmatpush1.msra.mxu0 %v808
    %1744 = vmatprep.subr.mxu0 %v813
    %1745 = vmatpush1.msra.mxu0 %v812
    %1746 = vmatprep.subr.mxu0 %v817
    %1747 = vmatpush1.msra.mxu0 %v816
    %1748 = vmatprep.subr.mxu0 %v821
    %1749 = vmatpush1.msra.mxu0 %v820
    %1750 = vmatprep.subr.mxu0 %v825
    %1751 = vmatpush1.msra.mxu0 %v824
    %1752 = vmatprep.subr.mxu0 0.0
    %1753 = vmatpush1.msra.mxu0 0.0
    %1754 = vmatprep.subr.mxu0 0.0
    %1755 = vmatpush1.msra.mxu0 0.0
    %1756 = vmatprep.subr.mxu0 0.0
    %1757 = vmatpush1.msra.mxu0 0.0
    %1758 = vmatprep.subr.mxu0 0.0
    %1759 = vmatpush1.msra.mxu0 0.0
    %1760 = vmatprep.subr.mxu0 0.0
    %1761 = vmatpush1.msra.mxu0 0.0
    %1762 = vmatprep.subr.mxu0 0.0
    %1763 = vmatpush1.msra.mxu0 0.0
    %1764 = vmatprep.subr.mxu0 0.0
    %1765 = vmatpush1.msra.mxu0 0.0
    %1766 = vmatprep.subr.mxu0 0.0
    %1767 = vmatpush1.msra.mxu0 0.0
    %1768 = vmatprep.subr.mxu0 0.0
    %1769 = vmatpush1.msra.mxu0 0.0
    %1770 = vmatprep.subr.mxu0 0.0
    %1771 = vmatpush1.msra.mxu0 0.0
    %1772 = vmatprep.subr.mxu0 0.0
    %1773 = vmatpush1.msra.mxu0 0.0
    %1774 = vmatprep.subr.mxu0 0.0
    %1775 = vmatpush1.msra.mxu0 0.0
    %1776 = vmatprep.subr.mxu0 0.0
    %1777 = vmatpush1.msra.mxu0 0.0
    %1778 = vmatprep.subr.mxu0 0.0
    %1779 = vmatpush1.msra.mxu0 0.0
    %1780 = vmatprep.subr.mxu0 0.0
    %1781 = vmatpush1.msra.mxu0 0.0
    %1782 = vmatprep.subr.mxu0 0.0
    %1783 = vmatpush1.msra.mxu0 0.0
    %1784 = vmatprep.mubr.f32.mxu0 0.0
    %1785 = vmatmul.mubr.f32.gmra.mrb[0].mxu0 %v1535
    %v1786 = vpop.f32.mrb[0].mxu0
    %v1787 = vadd.f32 0.0, %v1786
    %v1788 = vpop.f32.mrb[0].mxu0
    %v1789 = vadd.f32 0.0, %v1788
    %1790 = vdwg.mxu0
    %1791 = vmatprep.subr.mxu0 %v767
    %1792 = vmatpush1.msra.mxu0 %v766
    %1793 = vmatprep.subr.mxu0 %v771
    %1794 = vmatpush1.msra.mxu0 %v770
    %1795 = vmatprep.subr.mxu0 %v775
    %1796 = vmatpush1.msra.mxu0 %v774
    %1797 = vmatprep.subr.mxu0 %v779
    %1798 = vmatpush1.msra.mxu0 %v778
    %1799 = vmatprep.subr.mxu0 %v783
    %1800 = vmatpush1.msra.mxu0 %v782
    %1801 = vmatprep.subr.mxu0 %v787
    %1802 = vmatpush1.msra.mxu0 %v786
    %1803 = vmatprep.subr.mxu0 %v791
    %1804 = vmatpush1.msra.mxu0 %v790
    %1805 = vmatprep.subr.mxu0 %v795
    %1806 = vmatpush1.msra.mxu0 %v794
    %1807 = vmatprep.subr.mxu0 %v799
    %1808 = vmatpush1.msra.mxu0 %v798
    %1809 = vmatprep.subr.mxu0 %v803
    %1810 = vmatpush1.msra.mxu0 %v802
    %1811 = vmatprep.subr.mxu0 %v807
    %1812 = vmatpush1.msra.mxu0 %v806
    %1813 = vmatprep.subr.mxu0 %v811
    %1814 = vmatpush1.msra.mxu0 %v810
    %1815 = vmatprep.subr.mxu0 %v815
    %1816 = vmatpush1.msra.mxu0 %v814
    %1817 = vmatprep.subr.mxu0 %v819
    %1818 = vmatpush1.msra.mxu0 %v818
    %1819 = vmatprep.subr.mxu0 %v823
    %1820 = vmatpush1.msra.mxu0 %v822
    %1821 = vmatprep.subr.mxu0 %v827
    %1822 = vmatpush1.msra.mxu0 %v826
    %1823 = vmatprep.subr.mxu0 0.0
    %1824 = vmatpush1.msra.mxu0 0.0
    %1825 = vmatprep.subr.mxu0 0.0
    %1826 = vmatpush1.msra.mxu0 0.0
    %1827 = vmatprep.subr.mxu0 0.0
    %1828 = vmatpush1.msra.mxu0 0.0
    %1829 = vmatprep.subr.mxu0 0.0
    %1830 = vmatpush1.msra.mxu0 0.0
    %1831 = vmatprep.subr.mxu0 0.0
    %1832 = vmatpush1.msra.mxu0 0.0
    %1833 = vmatprep.subr.mxu0 0.0
    %1834 = vmatpush1.msra.mxu0 0.0
    %1835 = vmatprep.subr.mxu0 0.0
    %1836 = vmatpush1.msra.mxu0 0.0
    %1837 = vmatprep.subr.mxu0 0.0
    %1838 = vmatpush1.msra.mxu0 0.0
    %1839 = vmatprep.subr.mxu0 0.0
    %1840 = vmatpush1.msra.mxu0 0.0
    %1841 = vmatprep.subr.mxu0 0.0
    %1842 = vmatpush1.msra.mxu0 0.0
    %1843 = vmatprep.subr.mxu0 0.0
    %1844 = vmatpush1.msra.mxu0 0.0
    %1845 = vmatprep.subr.mxu0 0.0
    %1846 = vmatpush1.msra.mxu0 0.0
    %1847 = vmatprep.subr.mxu0 0.0
    %1848 = vmatpush1.msra.mxu0 0.0
    %1849 = vmatprep.subr.mxu0 0.0
    %1850 = vmatpush1.msra.mxu0 0.0
    %1851 = vmatprep.subr.mxu0 0.0
    %1852 = vmatpush1.msra.mxu0 0.0
    %1853 = vmatprep.subr.mxu0 0.0
    %1854 = vmatpush1.msra.mxu0 0.0
    %1855 = vmatprep.mubr.f32.mxu0 0.0
    %1856 = vmatmul.mubr.f32.gmra.mrb[0].mxu0 %v1535
    %v1857 = vpop.f32.mrb[0].mxu0
    %v1858 = vadd.f32 0.0, %v1857
    %v1859 = vpop.f32.mrb[0].mxu0
    %v1860 = vadd.f32 0.0, %v1859
    %1861 = vdwg.mxu0
    %v1862 = vadd.f32 %v1716, %v1787
    %v1863 = vadd.f32 %v1717, %v1789
    %v1864 = vadd.f32 %v1718, %v1858
    %v1865 = vadd.f32 %v1719, %v1860
    %v1866 = vxor.u32 %v1862, 2147483648
    %v1867 = vmul.f32 %v1866, 1.442695
    %v1868 = vpow.pop %v1867
    %v1869 = vadd.f32 %v1868, 1.0
    %v1870 = vrcp.pop %v1869
    %v1871 = vmul.f32 1.0, %v1870
    %v1872 = vxor.u32 %v1863, 2147483648
    %v1873 = vmul.f32 %v1872, 1.442695
    %v1874 = vpow.pop %v1873
    %v1875 = vadd.f32 %v1874, 1.0
    %v1876 = vrcp.pop %v1875
    %v1877 = vmul.f32 1.0, %v1876
    %v1878 = vtanh.pop %v1864
    %v1879 = vxor.u32 %v1865, 2147483648
    %v1880 = vmul.f32 %v1879, 1.442695
    %v1881 = vpow.pop %v1880
    %v1882 = vadd.f32 %v1881, 1.0
    %v1883 = vrcp.pop %v1882
    %v1884 = vmul.f32 1.0, %v1883
    %v1885 = vmul.f32 %v1877, %v1533
    %v1886 = vmul.f32 %v1871, %v1878
    %v1887 = vadd.f32 %v1885, %v1886
    %v1888 = vtanh.pop %v1887
    %v1889 = vmul.f32 %v1884, %v1888
    %s1890 = scalar_lea.vmem [#allocation9], 40
    %1891 = vst [vmem:[%s1890] sm:$0xff] %v1889
    %s1892 = scalar_lea.vmem [#allocation3], 96
    %v1893 = vld [vmem:[%s1892] sm:$0xff]
    %v1894 = vld [vmem:[%s1892 + $0x8] sm:$0xff]
    %v1895 = vld [vmem:[%s1892 + $0x10] sm:$0xff]
    %v1896 = vld [vmem:[%s1892 + $0x18] sm:$0xff]
    %1897 = vmatprep.subr.mxu0 %v700
    %1898 = vmatpush1.msra.mxu0 %v699
    %1899 = vmatprep.subr.mxu0 %v704
    %1900 = vmatpush1.msra.mxu0 %v703
    %1901 = vmatprep.subr.mxu0 %v708
    %1902 = vmatpush1.msra.mxu0 %v707
    %1903 = vmatprep.subr.mxu0 %v712
    %1904 = vmatpush1.msra.mxu0 %v711
    %1905 = vmatprep.subr.mxu0 %v716
    %1906 = vmatpush1.msra.mxu0 %v715
    %1907 = vmatprep.subr.mxu0 %v720
    %1908 = vmatpush1.msra.mxu0 %v719
    %1909 = vmatprep.subr.mxu0 %v724
    %1910 = vmatpush1.msra.mxu0 %v723
    %1911 = vmatprep.subr.mxu0 %v728
    %1912 = vmatpush1.msra.mxu0 %v727
    %1913 = vmatprep.subr.mxu0 %v732
    %1914 = vmatpush1.msra.mxu0 %v731
    %1915 = vmatprep.subr.mxu0 %v736
    %1916 = vmatpush1.msra.mxu0 %v735
    %1917 = vmatprep.subr.mxu0 %v740
    %1918 = vmatpush1.msra.mxu0 %v739
    %1919 = vmatprep.subr.mxu0 %v744
    %1920 = vmatpush1.msra.mxu0 %v743
    %1921 = vmatprep.subr.mxu0 %v748
    %1922 = vmatpush1.msra.mxu0 %v747
    %1923 = vmatprep.subr.mxu0 %v752
    %1924 = vmatpush1.msra.mxu0 %v751
    %1925 = vmatprep.subr.mxu0 %v756
    %1926 = vmatpush1.msra.mxu0 %v755
    %1927 = vmatprep.subr.mxu0 %v760
    %1928 = vmatpush1.msra.mxu0 %v759
    %1929 = vmatprep.subr.mxu0 0.0
    %1930 = vmatpush1.msra.mxu0 0.0
    %1931 = vmatprep.subr.mxu0 0.0
    %1932 = vmatpush1.msra.mxu0 0.0
    %1933 = vmatprep.subr.mxu0 0.0
    %1934 = vmatpush1.msra.mxu0 0.0
    %1935 = vmatprep.subr.mxu0 0.0
    %1936 = vmatpush1.msra.mxu0 0.0
    %1937 = vmatprep.subr.mxu0 0.0
    %1938 = vmatpush1.msra.mxu0 0.0
    %1939 = vmatprep.subr.mxu0 0.0
    %1940 = vmatpush1.msra.mxu0 0.0
    %1941 = vmatprep.subr.mxu0 0.0
    %1942 = vmatpush1.msra.mxu0 0.0
    %1943 = vmatprep.subr.mxu0 0.0
    %1944 = vmatpush1.msra.mxu0 0.0
    %1945 = vmatprep.subr.mxu0 0.0
    %1946 = vmatpush1.msra.mxu0 0.0
    %1947 = vmatprep.subr.mxu0 0.0
    %1948 = vmatpush1.msra.mxu0 0.0
    %1949 = vmatprep.subr.mxu0 0.0
    %1950 = vmatpush1.msra.mxu0 0.0
    %1951 = vmatprep.subr.mxu0 0.0
    %1952 = vmatpush1.msra.mxu0 0.0
    %1953 = vmatprep.subr.mxu0 0.0
    %1954 = vmatpush1.msra.mxu0 0.0
    %1955 = vmatprep.subr.mxu0 0.0
    %1956 = vmatpush1.msra.mxu0 0.0
    %1957 = vmatprep.subr.mxu0 0.0
    %1958 = vmatpush1.msra.mxu0 0.0
    %1959 = vmatprep.subr.mxu0 0.0
    %1960 = vmatpush1.msra.mxu0 0.0
    %1961 = vmatprep.mubr.f32.mxu0 0.0
    %1962 = vmatmul.mubr.f32.gmra.mrb[0].mxu0 %v1712
    %v1963 = vpop.f32.mrb[0].mxu0
    %v1964 = vadd.f32 0.0, %v1963
    %v1965 = vpop.f32.mrb[0].mxu0
    %v1966 = vadd.f32 0.0, %v1965
    %1967 = vdwg.mxu0
    %1968 = vmatprep.subr.mxu0 %v702
    %1969 = vmatpush1.msra.mxu0 %v701
    %1970 = vmatprep.subr.mxu0 %v706
    %1971 = vmatpush1.msra.mxu0 %v705
    %1972 = vmatprep.subr.mxu0 %v710
    %1973 = vmatpush1.msra.mxu0 %v709
    %1974 = vmatprep.subr.mxu0 %v714
    %1975 = vmatpush1.msra.mxu0 %v713
    %1976 = vmatprep.subr.mxu0 %v718
    %1977 = vmatpush1.msra.mxu0 %v717
    %1978 = vmatprep.subr.mxu0 %v722
    %1979 = vmatpush1.msra.mxu0 %v721
    %1980 = vmatprep.subr.mxu0 %v726
    %1981 = vmatpush1.msra.mxu0 %v725
    %1982 = vmatprep.subr.mxu0 %v730
    %1983 = vmatpush1.msra.mxu0 %v729
    %1984 = vmatprep.subr.mxu0 %v734
    %1985 = vmatpush1.msra.mxu0 %v733
    %1986 = vmatprep.subr.mxu0 %v738
    %1987 = vmatpush1.msra.mxu0 %v737
    %1988 = vmatprep.subr.mxu0 %v742
    %1989 = vmatpush1.msra.mxu0 %v741
    %1990 = vmatprep.subr.mxu0 %v746
    %1991 = vmatpush1.msra.mxu0 %v745
    %1992 = vmatprep.subr.mxu0 %v750
    %1993 = vmatpush1.msra.mxu0 %v749
    %1994 = vmatprep.subr.mxu0 %v754
    %1995 = vmatpush1.msra.mxu0 %v753
    %1996 = vmatprep.subr.mxu0 %v758
    %1997 = vmatpush1.msra.mxu0 %v757
    %1998 = vmatprep.subr.mxu0 %v762
    %1999 = vmatpush1.msra.mxu0 %v761
    %2000 = vmatprep.subr.mxu0 0.0
    %2001 = vmatpush1.msra.mxu0 0.0
    %2002 = vmatprep.subr.mxu0 0.0
    %2003 = vmatpush1.msra.mxu0 0.0
    %2004 = vmatprep.subr.mxu0 0.0
    %2005 = vmatpush1.msra.mxu0 0.0
    %2006 = vmatprep.subr.mxu0 0.0
    %2007 = vmatpush1.msra.mxu0 0.0
    %2008 = vmatprep.subr.mxu0 0.0
    %2009 = vmatpush1.msra.mxu0 0.0
    %2010 = vmatprep.subr.mxu0 0.0
    %2011 = vmatpush1.msra.mxu0 0.0
    %2012 = vmatprep.subr.mxu0 0.0
    %2013 = vmatpush1.msra.mxu0 0.0
    %2014 = vmatprep.subr.mxu0 0.0
    %2015 = vmatpush1.msra.mxu0 0.0
    %2016 = vmatprep.subr.mxu0 0.0
    %2017 = vmatpush1.msra.mxu0 0.0
    %2018 = vmatprep.subr.mxu0 0.0
    %2019 = vmatpush1.msra.mxu0 0.0
    %2020 = vmatprep.subr.mxu0 0.0
    %2021 = vmatpush1.msra.mxu0 0.0
    %2022 = vmatprep.subr.mxu0 0.0
    %2023 = vmatpush1.msra.mxu0 0.0
    %2024 = vmatprep.subr.mxu0 0.0
    %2025 = vmatpush1.msra.mxu0 0.0
    %2026 = vmatprep.subr.mxu0 0.0
    %2027 = vmatpush1.msra.mxu0 0.0
    %2028 = vmatprep.subr.mxu0 0.0
    %2029 = vmatpush1.msra.mxu0 0.0
    %2030 = vmatprep.subr.mxu0 0.0
    %2031 = vmatpush1.msra.mxu0 0.0
    %2032 = vmatprep.mubr.f32.mxu0 0.0
    %2033 = vmatmul.mubr.f32.gmra.mrb[0].mxu0 %v1712
    %v2034 = vpop.f32.mrb[0].mxu0
    %v2035 = vadd.f32 0.0, %v2034
    %v2036 = vpop.f32.mrb[0].mxu0
    %v2037 = vadd.f32 0.0, %v2036
    %2038 = vdwg.mxu0
    %v2039 = vadd.f32 %v1893, %v1964
    %v2040 = vadd.f32 %v1894, %v1966
    %v2041 = vadd.f32 %v1895, %v2035
    %v2042 = vadd.f32 %v1896, %v2037
    %v2043 = vxor.u32 %v2039, 2147483648
    %v2044 = vmul.f32 %v2043, 1.442695
    %v2045 = vpow.pop %v2044
    %v2046 = vadd.f32 %v2045, 1.0
    %v2047 = vrcp.pop %v2046
    %v2048 = vmul.f32 1.0, %v2047
    %v2049 = vxor.u32 %v2040, 2147483648
    %v2050 = vmul.f32 %v2049, 1.442695
    %v2051 = vpow.pop %v2050
    %v2052 = vadd.f32 %v2051, 1.0
    %v2053 = vrcp.pop %v2052
    %v2054 = vmul.f32 1.0, %v2053
    %v2055 = vtanh.pop %v2041
    %v2056 = vxor.u32 %v2042, 2147483648
    %v2057 = vmul.f32 %v2056, 1.442695
    %v2058 = vpow.pop %v2057
    %v2059 = vadd.f32 %v2058, 1.0
    %v2060 = vrcp.pop %v2059
    %v2061 = vmul.f32 1.0, %v2060
    %v2062 = vmul.f32 %v2054, %v1710
    %v2063 = vmul.f32 %v2048, %v2055
    %v2064 = vadd.f32 %v2062, %v2063
    %v2065 = vtanh.pop %v2064
    %v2066 = vmul.f32 %v2061, %v2065
    %s2067 = scalar_lea.vmem [#allocation8], 24
    %2068 = vst [vmem:[%s2067] sm:$0xff] %v2066
    %s2069 = scalar_lea.vmem [#allocation4], 128
    %v2070 = vld [vmem:[%s2069] sm:$0xff]
    %v2071 = vld [vmem:[%s2069 + $0x8] sm:$0xff]
    %v2072 = vld [vmem:[%s2069 + $0x10] sm:$0xff]
    %v2073 = vld [vmem:[%s2069 + $0x18] sm:$0xff]
    %2074 = vmatprep.subr.mxu0 %v765
    %2075 = vmatpush1.msra.mxu0 %v764
    %2076 = vmatprep.subr.mxu0 %v769
    %2077 = vmatpush1.msra.mxu0 %v768
    %2078 = vmatprep.subr.mxu0 %v773
    %2079 = vmatpush1.msra.mxu0 %v772
    %2080 = vmatprep.subr.mxu0 %v777
    %2081 = vmatpush1.msra.mxu0 %v776
    %2082 = vmatprep.subr.mxu0 %v781
    %2083 = vmatpush1.msra.mxu0 %v780
    %2084 = vmatprep.subr.mxu0 %v785
    %2085 = vmatpush1.msra.mxu0 %v784
    %2086 = vmatprep.subr.mxu0 %v789
    %2087 = vmatpush1.msra.mxu0 %v788
    %2088 = vmatprep.subr.mxu0 %v793
    %2089 = vmatpush1.msra.mxu0 %v792
    %2090 = vmatprep.subr.mxu0 %v797
    %2091 = vmatpush1.msra.mxu0 %v796
    %2092 = vmatprep.subr.mxu0 %v801
    %2093 = vmatpush1.msra.mxu0 %v800
    %2094 = vmatprep.subr.mxu0 %v805
    %2095 = vmatpush1.msra.mxu0 %v804
    %2096 = vmatprep.subr.mxu0 %v809
    %2097 = vmatpush1.msra.mxu0 %v808
    %2098 = vmatprep.subr.mxu0 %v813
    %2099 = vmatpush1.msra.mxu0 %v812
    %2100 = vmatprep.subr.mxu0 %v817
    %2101 = vmatpush1.msra.mxu0 %v816
    %2102 = vmatprep.subr.mxu0 %v821
    %2103 = vmatpush1.msra.mxu0 %v820
    %2104 = vmatprep.subr.mxu0 %v825
    %2105 = vmatpush1.msra.mxu0 %v824
    %2106 = vmatprep.subr.mxu0 0.0
    %2107 = vmatpush1.msra.mxu0 0.0
    %2108 = vmatprep.subr.mxu0 0.0
    %2109 = vmatpush1.msra.mxu0 0.0
    %2110 = vmatprep.subr.mxu0 0.0
    %2111 = vmatpush1.msra.mxu0 0.0
    %2112 = vmatprep.subr.mxu0 0.0
    %2113 = vmatpush1.msra.mxu0 0.0
    %2114 = vmatprep.subr.mxu0 0.0
    %2115 = vmatpush1.msra.mxu0 0.0
    %2116 = vmatprep.subr.mxu0 0.0
    %2117 = vmatpush1.msra.mxu0 0.0
    %2118 = vmatprep.subr.mxu0 0.0
    %2119 = vmatpush1.msra.mxu0 0.0
    %2120 = vmatprep.subr.mxu0 0.0
    %2121 = vmatpush1.msra.mxu0 0.0
    %2122 = vmatprep.subr.mxu0 0.0
    %2123 = vmatpush1.msra.mxu0 0.0
    %2124 = vmatprep.subr.mxu0 0.0
    %2125 = vmatpush1.msra.mxu0 0.0
    %2126 = vmatprep.subr.mxu0 0.0
    %2127 = vmatpush1.msra.mxu0 0.0
    %2128 = vmatprep.subr.mxu0 0.0
    %2129 = vmatpush1.msra.mxu0 0.0
    %2130 = vmatprep.subr.mxu0 0.0
    %2131 = vmatpush1.msra.mxu0 0.0
    %2132 = vmatprep.subr.mxu0 0.0
    %2133 = vmatpush1.msra.mxu0 0.0
    %2134 = vmatprep.subr.mxu0 0.0
    %2135 = vmatpush1.msra.mxu0 0.0
    %2136 = vmatprep.subr.mxu0 0.0
    %2137 = vmatpush1.msra.mxu0 0.0
    %2138 = vmatprep.mubr.f32.mxu0 0.0
    %2139 = vmatmul.mubr.f32.gmra.mrb[0].mxu0 %v1889
    %v2140 = vpop.f32.mrb[0].mxu0
    %v2141 = vadd.f32 0.0, %v2140
    %v2142 = vpop.f32.mrb[0].mxu0
    %v2143 = vadd.f32 0.0, %v2142
    %2144 = vdwg.mxu0
    %2145 = vmatprep.subr.mxu0 %v767
    %2146 = vmatpush1.msra.mxu0 %v766
    %2147 = vmatprep.subr.mxu0 %v771
    %2148 = vmatpush1.msra.mxu0 %v770
    %2149 = vmatprep.subr.mxu0 %v775
    %2150 = vmatpush1.msra.mxu0 %v774
    %2151 = vmatprep.subr.mxu0 %v779
    %2152 = vmatpush1.msra.mxu0 %v778
    %2153 = vmatprep.subr.mxu0 %v783
    %2154 = vmatpush1.msra.mxu0 %v782
    %2155 = vmatprep.subr.mxu0 %v787
    %2156 = vmatpush1.msra.mxu0 %v786
    %2157 = vmatprep.subr.mxu0 %v791
    %2158 = vmatpush1.msra.mxu0 %v790
    %2159 = vmatprep.subr.mxu0 %v795
    %2160 = vmatpush1.msra.mxu0 %v794
    %2161 = vmatprep.subr.mxu0 %v799
    %2162 = vmatpush1.msra.mxu0 %v798
    %2163 = vmatprep.subr.mxu0 %v803
    %2164 = vmatpush1.msra.mxu0 %v802
    %2165 = vmatprep.subr.mxu0 %v807
    %2166 = vmatpush1.msra.mxu0 %v806
    %2167 = vmatprep.subr.mxu0 %v811
    %2168 = vmatpush1.msra.mxu0 %v810
    %2169 = vmatprep.subr.mxu0 %v815
    %2170 = vmatpush1.msra.mxu0 %v814
    %2171 = vmatprep.subr.mxu0 %v819
    %2172 = vmatpush1.msra.mxu0 %v818
    %2173 = vmatprep.subr.mxu0 %v823
    %2174 = vmatpush1.msra.mxu0 %v822
    %2175 = vmatprep.subr.mxu0 %v827
    %2176 = vmatpush1.msra.mxu0 %v826
    %2177 = vmatprep.subr.mxu0 0.0
    %2178 = vmatpush1.msra.mxu0 0.0
    %2179 = vmatprep.subr.mxu0 0.0
    %2180 = vmatpush1.msra.mxu0 0.0
    %2181 = vmatprep.subr.mxu0 0.0
    %2182 = vmatpush1.msra.mxu0 0.0
    %2183 = vmatprep.subr.mxu0 0.0
    %2184 = vmatpush1.msra.mxu0 0.0
    %2185 = vmatprep.subr.mxu0 0.0
    %2186 = vmatpush1.msra.mxu0 0.0
    %2187 = vmatprep.subr.mxu0 0.0
    %2188 = vmatpush1.msra.mxu0 0.0
    %2189 = vmatprep.subr.mxu0 0.0
    %2190 = vmatpush1.msra.mxu0 0.0
    %2191 = vmatprep.subr.mxu0 0.0
    %2192 = vmatpush1.msra.mxu0 0.0
    %2193 = vmatprep.subr.mxu0 0.0
    %2194 = vmatpush1.msra.mxu0 0.0
    %2195 = vmatprep.subr.mxu0 0.0
    %2196 = vmatpush1.msra.mxu0 0.0
    %2197 = vmatprep.subr.mxu0 0.0
    %2198 = vmatpush1.msra.mxu0 0.0
    %2199 = vmatprep.subr.mxu0 0.0
    %2200 = vmatpush1.msra.mxu0 0.0
    %2201 = vmatprep.subr.mxu0 0.0
    %2202 = vmatpush1.msra.mxu0 0.0
    %2203 = vmatprep.subr.mxu0 0.0
    %2204 = vmatpush1.msra.mxu0 0.0
    %2205 = vmatprep.subr.mxu0 0.0
    %2206 = vmatpush1.msra.mxu0 0.0
    %2207 = vmatprep.subr.mxu0 0.0
    %2208 = vmatpush1.msra.mxu0 0.0
    %2209 = vmatprep.mubr.f32.mxu0 0.0
    %2210 = vmatmul.mubr.f32.gmra.mrb[0].mxu0 %v1889
    %v2211 = vpop.f32.mrb[0].mxu0
    %v2212 = vadd.f32 0.0, %v2211
    %v2213 = vpop.f32.mrb[0].mxu0
    %v2214 = vadd.f32 0.0, %v2213
    %2215 = vdwg.mxu0
    %v2216 = vadd.f32 %v2070, %v2141
    %v2217 = vadd.f32 %v2071, %v2143
    %v2218 = vadd.f32 %v2072, %v2212
    %v2219 = vadd.f32 %v2073, %v2214
    %v2220 = vxor.u32 %v2216, 2147483648
    %v2221 = vmul.f32 %v2220, 1.442695
    %v2222 = vpow.pop %v2221
    %v2223 = vadd.f32 %v2222, 1.0
    %v2224 = vrcp.pop %v2223
    %v2225 = vmul.f32 1.0, %v2224
    %v2226 = vxor.u32 %v2217, 2147483648
    %v2227 = vmul.f32 %v2226, 1.442695
    %v2228 = vpow.pop %v2227
    %v2229 = vadd.f32 %v2228, 1.0
    %v2230 = vrcp.pop %v2229
    %v2231 = vmul.f32 1.0, %v2230
    %v2232 = vtanh.pop %v2218
    %v2233 = vxor.u32 %v2219, 2147483648
    %v2234 = vmul.f32 %v2233, 1.442695
    %v2235 = vpow.pop %v2234
    %v2236 = vadd.f32 %v2235, 1.0
    %v2237 = vrcp.pop %v2236
    %v2238 = vmul.f32 1.0, %v2237
    %v2239 = vmul.f32 %v2231, %v1887
    %v2240 = vmul.f32 %v2225, %v2232
    %v2241 = vadd.f32 %v2239, %v2240
    %v2242 = vtanh.pop %v2241
    %v2243 = vmul.f32 %v2238, %v2242
    %s2244 = scalar_lea.vmem [#allocation9], 32
    %2245 = vst [vmem:[%s2244] sm:$0xff] %v2243
    %s2246 = scalar_lea.vmem [#allocation3], 128
    %v2247 = vld [vmem:[%s2246] sm:$0xff]
    %v2248 = vld [vmem:[%s2246 + $0x8] sm:$0xff]
    %v2249 = vld [vmem:[%s2246 + $0x10] sm:$0xff]
    %v2250 = vld [vmem:[%s2246 + $0x18] sm:$0xff]
    %2251 = vmatprep.subr.mxu0 %v700
    %2252 = vmatpush1.msra.mxu0 %v699
    %2253 = vmatprep.subr.mxu0 %v704
    %2254 = vmatpush1.msra.mxu0 %v703
    %2255 = vmatprep.subr.mxu0 %v708
    %2256 = vmatpush1.msra.mxu0 %v707
    %2257 = vmatprep.subr.mxu0 %v712
    %2258 = vmatpush1.msra.mxu0 %v711
    %2259 = vmatprep.subr.mxu0 %v716
    %2260 = vmatpush1.msra.mxu0 %v715
    %2261 = vmatprep.subr.mxu0 %v720
    %2262 = vmatpush1.msra.mxu0 %v719
    %2263 = vmatprep.subr.mxu0 %v724
    %2264 = vmatpush1.msra.mxu0 %v723
    %2265 = vmatprep.subr.mxu0 %v728
    %2266 = vmatpush1.msra.mxu0 %v727
    %2267 = vmatprep.subr.mxu0 %v732
    %2268 = vmatpush1.msra.mxu0 %v731
    %2269 = vmatprep.subr.mxu0 %v736
    %2270 = vmatpush1.msra.mxu0 %v735
    %2271 = vmatprep.subr.mxu0 %v740
    %2272 = vmatpush1.msra.mxu0 %v739
    %2273 = vmatprep.subr.mxu0 %v744
    %2274 = vmatpush1.msra.mxu0 %v743
    %2275 = vmatprep.subr.mxu0 %v748
    %2276 = vmatpush1.msra.mxu0 %v747
    %2277 = vmatprep.subr.mxu0 %v752
    %2278 = vmatpush1.msra.mxu0 %v751
    %2279 = vmatprep.subr.mxu0 %v756
    %2280 = vmatpush1.msra.mxu0 %v755
    %2281 = vmatprep.subr.mxu0 %v760
    %2282 = vmatpush1.msra.mxu0 %v759
    %2283 = vmatprep.subr.mxu0 0.0
    %2284 = vmatpush1.msra.mxu0 0.0
    %2285 = vmatprep.subr.mxu0 0.0
    %2286 = vmatpush1.msra.mxu0 0.0
    %2287 = vmatprep.subr.mxu0 0.0
    %2288 = vmatpush1.msra.mxu0 0.0
    %2289 = vmatprep.subr.mxu0 0.0
    %2290 = vmatpush1.msra.mxu0 0.0
    %2291 = vmatprep.subr.mxu0 0.0
    %2292 = vmatpush1.msra.mxu0 0.0
    %2293 = vmatprep.subr.mxu0 0.0
    %2294 = vmatpush1.msra.mxu0 0.0
    %2295 = vmatprep.subr.mxu0 0.0
    %2296 = vmatpush1.msra.mxu0 0.0
    %2297 = vmatprep.subr.mxu0 0.0
    %2298 = vmatpush1.msra.mxu0 0.0
    %2299 = vmatprep.subr.mxu0 0.0
    %2300 = vmatpush1.msra.mxu0 0.0
    %2301 = vmatprep.subr.mxu0 0.0
    %2302 = vmatpush1.msra.mxu0 0.0
    %2303 = vmatprep.subr.mxu0 0.0
    %2304 = vmatpush1.msra.mxu0 0.0
    %2305 = vmatprep.subr.mxu0 0.0
    %2306 = vmatpush1.msra.mxu0 0.0
    %2307 = vmatprep.subr.mxu0 0.0
    %2308 = vmatpush1.msra.mxu0 0.0
    %2309 = vmatprep.subr.mxu0 0.0
    %2310 = vmatpush1.msra.mxu0 0.0
    %2311 = vmatprep.subr.mxu0 0.0
    %2312 = vmatpush1.msra.mxu0 0.0
    %2313 = vmatprep.subr.mxu0 0.0
    %2314 = vmatpush1.msra.mxu0 0.0
    %2315 = vmatprep.mubr.f32.mxu0 0.0
    %2316 = vmatmul.mubr.f32.gmra.mrb[0].mxu0 %v2066
    %v2317 = vpop.f32.mrb[0].mxu0
    %v2318 = vadd.f32 0.0, %v2317
    %v2319 = vpop.f32.mrb[0].mxu0
    %v2320 = vadd.f32 0.0, %v2319
    %2321 = vdwg.mxu0
    %2322 = vmatprep.subr.mxu0 %v702
    %2323 = vmatpush1.msra.mxu0 %v701
    %2324 = vmatprep.subr.mxu0 %v706
    %2325 = vmatpush1.msra.mxu0 %v705
    %2326 = vmatprep.subr.mxu0 %v710
    %2327 = vmatpush1.msra.mxu0 %v709
    %2328 = vmatprep.subr.mxu0 %v714
    %2329 = vmatpush1.msra.mxu0 %v713
    %2330 = vmatprep.subr.mxu0 %v718
    %2331 = vmatpush1.msra.mxu0 %v717
    %2332 = vmatprep.subr.mxu0 %v722
    %2333 = vmatpush1.msra.mxu0 %v721
    %2334 = vmatprep.subr.mxu0 %v726
    %2335 = vmatpush1.msra.mxu0 %v725
    %2336 = vmatprep.subr.mxu0 %v730
    %2337 = vmatpush1.msra.mxu0 %v729
    %2338 = vmatprep.subr.mxu0 %v734
    %2339 = vmatpush1.msra.mxu0 %v733
    %2340 = vmatprep.subr.mxu0 %v738
    %2341 = vmatpush1.msra.mxu0 %v737
    %2342 = vmatprep.subr.mxu0 %v742
    %2343 = vmatpush1.msra.mxu0 %v741
    %2344 = vmatprep.subr.mxu0 %v746
    %2345 = vmatpush1.msra.mxu0 %v745
    %2346 = vmatprep.subr.mxu0 %v750
    %2347 = vmatpush1.msra.mxu0 %v749
    %2348 = vmatprep.subr.mxu0 %v754
    %2349 = vmatpush1.msra.mxu0 %v753
    %2350 = vmatprep.subr.mxu0 %v758
    %2351 = vmatpush1.msra.mxu0 %v757
    %2352 = vmatprep.subr.mxu0 %v762
    %2353 = vmatpush1.msra.mxu0 %v761
    %2354 = vmatprep.subr.mxu0 0.0
    %2355 = vmatpush1.msra.mxu0 0.0
    %2356 = vmatprep.subr.mxu0 0.0
    %2357 = vmatpush1.msra.mxu0 0.0
    %2358 = vmatprep.subr.mxu0 0.0
    %2359 = vmatpush1.msra.mxu0 0.0
    %2360 = vmatprep.subr.mxu0 0.0
    %2361 = vmatpush1.msra.mxu0 0.0
    %2362 = vmatprep.subr.mxu0 0.0
    %2363 = vmatpush1.msra.mxu0 0.0
    %2364 = vmatprep.subr.mxu0 0.0
    %2365 = vmatpush1.msra.mxu0 0.0
    %2366 = vmatprep.subr.mxu0 0.0
    %2367 = vmatpush1.msra.mxu0 0.0
    %2368 = vmatprep.subr.mxu0 0.0
    %2369 = vmatpush1.msra.mxu0 0.0
    %2370 = vmatprep.subr.mxu0 0.0
    %2371 = vmatpush1.msra.mxu0 0.0
    %2372 = vmatprep.subr.mxu0 0.0
    %2373 = vmatpush1.msra.mxu0 0.0
    %2374 = vmatprep.subr.mxu0 0.0
    %2375 = vmatpush1.msra.mxu0 0.0
    %2376 = vmatprep.subr.mxu0 0.0
    %2377 = vmatpush1.msra.mxu0 0.0
    %2378 = vmatprep.subr.mxu0 0.0
    %2379 = vmatpush1.msra.mxu0 0.0
    %2380 = vmatprep.subr.mxu0 0.0
    %2381 = vmatpush1.msra.mxu0 0.0
    %2382 = vmatprep.subr.mxu0 0.0
    %2383 = vmatpush1.msra.mxu0 0.0
    %2384 = vmatprep.subr.mxu0 0.0
    %2385 = vmatpush1.msra.mxu0 0.0
    %2386 = vmatprep.mubr.f32.mxu0 0.0
    %2387 = vmatmul.mubr.f32.gmra.mrb[0].mxu0 %v2066
    %v2388 = vpop.f32.mrb[0].mxu0
    %v2389 = vadd.f32 0.0, %v2388
    %v2390 = vpop.f32.mrb[0].mxu0
    %v2391 = vadd.f32 0.0, %v2390
    %2392 = vdwg.mxu0
    %v2393 = vadd.f32 %v2247, %v2318
    %v2394 = vadd.f32 %v2248, %v2320
    %v2395 = vadd.f32 %v2249, %v2389
    %v2396 = vadd.f32 %v2250, %v2391
    %v2397 = vxor.u32 %v2393, 2147483648
    %v2398 = vmul.f32 %v2397, 1.442695
    %v2399 = vpow.pop %v2398
    %v2400 = vadd.f32 %v2399, 1.0
    %v2401 = vrcp.pop %v2400
    %v2402 = vmul.f32 1.0, %v2401
    %v2403 = vxor.u32 %v2394, 2147483648
    %v2404 = vmul.f32 %v2403, 1.442695
    %v2405 = vpow.pop %v2404
    %v2406 = vadd.f32 %v2405, 1.0
    %v2407 = vrcp.pop %v2406
    %v2408 = vmul.f32 1.0, %v2407
    %v2409 = vtanh.pop %v2395
    %v2410 = vxor.u32 %v2396, 2147483648
    %v2411 = vmul.f32 %v2410, 1.442695
    %v2412 = vpow.pop %v2411
    %v2413 = vadd.f32 %v2412, 1.0
    %v2414 = vrcp.pop %v2413
    %v2415 = vmul.f32 1.0, %v2414
    %v2416 = vmul.f32 %v2408, %v2064
    %v2417 = vmul.f32 %v2402, %v2409
    %v2418 = vadd.f32 %v2416, %v2417
    %v2419 = vtanh.pop %v2418
    %v2420 = vmul.f32 %v2415, %v2419
    %s2421 = scalar_lea.vmem [#allocation8], 32
    %2422 = vst [vmem:[%s2421] sm:$0xff] %v2420
    %s2423 = scalar_lea.vmem [#allocation4], 96
    %v2424 = vld [vmem:[%s2423] sm:$0xff]
    %v2425 = vld [vmem:[%s2423 + $0x8] sm:$0xff]
    %v2426 = vld [vmem:[%s2423 + $0x10] sm:$0xff]
    %v2427 = vld [vmem:[%s2423 + $0x18] sm:$0xff]
    %2428 = vmatprep.subr.mxu0 %v765
    %2429 = vmatpush1.msra.mxu0 %v764
    %2430 = vmatprep.subr.mxu0 %v769
    %2431 = vmatpush1.msra.mxu0 %v768
    %2432 = vmatprep.subr.mxu0 %v773
    %2433 = vmatpush1.msra.mxu0 %v772
    %2434 = vmatprep.subr.mxu0 %v777
    %2435 = vmatpush1.msra.mxu0 %v776
    %2436 = vmatprep.subr.mxu0 %v781
    %2437 = vmatpush1.msra.mxu0 %v780
    %2438 = vmatprep.subr.mxu0 %v785
    %2439 = vmatpush1.msra.mxu0 %v784
    %2440 = vmatprep.subr.mxu0 %v789
    %2441 = vmatpush1.msra.mxu0 %v788
    %2442 = vmatprep.subr.mxu0 %v793
    %2443 = vmatpush1.msra.mxu0 %v792
    %2444 = vmatprep.subr.mxu0 %v797
    %2445 = vmatpush1.msra.mxu0 %v796
    %2446 = vmatprep.subr.mxu0 %v801
    %2447 = vmatpush1.msra.mxu0 %v800
    %2448 = vmatprep.subr.mxu0 %v805
    %2449 = vmatpush1.msra.mxu0 %v804
    %2450 = vmatprep.subr.mxu0 %v809
    %2451 = vmatpush1.msra.mxu0 %v808
    %2452 = vmatprep.subr.mxu0 %v813
    %2453 = vmatpush1.msra.mxu0 %v812
    %2454 = vmatprep.subr.mxu0 %v817
    %2455 = vmatpush1.msra.mxu0 %v816
    %2456 = vmatprep.subr.mxu0 %v821
    %2457 = vmatpush1.msra.mxu0 %v820
    %2458 = vmatprep.subr.mxu0 %v825
    %2459 = vmatpush1.msra.mxu0 %v824
    %2460 = vmatprep.subr.mxu0 0.0
    %2461 = vmatpush1.msra.mxu0 0.0
    %2462 = vmatprep.subr.mxu0 0.0
    %2463 = vmatpush1.msra.mxu0 0.0
    %2464 = vmatprep.subr.mxu0 0.0
    %2465 = vmatpush1.msra.mxu0 0.0
    %2466 = vmatprep.subr.mxu0 0.0
    %2467 = vmatpush1.msra.mxu0 0.0
    %2468 = vmatprep.subr.mxu0 0.0
    %2469 = vmatpush1.msra.mxu0 0.0
    %2470 = vmatprep.subr.mxu0 0.0
    %2471 = vmatpush1.msra.mxu0 0.0
    %2472 = vmatprep.subr.mxu0 0.0
    %2473 = vmatpush1.msra.mxu0 0.0
    %2474 = vmatprep.subr.mxu0 0.0
    %2475 = vmatpush1.msra.mxu0 0.0
    %2476 = vmatprep.subr.mxu0 0.0
    %2477 = vmatpush1.msra.mxu0 0.0
    %2478 = vmatprep.subr.mxu0 0.0
    %2479 = vmatpush1.msra.mxu0 0.0
    %2480 = vmatprep.subr.mxu0 0.0
    %2481 = vmatpush1.msra.mxu0 0.0
    %2482 = vmatprep.subr.mxu0 0.0
    %2483 = vmatpush1.msra.mxu0 0.0
    %2484 = vmatprep.subr.mxu0 0.0
    %2485 = vmatpush1.msra.mxu0 0.0
    %2486 = vmatprep.subr.mxu0 0.0
    %2487 = vmatpush1.msra.mxu0 0.0
    %2488 = vmatprep.subr.mxu0 0.0
    %2489 = vmatpush1.msra.mxu0 0.0
    %2490 = vmatprep.subr.mxu0 0.0
    %2491 = vmatpush1.msra.mxu0 0.0
    %2492 = vmatprep.mubr.f32.mxu0 0.0
    %2493 = vmatmul.mubr.f32.gmra.mrb[0].mxu0 %v2243
    %v2494 = vpop.f32.mrb[0].mxu0
    %v2495 = vadd.f32 0.0, %v2494
    %v2496 = vpop.f32.mrb[0].mxu0
    %v2497 = vadd.f32 0.0, %v2496
    %2498 = vdwg.mxu0
    %2499 = vmatprep.subr.mxu0 %v767
    %2500 = vmatpush1.msra.mxu0 %v766
    %2501 = vmatprep.subr.mxu0 %v771
    %2502 = vmatpush1.msra.mxu0 %v770
    %2503 = vmatprep.subr.mxu0 %v775
    %2504 = vmatpush1.msra.mxu0 %v774
    %2505 = vmatprep.subr.mxu0 %v779
    %2506 = vmatpush1.msra.mxu0 %v778
    %2507 = vmatprep.subr.mxu0 %v783
    %2508 = vmatpush1.msra.mxu0 %v782
    %2509 = vmatprep.subr.mxu0 %v787
    %2510 = vmatpush1.msra.mxu0 %v786
    %2511 = vmatprep.subr.mxu0 %v791
    %2512 = vmatpush1.msra.mxu0 %v790
    %2513 = vmatprep.subr.mxu0 %v795
    %2514 = vmatpush1.msra.mxu0 %v794
    %2515 = vmatprep.subr.mxu0 %v799
    %2516 = vmatpush1.msra.mxu0 %v798
    %2517 = vmatprep.subr.mxu0 %v803
    %2518 = vmatpush1.msra.mxu0 %v802
    %2519 = vmatprep.subr.mxu0 %v807
    %2520 = vmatpush1.msra.mxu0 %v806
    %2521 = vmatprep.subr.mxu0 %v811
    %2522 = vmatpush1.msra.mxu0 %v810
    %2523 = vmatprep.subr.mxu0 %v815
    %2524 = vmatpush1.msra.mxu0 %v814
    %2525 = vmatprep.subr.mxu0 %v819
    %2526 = vmatpush1.msra.mxu0 %v818
    %2527 = vmatprep.subr.mxu0 %v823
    %2528 = vmatpush1.msra.mxu0 %v822
    %2529 = vmatprep.subr.mxu0 %v827
    %2530 = vmatpush1.msra.mxu0 %v826
    %2531 = vmatprep.subr.mxu0 0.0
    %2532 = vmatpush1.msra.mxu0 0.0
    %2533 = vmatprep.subr.mxu0 0.0
    %2534 = vmatpush1.msra.mxu0 0.0
    %2535 = vmatprep.subr.mxu0 0.0
    %2536 = vmatpush1.msra.mxu0 0.0
    %2537 = vmatprep.subr.mxu0 0.0
    %2538 = vmatpush1.msra.mxu0 0.0
    %2539 = vmatprep.subr.mxu0 0.0
    %2540 = vmatpush1.msra.mxu0 0.0
    %2541 = vmatprep.subr.mxu0 0.0
    %2542 = vmatpush1.msra.mxu0 0.0
    %2543 = vmatprep.subr.mxu0 0.0
    %2544 = vmatpush1.msra.mxu0 0.0
    %2545 = vmatprep.subr.mxu0 0.0
    %2546 = vmatpush1.msra.mxu0 0.0
    %2547 = vmatprep.subr.mxu0 0.0
    %2548 = vmatpush1.msra.mxu0 0.0
    %2549 = vmatprep.subr.mxu0 0.0
    %2550 = vmatpush1.msra.mxu0 0.0
    %2551 = vmatprep.subr.mxu0 0.0
    %2552 = vmatpush1.msra.mxu0 0.0
    %2553 = vmatprep.subr.mxu0 0.0
    %2554 = vmatpush1.msra.mxu0 0.0
    %2555 = vmatprep.subr.mxu0 0.0
    %2556 = vmatpush1.msra.mxu0 0.0
    %2557 = vmatprep.subr.mxu0 0.0
    %2558 = vmatpush1.msra.mxu0 0.0
    %2559 = vmatprep.subr.mxu0 0.0
    %2560 = vmatpush1.msra.mxu0 0.0
    %2561 = vmatprep.subr.mxu0 0.0
    %2562 = vmatpush1.msra.mxu0 0.0
    %2563 = vmatprep.mubr.f32.mxu0 0.0
    %2564 = vmatmul.mubr.f32.gmra.mrb[0].mxu0 %v2243
    %v2565 = vpop.f32.mrb[0].mxu0
    %v2566 = vadd.f32 0.0, %v2565
    %v2567 = vpop.f32.mrb[0].mxu0
    %v2568 = vadd.f32 0.0, %v2567
    %2569 = vdwg.mxu0
    %v2570 = vadd.f32 %v2424, %v2495
    %v2571 = vadd.f32 %v2425, %v2497
    %v2572 = vadd.f32 %v2426, %v2566
    %v2573 = vadd.f32 %v2427, %v2568
    %v2574 = vxor.u32 %v2570, 2147483648
    %v2575 = vmul.f32 %v2574, 1.442695
    %v2576 = vpow.pop %v2575
    %v2577 = vadd.f32 %v2576, 1.0
    %v2578 = vrcp.pop %v2577
    %v2579 = vmul.f32 1.0, %v2578
    %v2580 = vxor.u32 %v2571, 2147483648
    %v2581 = vmul.f32 %v2580, 1.442695
    %v2582 = vpow.pop %v2581
    %v2583 = vadd.f32 %v2582, 1.0
    %v2584 = vrcp.pop %v2583
    %v2585 = vmul.f32 1.0, %v2584
    %v2586 = vtanh.pop %v2572
    %v2587 = vxor.u32 %v2573, 2147483648
    %v2588 = vmul.f32 %v2587, 1.442695
    %v2589 = vpow.pop %v2588
    %v2590 = vadd.f32 %v2589, 1.0
    %v2591 = vrcp.pop %v2590
    %v2592 = vmul.f32 1.0, %v2591
    %v2593 = vmul.f32 %v2585, %v2241
    %v2594 = vmul.f32 %v2579, %v2586
    %v2595 = vadd.f32 %v2593, %v2594
    %v2596 = vtanh.pop %v2595
    %v2597 = vmul.f32 %v2592, %v2596
    %s2598 = scalar_lea.vmem [#allocation9], 24
    %2599 = vst [vmem:[%s2598] sm:$0xff] %v2597
    %s2600 = scalar_lea.vmem [#allocation3], 160
    %v2601 = vld [vmem:[%s2600] sm:$0xff]
    %v2602 = vld [vmem:[%s2600 + $0x8] sm:$0xff]
    %v2603 = vld [vmem:[%s2600 + $0x10] sm:$0xff]
    %v2604 = vld [vmem:[%s2600 + $0x18] sm:$0xff]
    %2605 = vmatprep.subr.mxu0 %v700
    %2606 = vmatpush1.msra.mxu0 %v699
    %2607 = vmatprep.subr.mxu0 %v704
    %2608 = vmatpush1.msra.mxu0 %v703
    %2609 = vmatprep.subr.mxu0 %v708
    %2610 = vmatpush1.msra.mxu0 %v707
    %2611 = vmatprep.subr.mxu0 %v712
    %2612 = vmatpush1.msra.mxu0 %v711
    %2613 = vmatprep.subr.mxu0 %v716
    %2614 = vmatpush1.msra.mxu0 %v715
    %2615 = vmatprep.subr.mxu0 %v720
    %2616 = vmatpush1.msra.mxu0 %v719
    %2617 = vmatprep.subr.mxu0 %v724
    %2618 = vmatpush1.msra.mxu0 %v723
    %2619 = vmatprep.subr.mxu0 %v728
    %2620 = vmatpush1.msra.mxu0 %v727
    %2621 = vmatprep.subr.mxu0 %v732
    %2622 = vmatpush1.msra.mxu0 %v731
    %2623 = vmatprep.subr.mxu0 %v736
    %2624 = vmatpush1.msra.mxu0 %v735
    %2625 = vmatprep.subr.mxu0 %v740
    %2626 = vmatpush1.msra.mxu0 %v739
    %2627 = vmatprep.subr.mxu0 %v744
    %2628 = vmatpush1.msra.mxu0 %v743
    %2629 = vmatprep.subr.mxu0 %v748
    %2630 = vmatpush1.msra.mxu0 %v747
    %2631 = vmatprep.subr.mxu0 %v752
    %2632 = vmatpush1.msra.mxu0 %v751
    %2633 = vmatprep.subr.mxu0 %v756
    %2634 = vmatpush1.msra.mxu0 %v755
    %2635 = vmatprep.subr.mxu0 %v760
    %2636 = vmatpush1.msra.mxu0 %v759
    %2637 = vmatprep.subr.mxu0 0.0
    %2638 = vmatpush1.msra.mxu0 0.0
    %2639 = vmatprep.subr.mxu0 0.0
    %2640 = vmatpush1.msra.mxu0 0.0
    %2641 = vmatprep.subr.mxu0 0.0
    %2642 = vmatpush1.msra.mxu0 0.0
    %2643 = vmatprep.subr.mxu0 0.0
    %2644 = vmatpush1.msra.mxu0 0.0
    %2645 = vmatprep.subr.mxu0 0.0
    %2646 = vmatpush1.msra.mxu0 0.0
    %2647 = vmatprep.subr.mxu0 0.0
    %2648 = vmatpush1.msra.mxu0 0.0
    %2649 = vmatprep.subr.mxu0 0.0
    %2650 = vmatpush1.msra.mxu0 0.0
    %2651 = vmatprep.subr.mxu0 0.0
    %2652 = vmatpush1.msra.mxu0 0.0
    %2653 = vmatprep.subr.mxu0 0.0
    %2654 = vmatpush1.msra.mxu0 0.0
    %2655 = vmatprep.subr.mxu0 0.0
    %2656 = vmatpush1.msra.mxu0 0.0
    %2657 = vmatprep.subr.mxu0 0.0
    %2658 = vmatpush1.msra.mxu0 0.0
    %2659 = vmatprep.subr.mxu0 0.0
    %2660 = vmatpush1.msra.mxu0 0.0
    %2661 = vmatprep.subr.mxu0 0.0
    %2662 = vmatpush1.msra.mxu0 0.0
    %2663 = vmatprep.subr.mxu0 0.0
    %2664 = vmatpush1.msra.mxu0 0.0
    %2665 = vmatprep.subr.mxu0 0.0
    %2666 = vmatpush1.msra.mxu0 0.0
    %2667 = vmatprep.subr.mxu0 0.0
    %2668 = vmatpush1.msra.mxu0 0.0
    %2669 = vmatprep.mubr.f32.mxu0 0.0
    %2670 = vmatmul.mubr.f32.gmra.mrb[0].mxu0 %v2420
    %v2671 = vpop.f32.mrb[0].mxu0
    %v2672 = vadd.f32 0.0, %v2671
    %v2673 = vpop.f32.mrb[0].mxu0
    %v2674 = vadd.f32 0.0, %v2673
    %2675 = vdwg.mxu0
    %2676 = vmatprep.subr.mxu0 %v702
    %2677 = vmatpush1.msra.mxu0 %v701
    %2678 = vmatprep.subr.mxu0 %v706
    %2679 = vmatpush1.msra.mxu0 %v705
    %2680 = vmatprep.subr.mxu0 %v710
    %2681 = vmatpush1.msra.mxu0 %v709
    %2682 = vmatprep.subr.mxu0 %v714
    %2683 = vmatpush1.msra.mxu0 %v713
    %2684 = vmatprep.subr.mxu0 %v718
    %2685 = vmatpush1.msra.mxu0 %v717
    %2686 = vmatprep.subr.mxu0 %v722
    %2687 = vmatpush1.msra.mxu0 %v721
    %2688 = vmatprep.subr.mxu0 %v726
    %2689 = vmatpush1.msra.mxu0 %v725
    %2690 = vmatprep.subr.mxu0 %v730
    %2691 = vmatpush1.msra.mxu0 %v729
    %2692 = vmatprep.subr.mxu0 %v734
    %2693 = vmatpush1.msra.mxu0 %v733
    %2694 = vmatprep.subr.mxu0 %v738
    %2695 = vmatpush1.msra.mxu0 %v737
    %2696 = vmatprep.subr.mxu0 %v742
    %2697 = vmatpush1.msra.mxu0 %v741
    %2698 = vmatprep.subr.mxu0 %v746
    %2699 = vmatpush1.msra.mxu0 %v745
    %2700 = vmatprep.subr.mxu0 %v750
    %2701 = vmatpush1.msra.mxu0 %v749
    %2702 = vmatprep.subr.mxu0 %v754
    %2703 = vmatpush1.msra.mxu0 %v753
    %2704 = vmatprep.subr.mxu0 %v758
    %2705 = vmatpush1.msra.mxu0 %v757
    %2706 = vmatprep.subr.mxu0 %v762
    %2707 = vmatpush1.msra.mxu0 %v761
    %2708 = vmatprep.subr.mxu0 0.0
    %2709 = vmatpush1.msra.mxu0 0.0
    %2710 = vmatprep.subr.mxu0 0.0
    %2711 = vmatpush1.msra.mxu0 0.0
    %2712 = vmatprep.subr.mxu0 0.0
    %2713 = vmatpush1.msra.mxu0 0.0
    %2714 = vmatprep.subr.mxu0 0.0
    %2715 = vmatpush1.msra.mxu0 0.0
    %2716 = vmatprep.subr.mxu0 0.0
    %2717 = vmatpush1.msra.mxu0 0.0
    %2718 = vmatprep.subr.mxu0 0.0
    %2719 = vmatpush1.msra.mxu0 0.0
    %2720 = vmatprep.subr.mxu0 0.0
    %2721 = vmatpush1.msra.mxu0 0.0
    %2722 = vmatprep.subr.mxu0 0.0
    %2723 = vmatpush1.msra.mxu0 0.0
    %2724 = vmatprep.subr.mxu0 0.0
    %2725 = vmatpush1.msra.mxu0 0.0
    %2726 = vmatprep.subr.mxu0 0.0
    %2727 = vmatpush1.msra.mxu0 0.0
    %2728 = vmatprep.subr.mxu0 0.0
    %2729 = vmatpush1.msra.mxu0 0.0
    %2730 = vmatprep.subr.mxu0 0.0
    %2731 = vmatpush1.msra.mxu0 0.0
    %2732 = vmatprep.subr.mxu0 0.0
    %2733 = vmatpush1.msra.mxu0 0.0
    %2734 = vmatprep.subr.mxu0 0.0
    %2735 = vmatpush1.msra.mxu0 0.0
    %2736 = vmatprep.subr.mxu0 0.0
    %2737 = vmatpush1.msra.mxu0 0.0
    %2738 = vmatprep.subr.mxu0 0.0
    %2739 = vmatpush1.msra.mxu0 0.0
    %2740 = vmatprep.mubr.f32.mxu0 0.0
    %2741 = vmatmul.mubr.f32.gmra.mrb[0].mxu0 %v2420
    %v2742 = vpop.f32.mrb[0].mxu0
    %v2743 = vadd.f32 0.0, %v2742
    %v2744 = vpop.f32.mrb[0].mxu0
    %v2745 = vadd.f32 0.0, %v2744
    %2746 = vdwg.mxu0
    %v2747 = vadd.f32 %v2601, %v2672
    %v2748 = vadd.f32 %v2602, %v2674
    %v2749 = vadd.f32 %v2603, %v2743
    %v2750 = vadd.f32 %v2604, %v2745
    %v2751 = vxor.u32 %v2747, 2147483648
    %v2752 = vmul.f32 %v2751, 1.442695
    %v2753 = vpow.pop %v2752
    %v2754 = vadd.f32 %v2753, 1.0
    %v2755 = vrcp.pop %v2754
    %v2756 = vmul.f32 1.0, %v2755
    %v2757 = vxor.u32 %v2748, 2147483648
    %v2758 = vmul.f32 %v2757, 1.442695
    %v2759 = vpow.pop %v2758
    %v2760 = vadd.f32 %v2759, 1.0
    %v2761 = vrcp.pop %v2760
    %v2762 = vmul.f32 1.0, %v2761
    %v2763 = vtanh.pop %v2749
    %v2764 = vxor.u32 %v2750, 2147483648
    %v2765 = vmul.f32 %v2764, 1.442695
    %v2766 = vpow.pop %v2765
    %v2767 = vadd.f32 %v2766, 1.0
    %v2768 = vrcp.pop %v2767
    %v2769 = vmul.f32 1.0, %v2768
    %v2770 = vmul.f32 %v2762, %v2418
    %v2771 = vmul.f32 %v2756, %v2763
    %v2772 = vadd.f32 %v2770, %v2771
    %v2773 = vtanh.pop %v2772
    %v2774 = vmul.f32 %v2769, %v2773
    %s2775 = scalar_lea.vmem [#allocation8], 40
    %2776 = vst [vmem:[%s2775] sm:$0xff] %v2774
    %s2777 = scalar_lea.vmem [#allocation4], 64
    %v2778 = vld [vmem:[%s2777] sm:$0xff]
    %v2779 = vld [vmem:[%s2777 + $0x8] sm:$0xff]
    %v2780 = vld [vmem:[%s2777 + $0x10] sm:$0xff]
    %v2781 = vld [vmem:[%s2777 + $0x18] sm:$0xff]
    %2782 = vmatprep.subr.mxu0 %v765
    %2783 = vmatpush1.msra.mxu0 %v764
    %2784 = vmatprep.subr.mxu0 %v769
    %2785 = vmatpush1.msra.mxu0 %v768
    %2786 = vmatprep.subr.mxu0 %v773
    %2787 = vmatpush1.msra.mxu0 %v772
    %2788 = vmatprep.subr.mxu0 %v777
    %2789 = vmatpush1.msra.mxu0 %v776
    %2790 = vmatprep.subr.mxu0 %v781
    %2791 = vmatpush1.msra.mxu0 %v780
    %2792 = vmatprep.subr.mxu0 %v785
    %2793 = vmatpush1.msra.mxu0 %v784
    %2794 = vmatprep.subr.mxu0 %v789
    %2795 = vmatpush1.msra.mxu0 %v788
    %2796 = vmatprep.subr.mxu0 %v793
    %2797 = vmatpush1.msra.mxu0 %v792
    %2798 = vmatprep.subr.mxu0 %v797
    %2799 = vmatpush1.msra.mxu0 %v796
    %2800 = vmatprep.subr.mxu0 %v801
    %2801 = vmatpush1.msra.mxu0 %v800
    %2802 = vmatprep.subr.mxu0 %v805
    %2803 = vmatpush1.msra.mxu0 %v804
    %2804 = vmatprep.subr.mxu0 %v809
    %2805 = vmatpush1.msra.mxu0 %v808
    %2806 = vmatprep.subr.mxu0 %v813
    %2807 = vmatpush1.msra.mxu0 %v812
    %2808 = vmatprep.subr.mxu0 %v817
    %2809 = vmatpush1.msra.mxu0 %v816
    %2810 = vmatprep.subr.mxu0 %v821
    %2811 = vmatpush1.msra.mxu0 %v820
    %2812 = vmatprep.subr.mxu0 %v825
    %2813 = vmatpush1.msra.mxu0 %v824
    %2814 = vmatprep.subr.mxu0 0.0
    %2815 = vmatpush1.msra.mxu0 0.0
    %2816 = vmatprep.subr.mxu0 0.0
    %2817 = vmatpush1.msra.mxu0 0.0
    %2818 = vmatprep.subr.mxu0 0.0
    %2819 = vmatpush1.msra.mxu0 0.0
    %2820 = vmatprep.subr.mxu0 0.0
    %2821 = vmatpush1.msra.mxu0 0.0
    %2822 = vmatprep.subr.mxu0 0.0
    %2823 = vmatpush1.msra.mxu0 0.0
    %2824 = vmatprep.subr.mxu0 0.0
    %2825 = vmatpush1.msra.mxu0 0.0
    %2826 = vmatprep.subr.mxu0 0.0
    %2827 = vmatpush1.msra.mxu0 0.0
    %2828 = vmatprep.subr.mxu0 0.0
    %2829 = vmatpush1.msra.mxu0 0.0
    %2830 = vmatprep.subr.mxu0 0.0
    %2831 = vmatpush1.msra.mxu0 0.0
    %2832 = vmatprep.subr.mxu0 0.0
    %2833 = vmatpush1.msra.mxu0 0.0
    %2834 = vmatprep.subr.mxu0 0.0
    %2835 = vmatpush1.msra.mxu0 0.0
    %2836 = vmatprep.subr.mxu0 0.0
    %2837 = vmatpush1.msra.mxu0 0.0
    %2838 = vmatprep.subr.mxu0 0.0
    %2839 = vmatpush1.msra.mxu0 0.0
    %2840 = vmatprep.subr.mxu0 0.0
    %2841 = vmatpush1.msra.mxu0 0.0
    %2842 = vmatprep.subr.mxu0 0.0
    %2843 = vmatpush1.msra.mxu0 0.0
    %2844 = vmatprep.subr.mxu0 0.0
    %2845 = vmatpush1.msra.mxu0 0.0
    %2846 = vmatprep.mubr.f32.mxu0 0.0
    %2847 = vmatmul.mubr.f32.gmra.mrb[0].mxu0 %v2597
    %v2848 = vpop.f32.mrb[0].mxu0
    %v2849 = vadd.f32 0.0, %v2848
    %v2850 = vpop.f32.mrb[0].mxu0
    %v2851 = vadd.f32 0.0, %v2850
    %2852 = vdwg.mxu0
    %2853 = vmatprep.subr.mxu0 %v767
    %2854 = vmatpush1.msra.mxu0 %v766
    %2855 = vmatprep.subr.mxu0 %v771
    %2856 = vmatpush1.msra.mxu0 %v770
    %2857 = vmatprep.subr.mxu0 %v775
    %2858 = vmatpush1.msra.mxu0 %v774
    %2859 = vmatprep.subr.mxu0 %v779
    %2860 = vmatpush1.msra.mxu0 %v778
    %2861 = vmatprep.subr.mxu0 %v783
    %2862 = vmatpush1.msra.mxu0 %v782
    %2863 = vmatprep.subr.mxu0 %v787
    %2864 = vmatpush1.msra.mxu0 %v786
    %2865 = vmatprep.subr.mxu0 %v791
    %2866 = vmatpush1.msra.mxu0 %v790
    %2867 = vmatprep.subr.mxu0 %v795
    %2868 = vmatpush1.msra.mxu0 %v794
    %2869 = vmatprep.subr.mxu0 %v799
    %2870 = vmatpush1.msra.mxu0 %v798
    %2871 = vmatprep.subr.mxu0 %v803
    %2872 = vmatpush1.msra.mxu0 %v802
    %2873 = vmatprep.subr.mxu0 %v807
    %2874 = vmatpush1.msra.mxu0 %v806
    %2875 = vmatprep.subr.mxu0 %v811
    %2876 = vmatpush1.msra.mxu0 %v810
    %2877 = vmatprep.subr.mxu0 %v815
    %2878 = vmatpush1.msra.mxu0 %v814
    %2879 = vmatprep.subr.mxu0 %v819
    %2880 = vmatpush1.msra.mxu0 %v818
    %2881 = vmatprep.subr.mxu0 %v823
    %2882 = vmatpush1.msra.mxu0 %v822
    %2883 = vmatprep.subr.mxu0 %v827
    %2884 = vmatpush1.msra.mxu0 %v826
    %2885 = vmatprep.subr.mxu0 0.0
    %2886 = vmatpush1.msra.mxu0 0.0
    %2887 = vmatprep.subr.mxu0 0.0
    %2888 = vmatpush1.msra.mxu0 0.0
    %2889 = vmatprep.subr.mxu0 0.0
    %2890 = vmatpush1.msra.mxu0 0.0
    %2891 = vmatprep.subr.mxu0 0.0
    %2892 = vmatpush1.msra.mxu0 0.0
    %2893 = vmatprep.subr.mxu0 0.0
    %2894 = vmatpush1.msra.mxu0 0.0
    %2895 = vmatprep.subr.mxu0 0.0
    %2896 = vmatpush1.msra.mxu0 0.0
    %2897 = vmatprep.subr.mxu0 0.0
    %2898 = vmatpush1.msra.mxu0 0.0
    %2899 = vmatprep.subr.mxu0 0.0
    %2900 = vmatpush1.msra.mxu0 0.0
    %2901 = vmatprep.subr.mxu0 0.0
    %2902 = vmatpush1.msra.mxu0 0.0
    %2903 = vmatprep.subr.mxu0 0.0
    %2904 = vmatpush1.msra.mxu0 0.0
    %2905 = vmatprep.subr.mxu0 0.0
    %2906 = vmatpush1.msra.mxu0 0.0
    %2907 = vmatprep.subr.mxu0 0.0
    %2908 = vmatpush1.msra.mxu0 0.0
    %2909 = vmatprep.subr.mxu0 0.0
    %2910 = vmatpush1.msra.mxu0 0.0
    %2911 = vmatprep.subr.mxu0 0.0
    %2912 = vmatpush1.msra.mxu0 0.0
    %2913 = vmatprep.subr.mxu0 0.0
    %2914 = vmatpush1.msra.mxu0 0.0
    %2915 = vmatprep.subr.mxu0 0.0
    %2916 = vmatpush1.msra.mxu0 0.0
    %2917 = vmatprep.mubr.f32.mxu0 0.0
    %2918 = vmatmul.mubr.f32.gmra.mrb[0].mxu0 %v2597
    %v2919 = vpop.f32.mrb[0].mxu0
    %v2920 = vadd.f32 0.0, %v2919
    %v2921 = vpop.f32.mrb[0].mxu0
    %v2922 = vadd.f32 0.0, %v2921
    %2923 = vdwg.mxu0
    %v2924 = vadd.f32 %v2778, %v2849
    %v2925 = vadd.f32 %v2779, %v2851
    %v2926 = vadd.f32 %v2780, %v2920
    %v2927 = vadd.f32 %v2781, %v2922
    %v2928 = vxor.u32 %v2924, 2147483648
    %v2929 = vmul.f32 %v2928, 1.442695
    %v2930 = vpow.pop %v2929
    %v2931 = vadd.f32 %v2930, 1.0
    %v2932 = vrcp.pop %v2931
    %v2933 = vmul.f32 1.0, %v2932
    %v2934 = vxor.u32 %v2925, 2147483648
    %v2935 = vmul.f32 %v2934, 1.442695
    %v2936 = vpow.pop %v2935
    %v2937 = vadd.f32 %v2936, 1.0
    %v2938 = vrcp.pop %v2937
    %v2939 = vmul.f32 1.0, %v2938
    %v2940 = vtanh.pop %v2926
    %v2941 = vxor.u32 %v2927, 2147483648
    %v2942 = vmul.f32 %v2941, 1.442695
    %v2943 = vpow.pop %v2942
    %v2944 = vadd.f32 %v2943, 1.0
    %v2945 = vrcp.pop %v2944
    %v2946 = vmul.f32 1.0, %v2945
    %v2947 = vmul.f32 %v2939, %v2595
    %v2948 = vmul.f32 %v2933, %v2940
    %v2949 = vadd.f32 %v2947, %v2948
    %v2950 = vtanh.pop %v2949
    %v2951 = vmul.f32 %v2946, %v2950
    %s2952 = scalar_lea.vmem [#allocation9], 16
    %2953 = vst [vmem:[%s2952] sm:$0xff] %v2951
    %s2954 = scalar_lea.vmem [#allocation3], 192
    %v2955 = vld [vmem:[%s2954] sm:$0xff]
    %v2956 = vld [vmem:[%s2954 + $0x8] sm:$0xff]
    %v2957 = vld [vmem:[%s2954 + $0x10] sm:$0xff]
    %v2958 = vld [vmem:[%s2954 + $0x18] sm:$0xff]
    %2959 = vmatprep.subr.mxu0 %v700
    %2960 = vmatpush1.msra.mxu0 %v699
    %2961 = vmatprep.subr.mxu0 %v704
    %2962 = vmatpush1.msra.mxu0 %v703
    %2963 = vmatprep.subr.mxu0 %v708
    %2964 = vmatpush1.msra.mxu0 %v707
    %2965 = vmatprep.subr.mxu0 %v712
    %2966 = vmatpush1.msra.mxu0 %v711
    %2967 = vmatprep.subr.mxu0 %v716
    %2968 = vmatpush1.msra.mxu0 %v715
    %2969 = vmatprep.subr.mxu0 %v720
    %2970 = vmatpush1.msra.mxu0 %v719
    %2971 = vmatprep.subr.mxu0 %v724
    %2972 = vmatpush1.msra.mxu0 %v723
    %2973 = vmatprep.subr.mxu0 %v728
    %2974 = vmatpush1.msra.mxu0 %v727
    %2975 = vmatprep.subr.mxu0 %v732
    %2976 = vmatpush1.msra.mxu0 %v731
    %2977 = vmatprep.subr.mxu0 %v736
    %2978 = vmatpush1.msra.mxu0 %v735
    %2979 = vmatprep.subr.mxu0 %v740
    %2980 = vmatpush1.msra.mxu0 %v739
    %2981 = vmatprep.subr.mxu0 %v744
    %2982 = vmatpush1.msra.mxu0 %v743
    %2983 = vmatprep.subr.mxu0 %v748
    %2984 = vmatpush1.msra.mxu0 %v747
    %2985 = vmatprep.subr.mxu0 %v752
    %2986 = vmatpush1.msra.mxu0 %v751
    %2987 = vmatprep.subr.mxu0 %v756
    %2988 = vmatpush1.msra.mxu0 %v755
    %2989 = vmatprep.subr.mxu0 %v760
    %2990 = vmatpush1.msra.mxu0 %v759
    %2991 = vmatprep.subr.mxu0 0.0
    %2992 = vmatpush1.msra.mxu0 0.0
    %2993 = vmatprep.subr.mxu0 0.0
    %2994 = vmatpush1.msra.mxu0 0.0
    %2995 = vmatprep.subr.mxu0 0.0
    %2996 = vmatpush1.msra.mxu0 0.0
    %2997 = vmatprep.subr.mxu0 0.0
    %2998 = vmatpush1.msra.mxu0 0.0
    %2999 = vmatprep.subr.mxu0 0.0
    %3000 = vmatpush1.msra.mxu0 0.0
    %3001 = vmatprep.subr.mxu0 0.0
    %3002 = vmatpush1.msra.mxu0 0.0
    %3003 = vmatprep.subr.mxu0 0.0
    %3004 = vmatpush1.msra.mxu0 0.0
    %3005 = vmatprep.subr.mxu0 0.0
    %3006 = vmatpush1.msra.mxu0 0.0
    %3007 = vmatprep.subr.mxu0 0.0
    %3008 = vmatpush1.msra.mxu0 0.0
    %3009 = vmatprep.subr.mxu0 0.0
    %3010 = vmatpush1.msra.mxu0 0.0
    %3011 = vmatprep.subr.mxu0 0.0
    %3012 = vmatpush1.msra.mxu0 0.0
    %3013 = vmatprep.subr.mxu0 0.0
    %3014 = vmatpush1.msra.mxu0 0.0
    %3015 = vmatprep.subr.mxu0 0.0
    %3016 = vmatpush1.msra.mxu0 0.0
    %3017 = vmatprep.subr.mxu0 0.0
    %3018 = vmatpush1.msra.mxu0 0.0
    %3019 = vmatprep.subr.mxu0 0.0
    %3020 = vmatpush1.msra.mxu0 0.0
    %3021 = vmatprep.subr.mxu0 0.0
    %3022 = vmatpush1.msra.mxu0 0.0
    %3023 = vmatprep.mubr.f32.mxu0 0.0
    %3024 = vmatmul.mubr.f32.gmra.mrb[0].mxu0 %v2774
    %v3025 = vpop.f32.mrb[0].mxu0
    %v3026 = vadd.f32 0.0, %v3025
    %v3027 = vpop.f32.mrb[0].mxu0
    %v3028 = vadd.f32 0.0, %v3027
    %3029 = vdwg.mxu0
    %3030 = vmatprep.subr.mxu0 %v702
    %3031 = vmatpush1.msra.mxu0 %v701
    %3032 = vmatprep.subr.mxu0 %v706
    %3033 = vmatpush1.msra.mxu0 %v705
    %3034 = vmatprep.subr.mxu0 %v710
    %3035 = vmatpush1.msra.mxu0 %v709
    %3036 = vmatprep.subr.mxu0 %v714
    %3037 = vmatpush1.msra.mxu0 %v713
    %3038 = vmatprep.subr.mxu0 %v718
    %3039 = vmatpush1.msra.mxu0 %v717
    %3040 = vmatprep.subr.mxu0 %v722
    %3041 = vmatpush1.msra.mxu0 %v721
    %3042 = vmatprep.subr.mxu0 %v726
    %3043 = vmatpush1.msra.mxu0 %v725
    %3044 = vmatprep.subr.mxu0 %v730
    %3045 = vmatpush1.msra.mxu0 %v729
    %3046 = vmatprep.subr.mxu0 %v734
    %3047 = vmatpush1.msra.mxu0 %v733
    %3048 = vmatprep.subr.mxu0 %v738
    %3049 = vmatpush1.msra.mxu0 %v737
    %3050 = vmatprep.subr.mxu0 %v742
    %3051 = vmatpush1.msra.mxu0 %v741
    %3052 = vmatprep.subr.mxu0 %v746
    %3053 = vmatpush1.msra.mxu0 %v745
    %3054 = vmatprep.subr.mxu0 %v750
    %3055 = vmatpush1.msra.mxu0 %v749
    %3056 = vmatprep.subr.mxu0 %v754
    %3057 = vmatpush1.msra.mxu0 %v753
    %3058 = vmatprep.subr.mxu0 %v758
    %3059 = vmatpush1.msra.mxu0 %v757
    %3060 = vmatprep.subr.mxu0 %v762
    %3061 = vmatpush1.msra.mxu0 %v761
    %3062 = vmatprep.subr.mxu0 0.0
    %3063 = vmatpush1.msra.mxu0 0.0
    %3064 = vmatprep.subr.mxu0 0.0
    %3065 = vmatpush1.msra.mxu0 0.0
    %3066 = vmatprep.subr.mxu0 0.0
    %3067 = vmatpush1.msra.mxu0 0.0
    %3068 = vmatprep.subr.mxu0 0.0
    %3069 = vmatpush1.msra.mxu0 0.0
    %3070 = vmatprep.subr.mxu0 0.0
    %3071 = vmatpush1.msra.mxu0 0.0
    %3072 = vmatprep.subr.mxu0 0.0
    %3073 = vmatpush1.msra.mxu0 0.0
    %3074 = vmatprep.subr.mxu0 0.0
    %3075 = vmatpush1.msra.mxu0 0.0
    %3076 = vmatprep.subr.mxu0 0.0
    %3077 = vmatpush1.msra.mxu0 0.0
    %3078 = vmatprep.subr.mxu0 0.0
    %3079 = vmatpush1.msra.mxu0 0.0
    %3080 = vmatprep.subr.mxu0 0.0
    %3081 = vmatpush1.msra.mxu0 0.0
    %3082 = vmatprep.subr.mxu0 0.0
    %3083 = vmatpush1.msra.mxu0 0.0
    %3084 = vmatprep.subr.mxu0 0.0
    %3085 = vmatpush1.msra.mxu0 0.0
    %3086 = vmatprep.subr.mxu0 0.0
    %3087 = vmatpush1.msra.mxu0 0.0
    %3088 = vmatprep.subr.mxu0 0.0
    %3089 = vmatpush1.msra.mxu0 0.0
    %3090 = vmatprep.subr.mxu0 0.0
    %3091 = vmatpush1.msra.mxu0 0.0
    %3092 = vmatprep.subr.mxu0 0.0
    %3093 = vmatpush1.msra.mxu0 0.0
    %3094 = vmatprep.mubr.f32.mxu0 0.0
    %3095 = vmatmul.mubr.f32.gmra.mrb[0].mxu0 %v2774
    %v3096 = vpop.f32.mrb[0].mxu0
    %v3097 = vadd.f32 0.0, %v3096
    %v3098 = vpop.f32.mrb[0].mxu0
    %v3099 = vadd.f32 0.0, %v3098
    %3100 = vdwg.mxu0
    %v3101 = vadd.f32 %v2955, %v3026
    %v3102 = vadd.f32 %v2956, %v3028
    %v3103 = vadd.f32 %v2957, %v3097
    %v3104 = vadd.f32 %v2958, %v3099
    %v3105 = vxor.u32 %v3101, 2147483648
    %v3106 = vmul.f32 %v3105, 1.442695
    %v3107 = vpow.pop %v3106
    %v3108 = vadd.f32 %v3107, 1.0
    %v3109 = vrcp.pop %v3108
    %v3110 = vmul.f32 1.0, %v3109
    %v3111 = vxor.u32 %v3102, 2147483648
    %v3112 = vmul.f32 %v3111, 1.442695
    %v3113 = vpow.pop %v3112
    %v3114 = vadd.f32 %v3113, 1.0
    %v3115 = vrcp.pop %v3114
    %v3116 = vmul.f32 1.0, %v3115
    %v3117 = vtanh.pop %v3103
    %v3118 = vxor.u32 %v3104, 2147483648
    %v3119 = vmul.f32 %v3118, 1.442695
    %v3120 = vpow.pop %v3119
    %v3121 = vadd.f32 %v3120, 1.0
    %v3122 = vrcp.pop %v3121
    %v3123 = vmul.f32 1.0, %v3122
    %v3124 = vmul.f32 %v3116, %v2772
    %v3125 = vmul.f32 %v3110, %v3117
    %v3126 = vadd.f32 %v3124, %v3125
    %v3127 = vtanh.pop %v3126
    %v3128 = vmul.f32 %v3123, %v3127
    %s3129 = scalar_lea.vmem [#allocation8], 48
    %3130 = vst [vmem:[%s3129] sm:$0xff] %v3128
    %s3131 = scalar_lea.vmem [#allocation4], 32
    %v3132 = vld [vmem:[%s3131] sm:$0xff]
    %v3133 = vld [vmem:[%s3131 + $0x8] sm:$0xff]
    %v3134 = vld [vmem:[%s3131 + $0x10] sm:$0xff]
    %v3135 = vld [vmem:[%s3131 + $0x18] sm:$0xff]
    %3136 = vmatprep.subr.mxu0 %v765
    %3137 = vmatpush1.msra.mxu0 %v764
    %3138 = vmatprep.subr.mxu0 %v769
    %3139 = vmatpush1.msra.mxu0 %v768
    %3140 = vmatprep.subr.mxu0 %v773
    %3141 = vmatpush1.msra.mxu0 %v772
    %3142 = vmatprep.subr.mxu0 %v777
    %3143 = vmatpush1.msra.mxu0 %v776
    %3144 = vmatprep.subr.mxu0 %v781
    %3145 = vmatpush1.msra.mxu0 %v780
    %3146 = vmatprep.subr.mxu0 %v785
    %3147 = vmatpush1.msra.mxu0 %v784
    %3148 = vmatprep.subr.mxu0 %v789
    %3149 = vmatpush1.msra.mxu0 %v788
    %3150 = vmatprep.subr.mxu0 %v793
    %3151 = vmatpush1.msra.mxu0 %v792
    %3152 = vmatprep.subr.mxu0 %v797
    %3153 = vmatpush1.msra.mxu0 %v796
    %3154 = vmatprep.subr.mxu0 %v801
    %3155 = vmatpush1.msra.mxu0 %v800
    %3156 = vmatprep.subr.mxu0 %v805
    %3157 = vmatpush1.msra.mxu0 %v804
    %3158 = vmatprep.subr.mxu0 %v809
    %3159 = vmatpush1.msra.mxu0 %v808
    %3160 = vmatprep.subr.mxu0 %v813
    %3161 = vmatpush1.msra.mxu0 %v812
    %3162 = vmatprep.subr.mxu0 %v817
    %3163 = vmatpush1.msra.mxu0 %v816
    %3164 = vmatprep.subr.mxu0 %v821
    %3165 = vmatpush1.msra.mxu0 %v820
    %3166 = vmatprep.subr.mxu0 %v825
    %3167 = vmatpush1.msra.mxu0 %v824
    %3168 = vmatprep.subr.mxu0 0.0
    %3169 = vmatpush1.msra.mxu0 0.0
    %3170 = vmatprep.subr.mxu0 0.0
    %3171 = vmatpush1.msra.mxu0 0.0
    %3172 = vmatprep.subr.mxu0 0.0
    %3173 = vmatpush1.msra.mxu0 0.0
    %3174 = vmatprep.subr.mxu0 0.0
    %3175 = vmatpush1.msra.mxu0 0.0
    %3176 = vmatprep.subr.mxu0 0.0
    %3177 = vmatpush1.msra.mxu0 0.0
    %3178 = vmatprep.subr.mxu0 0.0
    %3179 = vmatpush1.msra.mxu0 0.0
    %3180 = vmatprep.subr.mxu0 0.0
    %3181 = vmatpush1.msra.mxu0 0.0
    %3182 = vmatprep.subr.mxu0 0.0
    %3183 = vmatpush1.msra.mxu0 0.0
    %3184 = vmatprep.subr.mxu0 0.0
    %3185 = vmatpush1.msra.mxu0 0.0
    %3186 = vmatprep.subr.mxu0 0.0
    %3187 = vmatpush1.msra.mxu0 0.0
    %3188 = vmatprep.subr.mxu0 0.0
    %3189 = vmatpush1.msra.mxu0 0.0
    %3190 = vmatprep.subr.mxu0 0.0
    %3191 = vmatpush1.msra.mxu0 0.0
    %3192 = vmatprep.subr.mxu0 0.0
    %3193 = vmatpush1.msra.mxu0 0.0
    %3194 = vmatprep.subr.mxu0 0.0
    %3195 = vmatpush1.msra.mxu0 0.0
    %3196 = vmatprep.subr.mxu0 0.0
    %3197 = vmatpush1.msra.mxu0 0.0
    %3198 = vmatprep.subr.mxu0 0.0
    %3199 = vmatpush1.msra.mxu0 0.0
    %3200 = vmatprep.mubr.f32.mxu0 0.0
    %3201 = vmatmul.mubr.f32.gmra.mrb[0].mxu0 %v2951
    %v3202 = vpop.f32.mrb[0].mxu0
    %v3203 = vadd.f32 0.0, %v3202
    %v3204 = vpop.f32.mrb[0].mxu0
    %v3205 = vadd.f32 0.0, %v3204
    %3206 = vdwg.mxu0
    %3207 = vmatprep.subr.mxu0 %v767
    %3208 = vmatpush1.msra.mxu0 %v766
    %3209 = vmatprep.subr.mxu0 %v771
    %3210 = vmatpush1.msra.mxu0 %v770
    %3211 = vmatprep.subr.mxu0 %v775
    %3212 = vmatpush1.msra.mxu0 %v774
    %3213 = vmatprep.subr.mxu0 %v779
    %3214 = vmatpush1.msra.mxu0 %v778
    %3215 = vmatprep.subr.mxu0 %v783
    %3216 = vmatpush1.msra.mxu0 %v782
    %3217 = vmatprep.subr.mxu0 %v787
    %3218 = vmatpush1.msra.mxu0 %v786
    %3219 = vmatprep.subr.mxu0 %v791
    %3220 = vmatpush1.msra.mxu0 %v790
    %3221 = vmatprep.subr.mxu0 %v795
    %3222 = vmatpush1.msra.mxu0 %v794
    %3223 = vmatprep.subr.mxu0 %v799
    %3224 = vmatpush1.msra.mxu0 %v798
    %3225 = vmatprep.subr.mxu0 %v803
    %3226 = vmatpush1.msra.mxu0 %v802
    %3227 = vmatprep.subr.mxu0 %v807
    %3228 = vmatpush1.msra.mxu0 %v806
    %3229 = vmatprep.subr.mxu0 %v811
    %3230 = vmatpush1.msra.mxu0 %v810
    %3231 = vmatprep.subr.mxu0 %v815
    %3232 = vmatpush1.msra.mxu0 %v814
    %3233 = vmatprep.subr.mxu0 %v819
    %3234 = vmatpush1.msra.mxu0 %v818
    %3235 = vmatprep.subr.mxu0 %v823
    %3236 = vmatpush1.msra.mxu0 %v822
    %3237 = vmatprep.subr.mxu0 %v827
    %3238 = vmatpush1.msra.mxu0 %v826
    %3239 = vmatprep.subr.mxu0 0.0
    %3240 = vmatpush1.msra.mxu0 0.0
    %3241 = vmatprep.subr.mxu0 0.0
    %3242 = vmatpush1.msra.mxu0 0.0
    %3243 = vmatprep.subr.mxu0 0.0
    %3244 = vmatpush1.msra.mxu0 0.0
    %3245 = vmatprep.subr.mxu0 0.0
    %3246 = vmatpush1.msra.mxu0 0.0
    %3247 = vmatprep.subr.mxu0 0.0
    %3248 = vmatpush1.msra.mxu0 0.0
    %3249 = vmatprep.subr.mxu0 0.0
    %3250 = vmatpush1.msra.mxu0 0.0
    %3251 = vmatprep.subr.mxu0 0.0
    %3252 = vmatpush1.msra.mxu0 0.0
    %3253 = vmatprep.subr.mxu0 0.0
    %3254 = vmatpush1.msra.mxu0 0.0
    %3255 = vmatprep.subr.mxu0 0.0
    %3256 = vmatpush1.msra.mxu0 0.0
    %3257 = vmatprep.subr.mxu0 0.0
    %3258 = vmatpush1.msra.mxu0 0.0
    %3259 = vmatprep.subr.mxu0 0.0
    %3260 = vmatpush1.msra.mxu0 0.0
    %3261 = vmatprep.subr.mxu0 0.0
    %3262 = vmatpush1.msra.mxu0 0.0
    %3263 = vmatprep.subr.mxu0 0.0
    %3264 = vmatpush1.msra.mxu0 0.0
    %3265 = vmatprep.subr.mxu0 0.0
    %3266 = vmatpush1.msra.mxu0 0.0
    %3267 = vmatprep.subr.mxu0 0.0
    %3268 = vmatpush1.msra.mxu0 0.0
    %3269 = vmatprep.subr.mxu0 0.0
    %3270 = vmatpush1.msra.mxu0 0.0
    %3271 = vmatprep.mubr.f32.mxu0 0.0
    %3272 = vmatmul.mubr.f32.gmra.mrb[0].mxu0 %v2951
    %v3273 = vpop.f32.mrb[0].mxu0
    %v3274 = vadd.f32 0.0, %v3273
    %v3275 = vpop.f32.mrb[0].mxu0
    %v3276 = vadd.f32 0.0, %v3275
    %3277 = vdwg.mxu0
    %v3278 = vadd.f32 %v3132, %v3203
    %v3279 = vadd.f32 %v3133, %v3205
    %v3280 = vadd.f32 %v3134, %v3274
    %v3281 = vadd.f32 %v3135, %v3276
    %v3282 = vxor.u32 %v3278, 2147483648
    %v3283 = vmul.f32 %v3282, 1.442695
    %v3284 = vpow.pop %v3283
    %v3285 = vadd.f32 %v3284, 1.0
    %v3286 = vrcp.pop %v3285
    %v3287 = vmul.f32 1.0, %v3286
    %v3288 = vxor.u32 %v3279, 2147483648
    %v3289 = vmul.f32 %v3288, 1.442695
    %v3290 = vpow.pop %v3289
    %v3291 = vadd.f32 %v3290, 1.0
    %v3292 = vrcp.pop %v3291
    %v3293 = vmul.f32 1.0, %v3292
    %v3294 = vtanh.pop %v3280
    %v3295 = vxor.u32 %v3281, 2147483648
    %v3296 = vmul.f32 %v3295, 1.442695
    %v3297 = vpow.pop %v3296
    %v3298 = vadd.f32 %v3297, 1.0
    %v3299 = vrcp.pop %v3298
    %v3300 = vmul.f32 1.0, %v3299
    %v3301 = vmul.f32 %v3293, %v2949
    %v3302 = vmul.f32 %v3287, %v3294
    %v3303 = vadd.f32 %v3301, %v3302
    %v3304 = vtanh.pop %v3303
    %v3305 = vmul.f32 %v3300, %v3304
    %s3306 = scalar_lea.vmem [#allocation9], 8
    %3307 = vst [vmem:[%s3306] sm:$0xff] %v3305
    %s3308 = scalar_lea.vmem [#allocation3], 224
    %v3309 = vld [vmem:[%s3308] sm:$0xff]
    %v3310 = vld [vmem:[%s3308 + $0x8] sm:$0xff]
    %v3311 = vld [vmem:[%s3308 + $0x10] sm:$0xff]
    %v3312 = vld [vmem:[%s3308 + $0x18] sm:$0xff]
    %3313 = vmatprep.subr.mxu0 %v700
    %3314 = vmatpush1.msra.mxu0 %v699
    %3315 = vmatprep.subr.mxu0 %v704
    %3316 = vmatpush1.msra.mxu0 %v703
    %3317 = vmatprep.subr.mxu0 %v708
    %3318 = vmatpush1.msra.mxu0 %v707
    %3319 = vmatprep.subr.mxu0 %v712
    %3320 = vmatpush1.msra.mxu0 %v711
    %3321 = vmatprep.subr.mxu0 %v716
    %3322 = vmatpush1.msra.mxu0 %v715
    %3323 = vmatprep.subr.mxu0 %v720
    %3324 = vmatpush1.msra.mxu0 %v719
    %3325 = vmatprep.subr.mxu0 %v724
    %3326 = vmatpush1.msra.mxu0 %v723
    %3327 = vmatprep.subr.mxu0 %v728
    %3328 = vmatpush1.msra.mxu0 %v727
    %3329 = vmatprep.subr.mxu0 %v732
    %3330 = vmatpush1.msra.mxu0 %v731
    %3331 = vmatprep.subr.mxu0 %v736
    %3332 = vmatpush1.msra.mxu0 %v735
    %3333 = vmatprep.subr.mxu0 %v740
    %3334 = vmatpush1.msra.mxu0 %v739
    %3335 = vmatprep.subr.mxu0 %v744
    %3336 = vmatpush1.msra.mxu0 %v743
    %3337 = vmatprep.subr.mxu0 %v748
    %3338 = vmatpush1.msra.mxu0 %v747
    %3339 = vmatprep.subr.mxu0 %v752
    %3340 = vmatpush1.msra.mxu0 %v751
    %3341 = vmatprep.subr.mxu0 %v756
    %3342 = vmatpush1.msra.mxu0 %v755
    %3343 = vmatprep.subr.mxu0 %v760
    %3344 = vmatpush1.msra.mxu0 %v759
    %3345 = vmatprep.subr.mxu0 0.0
    %3346 = vmatpush1.msra.mxu0 0.0
    %3347 = vmatprep.subr.mxu0 0.0
    %3348 = vmatpush1.msra.mxu0 0.0
    %3349 = vmatprep.subr.mxu0 0.0
    %3350 = vmatpush1.msra.mxu0 0.0
    %3351 = vmatprep.subr.mxu0 0.0
    %3352 = vmatpush1.msra.mxu0 0.0
    %3353 = vmatprep.subr.mxu0 0.0
    %3354 = vmatpush1.msra.mxu0 0.0
    %3355 = vmatprep.subr.mxu0 0.0
    %3356 = vmatpush1.msra.mxu0 0.0
    %3357 = vmatprep.subr.mxu0 0.0
    %3358 = vmatpush1.msra.mxu0 0.0
    %3359 = vmatprep.subr.mxu0 0.0
    %3360 = vmatpush1.msra.mxu0 0.0
    %3361 = vmatprep.subr.mxu0 0.0
    %3362 = vmatpush1.msra.mxu0 0.0
    %3363 = vmatprep.subr.mxu0 0.0
    %3364 = vmatpush1.msra.mxu0 0.0
    %3365 = vmatprep.subr.mxu0 0.0
    %3366 = vmatpush1.msra.mxu0 0.0
    %3367 = vmatprep.subr.mxu0 0.0
    %3368 = vmatpush1.msra.mxu0 0.0
    %3369 = vmatprep.subr.mxu0 0.0
    %3370 = vmatpush1.msra.mxu0 0.0
    %3371 = vmatprep.subr.mxu0 0.0
    %3372 = vmatpush1.msra.mxu0 0.0
    %3373 = vmatprep.subr.mxu0 0.0
    %3374 = vmatpush1.msra.mxu0 0.0
    %3375 = vmatprep.subr.mxu0 0.0
    %3376 = vmatpush1.msra.mxu0 0.0
    %3377 = vmatprep.mubr.f32.mxu0 0.0
    %3378 = vmatmul.mubr.f32.gmra.mrb[0].mxu0 %v3128
    %v3379 = vpop.f32.mrb[0].mxu0
    %v3380 = vadd.f32 0.0, %v3379
    %v3381 = vpop.f32.mrb[0].mxu0
    %v3382 = vadd.f32 0.0, %v3381
    %3383 = vdwg.mxu0
    %3384 = vmatprep.subr.mxu0 %v702
    %3385 = vmatpush1.msra.mxu0 %v701
    %3386 = vmatprep.subr.mxu0 %v706
    %3387 = vmatpush1.msra.mxu0 %v705
    %3388 = vmatprep.subr.mxu0 %v710
    %3389 = vmatpush1.msra.mxu0 %v709
    %3390 = vmatprep.subr.mxu0 %v714
    %3391 = vmatpush1.msra.mxu0 %v713
    %3392 = vmatprep.subr.mxu0 %v718
    %3393 = vmatpush1.msra.mxu0 %v717
    %3394 = vmatprep.subr.mxu0 %v722
    %3395 = vmatpush1.msra.mxu0 %v721
    %3396 = vmatprep.subr.mxu0 %v726
    %3397 = vmatpush1.msra.mxu0 %v725
    %3398 = vmatprep.subr.mxu0 %v730
    %3399 = vmatpush1.msra.mxu0 %v729
    %3400 = vmatprep.subr.mxu0 %v734
    %3401 = vmatpush1.msra.mxu0 %v733
    %3402 = vmatprep.subr.mxu0 %v738
    %3403 = vmatpush1.msra.mxu0 %v737
    %3404 = vmatprep.subr.mxu0 %v742
    %3405 = vmatpush1.msra.mxu0 %v741
    %3406 = vmatprep.subr.mxu0 %v746
    %3407 = vmatpush1.msra.mxu0 %v745
    %3408 = vmatprep.subr.mxu0 %v750
    %3409 = vmatpush1.msra.mxu0 %v749
    %3410 = vmatprep.subr.mxu0 %v754
    %3411 = vmatpush1.msra.mxu0 %v753
    %3412 = vmatprep.subr.mxu0 %v758
    %3413 = vmatpush1.msra.mxu0 %v757
    %3414 = vmatprep.subr.mxu0 %v762
    %3415 = vmatpush1.msra.mxu0 %v761
    %3416 = vmatprep.subr.mxu0 0.0
    %3417 = vmatpush1.msra.mxu0 0.0
    %3418 = vmatprep.subr.mxu0 0.0
    %3419 = vmatpush1.msra.mxu0 0.0
    %3420 = vmatprep.subr.mxu0 0.0
    %3421 = vmatpush1.msra.mxu0 0.0
    %3422 = vmatprep.subr.mxu0 0.0
    %3423 = vmatpush1.msra.mxu0 0.0
    %3424 = vmatprep.subr.mxu0 0.0
    %3425 = vmatpush1.msra.mxu0 0.0
    %3426 = vmatprep.subr.mxu0 0.0
    %3427 = vmatpush1.msra.mxu0 0.0
    %3428 = vmatprep.subr.mxu0 0.0
    %3429 = vmatpush1.msra.mxu0 0.0
    %3430 = vmatprep.subr.mxu0 0.0
    %3431 = vmatpush1.msra.mxu0 0.0
    %3432 = vmatprep.subr.mxu0 0.0
    %3433 = vmatpush1.msra.mxu0 0.0
    %3434 = vmatprep.subr.mxu0 0.0
    %3435 = vmatpush1.msra.mxu0 0.0
    %3436 = vmatprep.subr.mxu0 0.0
    %3437 = vmatpush1.msra.mxu0 0.0
    %3438 = vmatprep.subr.mxu0 0.0
    %3439 = vmatpush1.msra.mxu0 0.0
    %3440 = vmatprep.subr.mxu0 0.0
    %3441 = vmatpush1.msra.mxu0 0.0
    %3442 = vmatprep.subr.mxu0 0.0
    %3443 = vmatpush1.msra.mxu0 0.0
    %3444 = vmatprep.subr.mxu0 0.0
    %3445 = vmatpush1.msra.mxu0 0.0
    %3446 = vmatprep.subr.mxu0 0.0
    %3447 = vmatpush1.msra.mxu0 0.0
    %3448 = vmatprep.mubr.f32.mxu0 0.0
    %3449 = vmatmul.mubr.f32.gmra.mrb[0].mxu0 %v3128
    %v3450 = vpop.f32.mrb[0].mxu0
    %v3451 = vadd.f32 0.0, %v3450
    %v3452 = vpop.f32.mrb[0].mxu0
    %v3453 = vadd.f32 0.0, %v3452
    %3454 = vdwg.mxu0
    %v3455 = vadd.f32 %v3309, %v3380
    %v3456 = vadd.f32 %v3310, %v3382
    %v3457 = vadd.f32 %v3311, %v3451
    %v3458 = vadd.f32 %v3312, %v3453
    %v3459 = vxor.u32 %v3455, 2147483648
    %v3460 = vmul.f32 %v3459, 1.442695
    %v3461 = vpow.pop %v3460
    %v3462 = vadd.f32 %v3461, 1.0
    %v3463 = vrcp.pop %v3462
    %v3464 = vmul.f32 1.0, %v3463
    %v3465 = vxor.u32 %v3456, 2147483648
    %v3466 = vmul.f32 %v3465, 1.442695
    %v3467 = vpow.pop %v3466
    %v3468 = vadd.f32 %v3467, 1.0
    %v3469 = vrcp.pop %v3468
    %v3470 = vmul.f32 1.0, %v3469
    %v3471 = vtanh.pop %v3457
    %v3472 = vxor.u32 %v3458, 2147483648
    %v3473 = vmul.f32 %v3472, 1.442695
    %v3474 = vpow.pop %v3473
    %v3475 = vadd.f32 %v3474, 1.0
    %v3476 = vrcp.pop %v3475
    %v3477 = vmul.f32 1.0, %v3476
    %v3478 = vmul.f32 %v3470, %v3126
    %v3479 = vmul.f32 %v3464, %v3471
    %v3480 = vadd.f32 %v3478, %v3479
    %v3481 = vtanh.pop %v3480
    %v3482 = vmul.f32 %v3477, %v3481
    %s3483 = scalar_lea.vmem [#allocation8], 56
    %3484 = vst [vmem:[%s3483] sm:$0xff] %v3482
    %v3485 = vld [vmem:[#allocation4] sm:$0xff]
    %v3486 = vld [vmem:[#allocation4 + $0x8] sm:$0xff]
    %v3487 = vld [vmem:[#allocation4 + $0x10] sm:$0xff]
    %v3488 = vld [vmem:[#allocation4 + $0x18] sm:$0xff]
    %3489 = vmatprep.subr.mxu0 %v765
    %3490 = vmatpush1.msra.mxu0 %v764
    %3491 = vmatprep.subr.mxu0 %v769
    %3492 = vmatpush1.msra.mxu0 %v768
    %3493 = vmatprep.subr.mxu0 %v773
    %3494 = vmatpush1.msra.mxu0 %v772
    %3495 = vmatprep.subr.mxu0 %v777
    %3496 = vmatpush1.msra.mxu0 %v776
    %3497 = vmatprep.subr.mxu0 %v781
    %3498 = vmatpush1.msra.mxu0 %v780
    %3499 = vmatprep.subr.mxu0 %v785
    %3500 = vmatpush1.msra.mxu0 %v784
    %3501 = vmatprep.subr.mxu0 %v789
    %3502 = vmatpush1.msra.mxu0 %v788
    %3503 = vmatprep.subr.mxu0 %v793
    %3504 = vmatpush1.msra.mxu0 %v792
    %3505 = vmatprep.subr.mxu0 %v797
    %3506 = vmatpush1.msra.mxu0 %v796
    %3507 = vmatprep.subr.mxu0 %v801
    %3508 = vmatpush1.msra.mxu0 %v800
    %3509 = vmatprep.subr.mxu0 %v805
    %3510 = vmatpush1.msra.mxu0 %v804
    %3511 = vmatprep.subr.mxu0 %v809
    %3512 = vmatpush1.msra.mxu0 %v808
    %3513 = vmatprep.subr.mxu0 %v813
    %3514 = vmatpush1.msra.mxu0 %v812
    %3515 = vmatprep.subr.mxu0 %v817
    %3516 = vmatpush1.msra.mxu0 %v816
    %3517 = vmatprep.subr.mxu0 %v821
    %3518 = vmatpush1.msra.mxu0 %v820
    %3519 = vmatprep.subr.mxu0 %v825
    %3520 = vmatpush1.msra.mxu0 %v824
    %3521 = vmatprep.subr.mxu0 0.0
    %3522 = vmatpush1.msra.mxu0 0.0
    %3523 = vmatprep.subr.mxu0 0.0
    %3524 = vmatpush1.msra.mxu0 0.0
    %3525 = vmatprep.subr.mxu0 0.0
    %3526 = vmatpush1.msra.mxu0 0.0
    %3527 = vmatprep.subr.mxu0 0.0
    %3528 = vmatpush1.msra.mxu0 0.0
    %3529 = vmatprep.subr.mxu0 0.0
    %3530 = vmatpush1.msra.mxu0 0.0
    %3531 = vmatprep.subr.mxu0 0.0
    %3532 = vmatpush1.msra.mxu0 0.0
    %3533 = vmatprep.subr.mxu0 0.0
    %3534 = vmatpush1.msra.mxu0 0.0
    %3535 = vmatprep.subr.mxu0 0.0
    %3536 = vmatpush1.msra.mxu0 0.0
    %3537 = vmatprep.subr.mxu0 0.0
    %3538 = vmatpush1.msra.mxu0 0.0
    %3539 = vmatprep.subr.mxu0 0.0
    %3540 = vmatpush1.msra.mxu0 0.0
    %3541 = vmatprep.subr.mxu0 0.0
    %3542 = vmatpush1.msra.mxu0 0.0
    %3543 = vmatprep.subr.mxu0 0.0
    %3544 = vmatpush1.msra.mxu0 0.0
    %3545 = vmatprep.subr.mxu0 0.0
    %3546 = vmatpush1.msra.mxu0 0.0
    %3547 = vmatprep.subr.mxu0 0.0
    %3548 = vmatpush1.msra.mxu0 0.0
    %3549 = vmatprep.subr.mxu0 0.0
    %3550 = vmatpush1.msra.mxu0 0.0
    %3551 = vmatprep.subr.mxu0 0.0
    %3552 = vmatpush1.msra.mxu0 0.0
    %3553 = vmatprep.mubr.f32.mxu0 0.0
    %3554 = vmatmul.mubr.f32.gmra.mrb[0].mxu0 %v3305
    %v3555 = vpop.f32.mrb[0].mxu0
    %v3556 = vadd.f32 0.0, %v3555
    %v3557 = vpop.f32.mrb[0].mxu0
    %v3558 = vadd.f32 0.0, %v3557
    %3559 = vdwg.mxu0
    %3560 = vmatprep.subr.mxu0 %v767
    %3561 = vmatpush1.msra.mxu0 %v766
    %3562 = vmatprep.subr.mxu0 %v771
    %3563 = vmatpush1.msra.mxu0 %v770
    %3564 = vmatprep.subr.mxu0 %v775
    %3565 = vmatpush1.msra.mxu0 %v774
    %3566 = vmatprep.subr.mxu0 %v779
    %3567 = vmatpush1.msra.mxu0 %v778
    %3568 = vmatprep.subr.mxu0 %v783
    %3569 = vmatpush1.msra.mxu0 %v782
    %3570 = vmatprep.subr.mxu0 %v787
    %3571 = vmatpush1.msra.mxu0 %v786
    %3572 = vmatprep.subr.mxu0 %v791
    %3573 = vmatpush1.msra.mxu0 %v790
    %3574 = vmatprep.subr.mxu0 %v795
    %3575 = vmatpush1.msra.mxu0 %v794
    %3576 = vmatprep.subr.mxu0 %v799
    %3577 = vmatpush1.msra.mxu0 %v798
    %3578 = vmatprep.subr.mxu0 %v803
    %3579 = vmatpush1.msra.mxu0 %v802
    %3580 = vmatprep.subr.mxu0 %v807
    %3581 = vmatpush1.msra.mxu0 %v806
    %3582 = vmatprep.subr.mxu0 %v811
    %3583 = vmatpush1.msra.mxu0 %v810
    %3584 = vmatprep.subr.mxu0 %v815
    %3585 = vmatpush1.msra.mxu0 %v814
    %3586 = vmatprep.subr.mxu0 %v819
    %3587 = vmatpush1.msra.mxu0 %v818
    %3588 = vmatprep.subr.mxu0 %v823
    %3589 = vmatpush1.msra.mxu0 %v822
    %3590 = vmatprep.subr.mxu0 %v827
    %3591 = vmatpush1.msra.mxu0 %v826
    %3592 = vmatprep.subr.mxu0 0.0
    %3593 = vmatpush1.msra.mxu0 0.0
    %3594 = vmatprep.subr.mxu0 0.0
    %3595 = vmatpush1.msra.mxu0 0.0
    %3596 = vmatprep.subr.mxu0 0.0
    %3597 = vmatpush1.msra.mxu0 0.0
    %3598 = vmatprep.subr.mxu0 0.0
    %3599 = vmatpush1.msra.mxu0 0.0
    %3600 = vmatprep.subr.mxu0 0.0
    %3601 = vmatpush1.msra.mxu0 0.0
    %3602 = vmatprep.subr.mxu0 0.0
    %3603 = vmatpush1.msra.mxu0 0.0
    %3604 = vmatprep.subr.mxu0 0.0
    %3605 = vmatpush1.msra.mxu0 0.0
    %3606 = vmatprep.subr.mxu0 0.0
    %3607 = vmatpush1.msra.mxu0 0.0
    %3608 = vmatprep.subr.mxu0 0.0
    %3609 = vmatpush1.msra.mxu0 0.0
    %3610 = vmatprep.subr.mxu0 0.0
    %3611 = vmatpush1.msra.mxu0 0.0
    %3612 = vmatprep.subr.mxu0 0.0
    %3613 = vmatpush1.msra.mxu0 0.0
    %3614 = vmatprep.subr.mxu0 0.0
    %3615 = vmatpush1.msra.mxu0 0.0
    %3616 = vmatprep.subr.mxu0 0.0
    %3617 = vmatpush1.msra.mxu0 0.0
    %3618 = vmatprep.subr.mxu0 0.0
    %3619 = vmatpush1.msra.mxu0 0.0
    %3620 = vmatprep.subr.mxu0 0.0
    %3621 = vmatpush1.msra.mxu0 0.0
    %3622 = vmatprep.subr.mxu0 0.0
    %3623 = vmatpush1.msra.mxu0 0.0
    %3624 = vmatprep.mubr.f32.mxu0 0.0
    %3625 = vmatmul.mubr.f32.gmra.mrb[0].mxu0 %v3305
    %v3626 = vpop.f32.mrb[0].mxu0
    %v3627 = vadd.f32 0.0, %v3626
    %v3628 = vpop.f32.mrb[0].mxu0
    %v3629 = vadd.f32 0.0, %v3628
    %3630 = vdwg.mxu0
    %v3631 = vadd.f32 %v3485, %v3556
    %v3632 = vadd.f32 %v3486, %v3558
    %v3633 = vadd.f32 %v3487, %v3627
    %v3634 = vadd.f32 %v3488, %v3629
    %v3635 = vxor.u32 %v3631, 2147483648
    %v3636 = vmul.f32 %v3635, 1.442695
    %v3637 = vpow.pop %v3636
    %v3638 = vadd.f32 %v3637, 1.0
    %v3639 = vrcp.pop %v3638
    %v3640 = vmul.f32 1.0, %v3639
    %v3641 = vxor.u32 %v3632, 2147483648
    %v3642 = vmul.f32 %v3641, 1.442695
    %v3643 = vpow.pop %v3642
    %v3644 = vadd.f32 %v3643, 1.0
    %v3645 = vrcp.pop %v3644
    %v3646 = vmul.f32 1.0, %v3645
    %v3647 = vtanh.pop %v3633
    %v3648 = vxor.u32 %v3634, 2147483648
    %v3649 = vmul.f32 %v3648, 1.442695
    %v3650 = vpow.pop %v3649
    %v3651 = vadd.f32 %v3650, 1.0
    %v3652 = vrcp.pop %v3651
    %v3653 = vmul.f32 1.0, %v3652
    %v3654 = vmul.f32 %v3646, %v3303
    %v3655 = vmul.f32 %v3640, %v3647
    %v3656 = vadd.f32 %v3654, %v3655
    %v3657 = vtanh.pop %v3656
    %v3658 = vmul.f32 %v3653, %v3657
    %3659 = vst [vmem:[#allocation9] sm:$0xff] %v3658
    %3660 = vst [vmem:[#allocation2] sm:$0xff] %v3482
    %3661 = vst [vmem:[#allocation2 + $0x8] sm:$0xff] %v3658
    %3662 = vst [vmem:[#allocation11] sm:$0xff] %v3480
    %3663 = vst [vmem:[#allocation11 + $0x8] sm:$0xff] %v3656
    // Predicated region
    $region26: #{tpu_custom_call.1} parent=1 // pred_check
      _
    $region27: #{tpu_custom_call.1} parent=1 // pred_check_branch
      %3665 = sbr.rel (0) target = $region29
    $region28: #{tpu_custom_call.1} parent=1 // pred_region
      %s3667 = ssub.s32 1024, 1024
      %3668 = vsyncadd [#allocation7], %s3667
      %s3669 = sshll.u32 [#allocation8], 4
      %s3670 = int_to_ptr.vmem [resolvable:$true] %s3669
      %3675 = dma.vmem_to_hbm [thread:$0]  %s3670, 1024, %s4, [#allocation7], 128, 128, 8
    $region29: #{tpu_custom_call.1} parent=1 // pred_fallthru
      _
    // Predicated region
    $region30: #{tpu_custom_call.1} parent=1 // pred_check
      _
    $region31: #{tpu_custom_call.1} parent=1 // pred_check_branch
      %3677 = sbr.rel (0) target = $region33
    $region32: #{tpu_custom_call.1} parent=1 // pred_region
      %s3678 = ssub.s32 0, 0
      %s3679 = smul.u32 8, %s3678
      %s3681 = ssub.s32 1024, 1024
      %3682 = vsyncadd [#allocation10], %s3681
      %s3683 = smul.addr %s3679, 128
      %s3684 = scalar_lea.hbm %s5, %s3683
      %s3685 = sshll.u32 [#allocation9], 4
      %s3686 = int_to_ptr.vmem [resolvable:$true] %s3685
      %3691 = dma.vmem_to_hbm [thread:$0]  %s3686, 1024, %s3684, [#allocation10], 128, 128, 8
    $region33: #{tpu_custom_call.1} parent=1 // pred_fallthru
      _
    // Predicated region
    $region34: #{tpu_custom_call.1} parent=1 // pred_check
      _
    $region35: #{tpu_custom_call.1} parent=1 // pred_check_branch
      %3693 = sbr.rel (0) target = $region37
    $region36: #{tpu_custom_call.1} parent=1 // pred_region
      %s3695 = ssub.s32 256, 256
      %3696 = vsyncadd [#allocation10], %s3695
      %s3698 = sshll.u32 [#allocation11], 4
      %s3699 = int_to_ptr.vmem [resolvable:$true] %s3698
      %3701 = dma.vmem_to_hbm [thread:$0]  %s3699, 256, %s6, [#allocation10]
    $region37: #{tpu_custom_call.1} parent=1 // pred_fallthru
      _
    // Predicated region
    $region38: #{tpu_custom_call.1} parent=1 // pred_check
      _
    $region39: #{tpu_custom_call.1} parent=1 // pred_check_branch
      %3703 = sbr.rel (0) target = $region41
    $region40: #{tpu_custom_call.1} parent=1 // pred_region
      %3704 = dma.done [#allocation7], 1024
    $region41: #{tpu_custom_call.1} parent=1 // pred_fallthru
      _
    // Predicated region
    $region42: #{tpu_custom_call.1} parent=1 // pred_check
      _
    $region43: #{tpu_custom_call.1} parent=1 // pred_check_branch
      %3706 = sbr.rel (0) target = $region45
    $region44: #{tpu_custom_call.1} parent=1 // pred_region
      %3707 = dma.done [#allocation10], 1024
    $region45: #{tpu_custom_call.1} parent=1 // pred_fallthru
      _
    // Predicated region
    $region46: #{tpu_custom_call.1} parent=1 // pred_check
      _
    $region47: #{tpu_custom_call.1} parent=1 // pred_check_branch
      %3709 = sbr.rel (0) target = $region49
    $region48: #{tpu_custom_call.1} parent=1 // pred_region
      %3710 = dma.done [#allocation10], 256
    $region49: #{tpu_custom_call.1} parent=1 // pred_fallthru
      _
    %3711 = vsyncpa [#allocation6], 1
    %3712 = vsyncpa [#allocation7], 1
    %3713 = vsyncpa [#allocation10], 1

</llo_original>
